<compile_context>
chip_gen: v6e
topology: v6e:2x2x1
jax: 0.10.0
libtpu: 0.0.40
codegen_flags: <defaults>
</compile_context>

<pallas_src>
import jax
import jax.numpy as jnp
from jax.experimental import pallas as pl
from jax.experimental.pallas import tpu as pltpu

# ----------------------------------------------------------------------------
# Dimensions (small synthetic shapes consistent with the module).
# ----------------------------------------------------------------------------
N, CIN, H, W = 2, 4, 16, 16     # input  x: [N, CIN, H, W]  (NCHW, like PyTorch)
CMID = 32                       # hidden channels of the synthetic backbone
COUT = 33                       # backbone head channels (>= 17, as in SPPE)
NKPT = 17                       # narrow(1, 0, 17)
KPAD = 24                       # head rows padded to a multiple of 8 sublanes
K1 = 9 * CIN                    # im2col contraction dim of the 3x3 conv

# Lane-aligned zero canvas: each image sits at rows 1..16, cols 1..16 of a
# CANH x CANW canvas; CANH*CANW = 640 = 5*128 so every in-kernel tile and the
# output store are lane-dense, and the zero border supplies the conv padding.
CANH, CANW = 20, 32
NPIX = CANH * CANW              # 640 lanes per batch element

# Flattened-canvas offsets of the 9 conv taps, tap index t = dy*3 + dx.
_TAP_OFF = tuple((dy - 1) * CANW + (dx - 1) for dy in range(3) for dx in range(3))


# ----------------------------------------------------------------------------
# Fused kernel: conv3x3 (via 9 rolled taps) + bias + ReLU -> 1x1 head + bias.
# ----------------------------------------------------------------------------
def _inferen_kernel(x_ref, w1_ref, b1_ref, w2_ref, b2_ref, o_ref):
    # x_ref : [N, CIN, NPIX]  f32   zero-padded, flattened spatial canvas
    # w1_ref: [9, CMID, CIN]  bf16  3x3 conv weight, one [CMID, CIN] slab per tap
    # b1_ref: [CMID, 1]       f32
    # w2_ref: [KPAD, CMID]    bf16  1x1 head weight (rows >= 17 are zero)
    # b2_ref: [KPAD, 1]       f32   (rows >= 17 are zero)
    # o_ref : [N, KPAD, NPIX] f32
    for n in range(N):                          # N = 2, unrolled; single grid step
        xc = x_ref[n]                           # [CIN, NPIX] f32
        acc = None
        for t, off in enumerate(_TAP_OFF):
            # tap[p] = canvas[p + off]; every reference used by a *valid*
            # output position stays inside the same batch element's canvas,
            # so the circular roll needs no mask.
            tap = xc if off == 0 else pltpu.roll(xc, shift=(-off) % NPIX, axis=1)
            part = jnp.dot(w1_ref[t], tap.astype(jnp.bfloat16),
                           preferred_element_type=jnp.float32)   # [CMID, NPIX]
            acc = part if acc is None else acc + part
        hidden = jnp.maximum(acc + b1_ref[...], 0.0)             # bias + ReLU (f32)
        out = jnp.dot(w2_ref[...], hidden.astype(jnp.bfloat16),
                      preferred_element_type=jnp.float32)        # [KPAD, NPIX]
        o_ref[n] = out + b2_ref[...]


# ----------------------------------------------------------------------------
# Wrapper: canvas layout + weight plumbing + pallas_call + NCHW extraction.
# ----------------------------------------------------------------------------
def inferen_net_fast(x_nchw, w1, b1, w2, b2):
    """Forward pass: x [N, CIN, H, W] f32 -> heatmaps [N, 17, H, W] f32."""
    x_nchw = x_nchw.astype(jnp.float32)
    b1 = jnp.asarray(b1, jnp.float32).reshape(1, CMID)   # tolerate (C,) biases
    b2 = jnp.asarray(b2, jnp.float32).reshape(1, COUT)

    # Zero canvas (conv padding + lane alignment), flattened spatial axis.
    xc = jnp.pad(x_nchw, ((0, 0), (0, 0), (1, CANH - H - 1), (1, CANW - W - 1)))
    xc = xc.reshape(N, CIN, NPIX)                                  # [N, CIN, 640]

    # 3x3 weight as one [CMID, CIN] slab per tap; narrow(1,0,17) folded into
    # the head weights; head zero-padded to 24 rows for unmasked stores.
    w1_r = jnp.transpose(w1.reshape(9, CIN, CMID), (0, 2, 1)).astype(jnp.bfloat16)
    b1_c = b1.T                                                    # [CMID, 1] f32
    w2_p = jnp.pad(w2[:, :NKPT].T, ((0, KPAD - NKPT), (0, 0))).astype(jnp.bfloat16)
    b2_p = jnp.pad(b2[:, :NKPT].T, ((0, KPAD - NKPT), (0, 0)))     # [KPAD, 1] f32

    out_canvas = pl.pallas_call(
        _inferen_kernel,
        out_shape=jax.ShapeDtypeStruct((N, KPAD, NPIX), jnp.float32),
        grid_spec=pltpu.PrefetchScalarGridSpec(
            num_scalar_prefetch=0,
            grid=(1,),                                             # one step, no grid overhead
            in_specs=[
                pl.BlockSpec((N, CIN, NPIX), lambda i: (0, 0, 0)),  # canvas
                pl.BlockSpec((9, CMID, CIN), lambda i: (0, 0, 0)),  # w1 taps
                pl.BlockSpec((CMID, 1), lambda i: (0, 0)),          # b1
                pl.BlockSpec((KPAD, CMID), lambda i: (0, 0)),       # w2 (17->24 rows)
                pl.BlockSpec((KPAD, 1), lambda i: (0, 0)),          # b2 (17->24 rows)
            ],
            out_specs=pl.BlockSpec((N, KPAD, NPIX), lambda i: (0, 0, 0)),
        ),
        compiler_params=pltpu.CompilerParams(
            dimension_semantics=("arbitrary",)),
    )(xc, w1_r, b1_c, w2_p, b2_p)

    # Canvas -> NCHW heatmaps: drop the zero head rows and the canvas border.
    out = out_canvas.reshape(N, KPAD, CANH, CANW)[:, :NKPT, 1:1 + H, 1:1 + W]
    return out                                                     # [N, 17, H, W]


# ----------------------------------------------------------------------------
# Pure-JAX reference with the same bf16-operand / f32-accumulate math.
# ----------------------------------------------------------------------------
def _reference(x_nchw, w1, b1, w2, b2):
    xp = jnp.pad(x_nchw.astype(jnp.float32), ((0, 0), (0, 0), (1, 1), (1, 1)))
    rows = []
    for dy in range(3):
        for dx in range(3):
            rows.append(xp[:, :, dy:dy + H, dx:dx + W].reshape(N, CIN, H * W))
    patches = jnp.concatenate(rows, axis=1).astype(jnp.bfloat16)   # [N, 36, 256]
    hidden = jnp.einsum("ck,nkp->ncp", w1.T.astype(jnp.bfloat16), patches,
                        preferred_element_type=jnp.float32)
    hidden = jnp.maximum(hidden + b1.reshape(1, CMID).T[None], 0.0)
    out = jnp.einsum("dc,ncp->ndp", w2[:, :NKPT].T.astype(jnp.bfloat16),
                     hidden.astype(jnp.bfloat16),
                     preferred_element_type=jnp.float32)
    out = out + b2.reshape(1, COUT)[:, :NKPT].T[None]
    return out.reshape(N, NKPT, H, W)


if __name__ == "__main__":
    key = jax.random.PRNGKey(0)
    kx, k1, kb1, k2, kb2 = jax.random.split(key, 5)

    # Deterministic synthetic parameters (no checkpoint loading).
    x = jax.random.normal(kx, (N, CIN, H, W), dtype=jnp.float32)
    w1 = jax.random.normal(k1, (K1, CMID), dtype=jnp.float32) * 0.1   # 3x3 conv weight (im2col form)
    b1 = jax.random.normal(kb1, (1, CMID), dtype=jnp.float32) * 0.1
    w2 = jax.random.normal(k2, (CMID, COUT), dtype=jnp.float32) * 0.1  # 1x1 head weight
    b2 = jax.random.normal(kb2, (1, COUT), dtype=jnp.float32) * 0.1

    out = jax.block_until_ready(inferen_net_fast(x, w1, b1, w2, b2))
    ref = jax.block_until_ready(_reference(x, w1, b1, w2, b2))

    assert out.shape == (N, NKPT, H, W), out.shape
    # Same bf16-operand / f32-accumulate path in kernel and reference; small
    # slack only for accumulation-order and bf16 rounding differences.
    assert jnp.allclose(out, ref, atol=5e-3, rtol=5e-3), float(jnp.max(jnp.abs(out - ref)))
    print("KERNEL_OK")
</pallas_src>

<mosaic_0001>
module attributes {stable_mosaic.version = 11 : i64} {
  func.func @_inferen_kernel(%arg0: i32, %arg1: memref<2x4x640xf32, #tpu.memory_space<vmem>>, %arg2: memref<9x32x4xbf16, #tpu.memory_space<vmem>>, %arg3: memref<32x1xf32, #tpu.memory_space<vmem>>, %arg4: memref<24x32xbf16, #tpu.memory_space<vmem>>, %arg5: memref<24x1xf32, #tpu.memory_space<vmem>>, %arg6: memref<2x24x640xf32, #tpu.memory_space<vmem>>) attributes {dimension_semantics = [#tpu.dimension_semantics<arbitrary>], iteration_bounds = array<i64: 1>, scalar_prefetch = 0 : i64, scratch_operands = 0 : i64, tpu.core_type = #tpu.core_type<tc>, window_params = [{pipeline_mode = #tpu.pipeline_mode<synchronous>, transform_indices = @transform_0, window_bounds = array<i64: 2, 4, 640>}, {pipeline_mode = #tpu.pipeline_mode<synchronous>, transform_indices = @transform_1, window_bounds = array<i64: 9, 32, 4>}, {pipeline_mode = #tpu.pipeline_mode<synchronous>, transform_indices = @transform_2, window_bounds = array<i64: 32, 1>}, {pipeline_mode = #tpu.pipeline_mode<synchronous>, transform_indices = @transform_3, window_bounds = array<i64: 24, 32>}, {pipeline_mode = #tpu.pipeline_mode<synchronous>, transform_indices = @transform_4, window_bounds = array<i64: 24, 1>}, {pipeline_mode = #tpu.pipeline_mode<synchronous>, transform_indices = @transform_5, window_bounds = array<i64: 2, 24, 640>}]} {
    %c0 = arith.constant 0 : index
    %c0_0 = arith.constant 0 : index
    %c0_1 = arith.constant 0 : index
    %0 = vector.load %arg1[%c0, %c0_0, %c0_1] : memref<2x4x640xf32, #tpu.memory_space<vmem>>, vector<1x4x640xf32>
    %1 = vector.shape_cast %0 : vector<1x4x640xf32> to vector<4x640xf32>
    %c33_i32 = arith.constant 33 : i32
    %2 = tpu.dynamic_rotate %1 by %c33_i32 dim 1 : vector<4x640xf32>, i32 -> vector<4x640xf32>
    %c0_2 = arith.constant 0 : index
    %c0_3 = arith.constant 0 : index
    %c0_4 = arith.constant 0 : index
    %3 = vector.load %arg2[%c0_2, %c0_3, %c0_4] : memref<9x32x4xbf16, #tpu.memory_space<vmem>>, vector<1x32x4xbf16>
    %4 = vector.shape_cast %3 : vector<1x32x4xbf16> to vector<32x4xbf16>
    %5 = arith.truncf %2 : vector<4x640xf32> to vector<4x640xbf16>
    %cst = arith.constant dense<0.000000e+00> : vector<32x640xf32>
    %6 = tpu.matmul %4, %5, %cst {dimension_numbers = #tpu.dot_dimension_numbers<[1], [0], [0], [1], [0, 0, 1, 1], [], []>} : vector<32x4xbf16>, vector<4x640xbf16>, vector<32x640xf32> -> vector<32x640xf32>
    %c32_i32 = arith.constant 32 : i32
    %7 = tpu.dynamic_rotate %1 by %c32_i32 dim 1 : vector<4x640xf32>, i32 -> vector<4x640xf32>
    %c1 = arith.constant 1 : index
    %c0_5 = arith.constant 0 : index
    %c0_6 = arith.constant 0 : index
    %8 = vector.load %arg2[%c1, %c0_5, %c0_6] : memref<9x32x4xbf16, #tpu.memory_space<vmem>>, vector<1x32x4xbf16>
    %9 = vector.shape_cast %8 : vector<1x32x4xbf16> to vector<32x4xbf16>
    %10 = arith.truncf %7 : vector<4x640xf32> to vector<4x640xbf16>
    %cst_7 = arith.constant dense<0.000000e+00> : vector<32x640xf32>
    %11 = tpu.matmul %9, %10, %cst_7 {dimension_numbers = #tpu.dot_dimension_numbers<[1], [0], [0], [1], [0, 0, 1, 1], [], []>} : vector<32x4xbf16>, vector<4x640xbf16>, vector<32x640xf32> -> vector<32x640xf32>
    %12 = arith.addf %6, %11 : vector<32x640xf32>
    %c31_i32 = arith.constant 31 : i32
    %13 = tpu.dynamic_rotate %1 by %c31_i32 dim 1 : vector<4x640xf32>, i32 -> vector<4x640xf32>
    %c2 = arith.constant 2 : index
    %c0_8 = arith.constant 0 : index
    %c0_9 = arith.constant 0 : index
    %14 = vector.load %arg2[%c2, %c0_8, %c0_9] : memref<9x32x4xbf16, #tpu.memory_space<vmem>>, vector<1x32x4xbf16>
    %15 = vector.shape_cast %14 : vector<1x32x4xbf16> to vector<32x4xbf16>
    %16 = arith.truncf %13 : vector<4x640xf32> to vector<4x640xbf16>
    %cst_10 = arith.constant dense<0.000000e+00> : vector<32x640xf32>
    %17 = tpu.matmul %15, %16, %cst_10 {dimension_numbers = #tpu.dot_dimension_numbers<[1], [0], [0], [1], [0, 0, 1, 1], [], []>} : vector<32x4xbf16>, vector<4x640xbf16>, vector<32x640xf32> -> vector<32x640xf32>
    %18 = arith.addf %12, %17 : vector<32x640xf32>
    %c1_i32 = arith.constant 1 : i32
    %19 = tpu.dynamic_rotate %1 by %c1_i32 dim 1 : vector<4x640xf32>, i32 -> vector<4x640xf32>
    %c3 = arith.constant 3 : index
    %c0_11 = arith.constant 0 : index
    %c0_12 = arith.constant 0 : index
    %20 = vector.load %arg2[%c3, %c0_11, %c0_12] : memref<9x32x4xbf16, #tpu.memory_space<vmem>>, vector<1x32x4xbf16>
    %21 = vector.shape_cast %20 : vector<1x32x4xbf16> to vector<32x4xbf16>
    %22 = arith.truncf %19 : vector<4x640xf32> to vector<4x640xbf16>
    %cst_13 = arith.constant dense<0.000000e+00> : vector<32x640xf32>
    %23 = tpu.matmul %21, %22, %cst_13 {dimension_numbers = #tpu.dot_dimension_numbers<[1], [0], [0], [1], [0, 0, 1, 1], [], []>} : vector<32x4xbf16>, vector<4x640xbf16>, vector<32x640xf32> -> vector<32x640xf32>
    %24 = arith.addf %18, %23 : vector<32x640xf32>
    %c4 = arith.constant 4 : index
    %c0_14 = arith.constant 0 : index
    %c0_15 = arith.constant 0 : index
    %25 = vector.load %arg2[%c4, %c0_14, %c0_15] : memref<9x32x4xbf16, #tpu.memory_space<vmem>>, vector<1x32x4xbf16>
    %26 = vector.shape_cast %25 : vector<1x32x4xbf16> to vector<32x4xbf16>
    %27 = arith.truncf %1 : vector<4x640xf32> to vector<4x640xbf16>
    %cst_16 = arith.constant dense<0.000000e+00> : vector<32x640xf32>
    %28 = tpu.matmul %26, %27, %cst_16 {dimension_numbers = #tpu.dot_dimension_numbers<[1], [0], [0], [1], [0, 0, 1, 1], [], []>} : vector<32x4xbf16>, vector<4x640xbf16>, vector<32x640xf32> -> vector<32x640xf32>
    %29 = arith.addf %24, %28 : vector<32x640xf32>
    %c639_i32 = arith.constant 639 : i32
    %30 = tpu.dynamic_rotate %1 by %c639_i32 dim 1 : vector<4x640xf32>, i32 -> vector<4x640xf32>
    %c5 = arith.constant 5 : index
    %c0_17 = arith.constant 0 : index
    %c0_18 = arith.constant 0 : index
    %31 = vector.load %arg2[%c5, %c0_17, %c0_18] : memref<9x32x4xbf16, #tpu.memory_space<vmem>>, vector<1x32x4xbf16>
    %32 = vector.shape_cast %31 : vector<1x32x4xbf16> to vector<32x4xbf16>
    %33 = arith.truncf %30 : vector<4x640xf32> to vector<4x640xbf16>
    %cst_19 = arith.constant dense<0.000000e+00> : vector<32x640xf32>
    %34 = tpu.matmul %32, %33, %cst_19 {dimension_numbers = #tpu.dot_dimension_numbers<[1], [0], [0], [1], [0, 0, 1, 1], [], []>} : vector<32x4xbf16>, vector<4x640xbf16>, vector<32x640xf32> -> vector<32x640xf32>
    %35 = arith.addf %29, %34 : vector<32x640xf32>
    %c609_i32 = arith.constant 609 : i32
    %36 = tpu.dynamic_rotate %1 by %c609_i32 dim 1 : vector<4x640xf32>, i32 -> vector<4x640xf32>
    %c6 = arith.constant 6 : index
    %c0_20 = arith.constant 0 : index
    %c0_21 = arith.constant 0 : index
    %37 = vector.load %arg2[%c6, %c0_20, %c0_21] : memref<9x32x4xbf16, #tpu.memory_space<vmem>>, vector<1x32x4xbf16>
    %38 = vector.shape_cast %37 : vector<1x32x4xbf16> to vector<32x4xbf16>
    %39 = arith.truncf %36 : vector<4x640xf32> to vector<4x640xbf16>
    %cst_22 = arith.constant dense<0.000000e+00> : vector<32x640xf32>
    %40 = tpu.matmul %38, %39, %cst_22 {dimension_numbers = #tpu.dot_dimension_numbers<[1], [0], [0], [1], [0, 0, 1, 1], [], []>} : vector<32x4xbf16>, vector<4x640xbf16>, vector<32x640xf32> -> vector<32x640xf32>
    %41 = arith.addf %35, %40 : vector<32x640xf32>
    %c608_i32 = arith.constant 608 : i32
    %42 = tpu.dynamic_rotate %1 by %c608_i32 dim 1 : vector<4x640xf32>, i32 -> vector<4x640xf32>
    %c7 = arith.constant 7 : index
    %c0_23 = arith.constant 0 : index
    %c0_24 = arith.constant 0 : index
    %43 = vector.load %arg2[%c7, %c0_23, %c0_24] : memref<9x32x4xbf16, #tpu.memory_space<vmem>>, vector<1x32x4xbf16>
    %44 = vector.shape_cast %43 : vector<1x32x4xbf16> to vector<32x4xbf16>
    %45 = arith.truncf %42 : vector<4x640xf32> to vector<4x640xbf16>
    %cst_25 = arith.constant dense<0.000000e+00> : vector<32x640xf32>
    %46 = tpu.matmul %44, %45, %cst_25 {dimension_numbers = #tpu.dot_dimension_numbers<[1], [0], [0], [1], [0, 0, 1, 1], [], []>} : vector<32x4xbf16>, vector<4x640xbf16>, vector<32x640xf32> -> vector<32x640xf32>
    %47 = arith.addf %41, %46 : vector<32x640xf32>
    %c607_i32 = arith.constant 607 : i32
    %48 = tpu.dynamic_rotate %1 by %c607_i32 dim 1 : vector<4x640xf32>, i32 -> vector<4x640xf32>
    %c8 = arith.constant 8 : index
    %c0_26 = arith.constant 0 : index
    %c0_27 = arith.constant 0 : index
    %49 = vector.load %arg2[%c8, %c0_26, %c0_27] : memref<9x32x4xbf16, #tpu.memory_space<vmem>>, vector<1x32x4xbf16>
    %50 = vector.shape_cast %49 : vector<1x32x4xbf16> to vector<32x4xbf16>
    %51 = arith.truncf %48 : vector<4x640xf32> to vector<4x640xbf16>
    %cst_28 = arith.constant dense<0.000000e+00> : vector<32x640xf32>
    %52 = tpu.matmul %50, %51, %cst_28 {dimension_numbers = #tpu.dot_dimension_numbers<[1], [0], [0], [1], [0, 0, 1, 1], [], []>} : vector<32x4xbf16>, vector<4x640xbf16>, vector<32x640xf32> -> vector<32x640xf32>
    %53 = arith.addf %47, %52 : vector<32x640xf32>
    %c0_29 = arith.constant 0 : index
    %c0_30 = arith.constant 0 : index
    %54 = vector.load %arg3[%c0_29, %c0_30] : memref<32x1xf32, #tpu.memory_space<vmem>>, vector<32x1xf32>
    %55 = vector.broadcast %54 : vector<32x1xf32> to vector<32x640xf32>
    %56 = arith.addf %53, %55 : vector<32x640xf32>
    %cst_31 = arith.constant 0.000000e+00 : f32
    %57 = vector.broadcast %cst_31 : f32 to vector<32x640xf32>
    %58 = arith.maximumf %56, %57 : vector<32x640xf32>
    %c0_32 = arith.constant 0 : index
    %c0_33 = arith.constant 0 : index
    %59 = vector.load %arg4[%c0_32, %c0_33] : memref<24x32xbf16, #tpu.memory_space<vmem>>, vector<24x32xbf16>
    %60 = arith.truncf %58 : vector<32x640xf32> to vector<32x640xbf16>
    %cst_34 = arith.constant dense<0.000000e+00> : vector<24x640xf32>
    %61 = tpu.matmul %59, %60, %cst_34 {dimension_numbers = #tpu.dot_dimension_numbers<[1], [0], [0], [1], [0, 0, 1, 1], [], []>} : vector<24x32xbf16>, vector<32x640xbf16>, vector<24x640xf32> -> vector<24x640xf32>
    %c0_35 = arith.constant 0 : index
    %c0_36 = arith.constant 0 : index
    %62 = vector.load %arg5[%c0_35, %c0_36] : memref<24x1xf32, #tpu.memory_space<vmem>>, vector<24x1xf32>
    %63 = vector.broadcast %62 : vector<24x1xf32> to vector<24x640xf32>
    %64 = arith.addf %61, %63 : vector<24x640xf32>
    %c0_37 = arith.constant 0 : index
    %c0_38 = arith.constant 0 : index
    %c0_39 = arith.constant 0 : index
    %65 = vector.load %arg6[%c0_37, %c0_38, %c0_39] : memref<2x24x640xf32, #tpu.memory_space<vmem>>, vector<1x24x640xf32>
    %66 = vector.shape_cast %65 : vector<1x24x640xf32> to vector<24x640xf32>
    %67 = vector.shape_cast %64 : vector<24x640xf32> to vector<1x24x640xf32>
    tpu.vector_store %arg6[%c0_37, %c0_38, %c0_39], %67 {strides = array<i32>} : memref<2x24x640xf32, #tpu.memory_space<vmem>>, vector<1x24x640xf32>,
    %c1_40 = arith.constant 1 : index
    %c0_41 = arith.constant 0 : index
    %c0_42 = arith.constant 0 : index
    %68 = vector.load %arg1[%c1_40, %c0_41, %c0_42] : memref<2x4x640xf32, #tpu.memory_space<vmem>>, vector<1x4x640xf32>
    %69 = vector.shape_cast %68 : vector<1x4x640xf32> to vector<4x640xf32>
    %c33_i32_43 = arith.constant 33 : i32
    %70 = tpu.dynamic_rotate %69 by %c33_i32_43 dim 1 : vector<4x640xf32>, i32 -> vector<4x640xf32>
    %c0_44 = arith.constant 0 : index
    %c0_45 = arith.constant 0 : index
    %c0_46 = arith.constant 0 : index
    %71 = vector.load %arg2[%c0_44, %c0_45, %c0_46] : memref<9x32x4xbf16, #tpu.memory_space<vmem>>, vector<1x32x4xbf16>
    %72 = vector.shape_cast %71 : vector<1x32x4xbf16> to vector<32x4xbf16>
    %73 = arith.truncf %70 : vector<4x640xf32> to vector<4x640xbf16>
    %cst_47 = arith.constant dense<0.000000e+00> : vector<32x640xf32>
    %74 = tpu.matmul %72, %73, %cst_47 {dimension_numbers = #tpu.dot_dimension_numbers<[1], [0], [0], [1], [0, 0, 1, 1], [], []>} : vector<32x4xbf16>, vector<4x640xbf16>, vector<32x640xf32> -> vector<32x640xf32>
    %c32_i32_48 = arith.constant 32 : i32
    %75 = tpu.dynamic_rotate %69 by %c32_i32_48 dim 1 : vector<4x640xf32>, i32 -> vector<4x640xf32>
    %c1_49 = arith.constant 1 : index
    %c0_50 = arith.constant 0 : index
    %c0_51 = arith.constant 0 : index
    %76 = vector.load %arg2[%c1_49, %c0_50, %c0_51] : memref<9x32x4xbf16, #tpu.memory_space<vmem>>, vector<1x32x4xbf16>
    %77 = vector.shape_cast %76 : vector<1x32x4xbf16> to vector<32x4xbf16>
    %78 = arith.truncf %75 : vector<4x640xf32> to vector<4x640xbf16>
    %cst_52 = arith.constant dense<0.000000e+00> : vector<32x640xf32>
    %79 = tpu.matmul %77, %78, %cst_52 {dimension_numbers = #tpu.dot_dimension_numbers<[1], [0], [0], [1], [0, 0, 1, 1], [], []>} : vector<32x4xbf16>, vector<4x640xbf16>, vector<32x640xf32> -> vector<32x640xf32>
    %80 = arith.addf %74, %79 : vector<32x640xf32>
    %c31_i32_53 = arith.constant 31 : i32
    %81 = tpu.dynamic_rotate %69 by %c31_i32_53 dim 1 : vector<4x640xf32>, i32 -> vector<4x640xf32>
    %c2_54 = arith.constant 2 : index
    %c0_55 = arith.constant 0 : index
    %c0_56 = arith.constant 0 : index
    %82 = vector.load %arg2[%c2_54, %c0_55, %c0_56] : memref<9x32x4xbf16, #tpu.memory_space<vmem>>, vector<1x32x4xbf16>
    %83 = vector.shape_cast %82 : vector<1x32x4xbf16> to vector<32x4xbf16>
    %84 = arith.truncf %81 : vector<4x640xf32> to vector<4x640xbf16>
    %cst_57 = arith.constant dense<0.000000e+00> : vector<32x640xf32>
    %85 = tpu.matmul %83, %84, %cst_57 {dimension_numbers = #tpu.dot_dimension_numbers<[1], [0], [0], [1], [0, 0, 1, 1], [], []>} : vector<32x4xbf16>, vector<4x640xbf16>, vector<32x640xf32> -> vector<32x640xf32>
    %86 = arith.addf %80, %85 : vector<32x640xf32>
    %c1_i32_58 = arith.constant 1 : i32
    %87 = tpu.dynamic_rotate %69 by %c1_i32_58 dim 1 : vector<4x640xf32>, i32 -> vector<4x640xf32>
    %c3_59 = arith.constant 3 : index
    %c0_60 = arith.constant 0 : index
    %c0_61 = arith.constant 0 : index
    %88 = vector.load %arg2[%c3_59, %c0_60, %c0_61] : memref<9x32x4xbf16, #tpu.memory_space<vmem>>, vector<1x32x4xbf16>
    %89 = vector.shape_cast %88 : vector<1x32x4xbf16> to vector<32x4xbf16>
    %90 = arith.truncf %87 : vector<4x640xf32> to vector<4x640xbf16>
    %cst_62 = arith.constant dense<0.000000e+00> : vector<32x640xf32>
    %91 = tpu.matmul %89, %90, %cst_62 {dimension_numbers = #tpu.dot_dimension_numbers<[1], [0], [0], [1], [0, 0, 1, 1], [], []>} : vector<32x4xbf16>, vector<4x640xbf16>, vector<32x640xf32> -> vector<32x640xf32>
    %92 = arith.addf %86, %91 : vector<32x640xf32>
    %c4_63 = arith.constant 4 : index
    %c0_64 = arith.constant 0 : index
    %c0_65 = arith.constant 0 : index
    %93 = vector.load %arg2[%c4_63, %c0_64, %c0_65] : memref<9x32x4xbf16, #tpu.memory_space<vmem>>, vector<1x32x4xbf16>
    %94 = vector.shape_cast %93 : vector<1x32x4xbf16> to vector<32x4xbf16>
    %95 = arith.truncf %69 : vector<4x640xf32> to vector<4x640xbf16>
    %cst_66 = arith.constant dense<0.000000e+00> : vector<32x640xf32>
    %96 = tpu.matmul %94, %95, %cst_66 {dimension_numbers = #tpu.dot_dimension_numbers<[1], [0], [0], [1], [0, 0, 1, 1], [], []>} : vector<32x4xbf16>, vector<4x640xbf16>, vector<32x640xf32> -> vector<32x640xf32>
    %97 = arith.addf %92, %96 : vector<32x640xf32>
    %c639_i32_67 = arith.constant 639 : i32
    %98 = tpu.dynamic_rotate %69 by %c639_i32_67 dim 1 : vector<4x640xf32>, i32 -> vector<4x640xf32>
    %c5_68 = arith.constant 5 : index
    %c0_69 = arith.constant 0 : index
    %c0_70 = arith.constant 0 : index
    %99 = vector.load %arg2[%c5_68, %c0_69, %c0_70] : memref<9x32x4xbf16, #tpu.memory_space<vmem>>, vector<1x32x4xbf16>
    %100 = vector.shape_cast %99 : vector<1x32x4xbf16> to vector<32x4xbf16>
    %101 = arith.truncf %98 : vector<4x640xf32> to vector<4x640xbf16>
    %cst_71 = arith.constant dense<0.000000e+00> : vector<32x640xf32>
    %102 = tpu.matmul %100, %101, %cst_71 {dimension_numbers = #tpu.dot_dimension_numbers<[1], [0], [0], [1], [0, 0, 1, 1], [], []>} : vector<32x4xbf16>, vector<4x640xbf16>, vector<32x640xf32> -> vector<32x640xf32>
    %103 = arith.addf %97, %102 : vector<32x640xf32>
    %c609_i32_72 = arith.constant 609 : i32
    %104 = tpu.dynamic_rotate %69 by %c609_i32_72 dim 1 : vector<4x640xf32>, i32 -> vector<4x640xf32>
    %c6_73 = arith.constant 6 : index
    %c0_74 = arith.constant 0 : index
    %c0_75 = arith.constant 0 : index
    %105 = vector.load %arg2[%c6_73, %c0_74, %c0_75] : memref<9x32x4xbf16, #tpu.memory_space<vmem>>, vector<1x32x4xbf16>
    %106 = vector.shape_cast %105 : vector<1x32x4xbf16> to vector<32x4xbf16>
    %107 = arith.truncf %104 : vector<4x640xf32> to vector<4x640xbf16>
    %cst_76 = arith.constant dense<0.000000e+00> : vector<32x640xf32>
    %108 = tpu.matmul %106, %107, %cst_76 {dimension_numbers = #tpu.dot_dimension_numbers<[1], [0], [0], [1], [0, 0, 1, 1], [], []>} : vector<32x4xbf16>, vector<4x640xbf16>, vector<32x640xf32> -> vector<32x640xf32>
    %109 = arith.addf %103, %108 : vector<32x640xf32>
    %c608_i32_77 = arith.constant 608 : i32
    %110 = tpu.dynamic_rotate %69 by %c608_i32_77 dim 1 : vector<4x640xf32>, i32 -> vector<4x640xf32>
    %c7_78 = arith.constant 7 : index
    %c0_79 = arith.constant 0 : index
    %c0_80 = arith.constant 0 : index
    %111 = vector.load %arg2[%c7_78, %c0_79, %c0_80] : memref<9x32x4xbf16, #tpu.memory_space<vmem>>, vector<1x32x4xbf16>
    %112 = vector.shape_cast %111 : vector<1x32x4xbf16> to vector<32x4xbf16>
    %113 = arith.truncf %110 : vector<4x640xf32> to vector<4x640xbf16>
    %cst_81 = arith.constant dense<0.000000e+00> : vector<32x640xf32>
    %114 = tpu.matmul %112, %113, %cst_81 {dimension_numbers = #tpu.dot_dimension_numbers<[1], [0], [0], [1], [0, 0, 1, 1], [], []>} : vector<32x4xbf16>, vector<4x640xbf16>, vector<32x640xf32> -> vector<32x640xf32>
    %115 = arith.addf %109, %114 : vector<32x640xf32>
    %c607_i32_82 = arith.constant 607 : i32
    %116 = tpu.dynamic_rotate %69 by %c607_i32_82 dim 1 : vector<4x640xf32>, i32 -> vector<4x640xf32>
    %c8_83 = arith.constant 8 : index
    %c0_84 = arith.constant 0 : index
    %c0_85 = arith.constant 0 : index
    %117 = vector.load %arg2[%c8_83, %c0_84, %c0_85] : memref<9x32x4xbf16, #tpu.memory_space<vmem>>, vector<1x32x4xbf16>
    %118 = vector.shape_cast %117 : vector<1x32x4xbf16> to vector<32x4xbf16>
    %119 = arith.truncf %116 : vector<4x640xf32> to vector<4x640xbf16>
    %cst_86 = arith.constant dense<0.000000e+00> : vector<32x640xf32>
    %120 = tpu.matmul %118, %119, %cst_86 {dimension_numbers = #tpu.dot_dimension_numbers<[1], [0], [0], [1], [0, 0, 1, 1], [], []>} : vector<32x4xbf16>, vector<4x640xbf16>, vector<32x640xf32> -> vector<32x640xf32>
    %121 = arith.addf %115, %120 : vector<32x640xf32>
    %c0_87 = arith.constant 0 : index
    %c0_88 = arith.constant 0 : index
    %122 = vector.load %arg3[%c0_87, %c0_88] : memref<32x1xf32, #tpu.memory_space<vmem>>, vector<32x1xf32>
    %123 = vector.broadcast %122 : vector<32x1xf32> to vector<32x640xf32>
    %124 = arith.addf %121, %123 : vector<32x640xf32>
    %cst_89 = arith.constant 0.000000e+00 : f32
    %125 = vector.broadcast %cst_89 : f32 to vector<32x640xf32>
    %126 = arith.maximumf %124, %125 : vector<32x640xf32>
    %c0_90 = arith.constant 0 : index
    %c0_91 = arith.constant 0 : index
    %127 = vector.load %arg4[%c0_90, %c0_91] : memref<24x32xbf16, #tpu.memory_space<vmem>>, vector<24x32xbf16>
    %128 = arith.truncf %126 : vector<32x640xf32> to vector<32x640xbf16>
    %cst_92 = arith.constant dense<0.000000e+00> : vector<24x640xf32>
    %129 = tpu.matmul %127, %128, %cst_92 {dimension_numbers = #tpu.dot_dimension_numbers<[1], [0], [0], [1], [0, 0, 1, 1], [], []>} : vector<24x32xbf16>, vector<32x640xbf16>, vector<24x640xf32> -> vector<24x640xf32>
    %c0_93 = arith.constant 0 : index
    %c0_94 = arith.constant 0 : index
    %130 = vector.load %arg5[%c0_93, %c0_94] : memref<24x1xf32, #tpu.memory_space<vmem>>, vector<24x1xf32>
    %131 = vector.broadcast %130 : vector<24x1xf32> to vector<24x640xf32>
    %132 = arith.addf %129, %131 : vector<24x640xf32>
    %c1_95 = arith.constant 1 : index
    %c0_96 = arith.constant 0 : index
    %c0_97 = arith.constant 0 : index
    %133 = vector.load %arg6[%c1_95, %c0_96, %c0_97] : memref<2x24x640xf32, #tpu.memory_space<vmem>>, vector<1x24x640xf32>
    %134 = vector.shape_cast %133 : vector<1x24x640xf32> to vector<24x640xf32>
    %135 = vector.shape_cast %132 : vector<24x640xf32> to vector<1x24x640xf32>
    tpu.vector_store %arg6[%c1_95, %c0_96, %c0_97], %135 {strides = array<i32>} : memref<2x24x640xf32, #tpu.memory_space<vmem>>, vector<1x24x640xf32>,
    return
  }
  func.func @transform_0(%arg0: i32) -> (i32, i32, i32) {
    %c0_i32 = arith.constant 0 : i32
    %c0_i32_0 = arith.constant 0 : i32
    %c0_i32_1 = arith.constant 0 : i32
    %c0_i32_2 = arith.constant 0 : i32
    return %c0_i32, %c0_i32_0, %c0_i32_1 : i32, i32, i32
  }
  func.func @transform_1(%arg0: i32) -> (i32, i32, i32) {
    %c0_i32 = arith.constant 0 : i32
    %c0_i32_0 = arith.constant 0 : i32
    %c0_i32_1 = arith.constant 0 : i32
    %c0_i32_2 = arith.constant 0 : i32
    return %c0_i32, %c0_i32_0, %c0_i32_1 : i32, i32, i32
  }
  func.func @transform_2(%arg0: i32) -> (i32, i32) {
    %c0_i32 = arith.constant 0 : i32
    %c0_i32_0 = arith.constant 0 : i32
    %c0_i32_1 = arith.constant 0 : i32
    return %c0_i32, %c0_i32_0 : i32, i32
  }
  func.func @transform_3(%arg0: i32) -> (i32, i32) {
    %c0_i32 = arith.constant 0 : i32
    %c0_i32_0 = arith.constant 0 : i32
    %c0_i32_1 = arith.constant 0 : i32
    return %c0_i32, %c0_i32_0 : i32, i32
  }
  func.func @transform_4(%arg0: i32) -> (i32, i32) {
    %c0_i32 = arith.constant 0 : i32
    %c0_i32_0 = arith.constant 0 : i32
    %c0_i32_1 = arith.constant 0 : i32
    return %c0_i32, %c0_i32_0 : i32, i32
  }
  func.func @transform_5(%arg0: i32) -> (i32, i32, i32) {
    %c0_i32 = arith.constant 0 : i32
    %c0_i32_0 = arith.constant 0 : i32
    %c0_i32_1 = arith.constant 0 : i32
    %c0_i32_2 = arith.constant 0 : i32
    return %c0_i32, %c0_i32_0, %c0_i32_1 : i32, i32, i32
  }
}

</mosaic_0001>

<llo_original>
// kernel: tpu_custom_call.1
$region0: #{tpu_custom_call.1}
  #allocation0 [shape = 'u32[]', space=smem, size = 0x4, offset = 0x4, fixed_abs, tag = 'smem constant byte address 0x4 - core index']
  #allocation1 [shape = 'u32[144,128]{1,0:T(1,128)}', space=vmem, size = 0x12000, scoped, tag = 'internal scratch']
  %s0 = inlined_call_operand.vmem [shape: f32[2,4,640], index: 0, kind: input, shape index: {}]
  %s1 = inlined_call_operand.vmem [shape: bf16[9,32,4], index: 1, kind: input, shape index: {}]
  %s2 = inlined_call_operand.vmem [shape: f32[32,1], index: 2, kind: input, shape index: {}]
  %s3 = inlined_call_operand.vmem [shape: bf16[24,32], index: 3, kind: input, shape index: {}]
  %s4 = inlined_call_operand.vmem [shape: f32[24,1], index: 4, kind: input, shape index: {}]
  %s5 = inlined_call_operand.hbm [shape: f32[2,24,640], index: 5, kind: output, shape index: {}]
  %s6 = sld [smem:[#allocation0]]
  $region30: #{tpu_custom_call.1} parent=0
    _
  %s8 = ssub.s32 1, %s6
  %s9 = scalar_select 0, %s8, %s6
  $region1: #{tpu_custom_call.1} parent=0
    #allocation2 [shape = 'u8[122880]{0}', space=vmem, size = 0x1e000, scoped, tag = 'output window, operand 0, single buffered']
    #allocation3 [shape = 's32[1]{0}', space=sflag, size = 0x4, scoped, tag = 'scoped memory for tpu_custom_call.1']
    %10 = vsyncpa [#allocation3], 0
    // Predicated region
    $region2: #{tpu_custom_call.1} parent=1 // pred_check
      _
    $region3: #{tpu_custom_call.1} parent=1 // pred_check_branch
      %12 = sbr.rel (0) target = $region5
    $region4: #{tpu_custom_call.1} parent=1 // pred_region
      _
    $region5: #{tpu_custom_call.1} parent=1 // pred_fallthru
      _
    // Predicated region
    $region6: #{tpu_custom_call.1} parent=1 // pred_check
      _
    $region7: #{tpu_custom_call.1} parent=1 // pred_check_branch
      %14 = sbr.rel (0) target = $region9
    $region8: #{tpu_custom_call.1} parent=1 // pred_region
      _
    $region9: #{tpu_custom_call.1} parent=1 // pred_fallthru
      _
    // Predicated region
    $region10: #{tpu_custom_call.1} parent=1 // pred_check
      _
    $region11: #{tpu_custom_call.1} parent=1 // pred_check_branch
      %16 = sbr.rel (0) target = $region13
    $region12: #{tpu_custom_call.1} parent=1 // pred_region
      _
    $region13: #{tpu_custom_call.1} parent=1 // pred_fallthru
      _
    // Predicated region
    $region14: #{tpu_custom_call.1} parent=1 // pred_check
      _
    $region15: #{tpu_custom_call.1} parent=1 // pred_check_branch
      %18 = sbr.rel (0) target = $region17
    $region16: #{tpu_custom_call.1} parent=1 // pred_region
      _
    $region17: #{tpu_custom_call.1} parent=1 // pred_fallthru
      _
    // Predicated region
    $region18: #{tpu_custom_call.1} parent=1 // pred_check
      _
    $region19: #{tpu_custom_call.1} parent=1 // pred_check_branch
      %20 = sbr.rel (0) target = $region21
    $region20: #{tpu_custom_call.1} parent=1 // pred_region
      _
    $region21: #{tpu_custom_call.1} parent=1 // pred_fallthru
      _
    %v22 = vld [vmem:[%s0] sm:$0xff]
    %v23 = vld [vmem:[%s0 + $0x8] sm:$0xff]
    %v24 = vld [vmem:[%s0 + $0x10] sm:$0xf]
    %v27 = vcombine.high %v22, %v22
    %v28 = vcombine.high %v23, %v23
    %31 = vrot.lane.b32.xlu0 %v22, 33
    %v32 = vpop.permute.xlu0 %31
    %33 = vrot.lane.b32.xlu0 %v27, 33
    %v34 = vpop.permute.xlu0 %33
    %35 = vrot.lane.b32.xlu0 %v23, 33
    %v36 = vpop.permute.xlu0 %35
    %37 = vrot.lane.b32.xlu0 %v28, 33
    %v38 = vpop.permute.xlu0 %37
    %39 = vrot.lane.b32.xlu0 %v24, 33
    %v40 = vpop.permute.xlu0 %39
    %v41 = vlaneseq
    %v42 = vand.u32 %v41, 127
    %vm43 = vcmp.lt.s32.totalorder %v42, 33
    %v44 = vsel %vm43, %v38, %v40
    %v45 = vsel %vm43, %v36, %v38
    %v46 = vsel %vm43, %v34, %v36
    %v47 = vsel %vm43, %v32, %v34
    %v48 = vsel %vm43, %v40, %v32
    %v49 = vld [vmem:[%s1] sm:$0xf]
    %v50 = vld [vmem:[%s1 + $0x4] sm:$0xf]
    %v51 = vld [vmem:[%s1 + $0x8] sm:$0xf]
    %v52 = vld [vmem:[%s1 + $0xc] sm:$0xf]
    %v53 = vpack.c.bf16 %v48, %v48
    %v54 = vpack.c.bf16 %v47, %v47
    %v55 = vpack.c.bf16 %v46, %v46
    %v56 = vpack.c.bf16 %v45, %v45
    %v57 = vpack.c.bf16 %v44, %v44
    %58 = vrot.lane.b32.xlu0 %v22, 32
    %v59 = vpop.permute.xlu0 %58
    %60 = vrot.lane.b32.xlu0 %v27, 32
    %v61 = vpop.permute.xlu0 %60
    %62 = vrot.lane.b32.xlu0 %v23, 32
    %v63 = vpop.permute.xlu0 %62
    %64 = vrot.lane.b32.xlu0 %v28, 32
    %v65 = vpop.permute.xlu0 %64
    %66 = vrot.lane.b32.xlu0 %v24, 32
    %v67 = vpop.permute.xlu0 %66
    %vm68 = vcmp.lt.s32.totalorder %v42, 32
    %v69 = vsel %vm68, %v65, %v67
    %v70 = vsel %vm68, %v63, %v65
    %v71 = vsel %vm68, %v61, %v63
    %v72 = vsel %vm68, %v59, %v61
    %v73 = vsel %vm68, %v67, %v59
    %s74 = scalar_lea.vmem %s1, 16
    %v75 = vld [vmem:[%s74] sm:$0xf]
    %v76 = vld [vmem:[%s74 + $0x4] sm:$0xf]
    %v77 = vld [vmem:[%s74 + $0x8] sm:$0xf]
    %v78 = vld [vmem:[%s74 + $0xc] sm:$0xf]
    %v79 = vpack.c.bf16 %v73, %v73
    %v80 = vpack.c.bf16 %v72, %v72
    %v81 = vpack.c.bf16 %v71, %v71
    %v82 = vpack.c.bf16 %v70, %v70
    %v83 = vpack.c.bf16 %v69, %v69
    %v88 = vunpack.c.l.b16 %v75
    %v89 = vunpack.c.l.b16 %v76
    %v90 = vunpack.c.l.b16 %v77
    %v91 = vunpack.c.l.b16 %v78
    %v92 = vpack.c.b16 %v89, %v88
    %v93 = vpack.c.b16 %v91, %v90
    %vm94 = vcmask 31744
    %v96 = vsel %vm94, %v92, 0
    %v99 = vsel %vm94, %v93, 0
    %vm101 = vcmask 1041408
    %v103 = vsel %vm101, %v79, 0
    %v106 = vsel %vm101, %v80, 0
    %v109 = vsel %vm101, %v81, 0
    %v112 = vsel %vm101, %v82, 0
    %v115 = vsel %vm101, %v83, 0
    %117 = vmatprep.subr.bf16.mxu0 0
    %118 = vmatpush1.bf16.msra.mxu0 0
    %119 = vmatprep.subr.bf16.mxu0 0
    %120 = vmatpush1.bf16.msra.mxu0 0
    %121 = vmatprep.subr.bf16.mxu0 0
    %122 = vmatpush1.bf16.msra.mxu0 0
    %123 = vmatprep.subr.bf16.mxu0 0
    %124 = vmatpush1.bf16.msra.mxu0 0
    %125 = vmatprep.subr.bf16.mxu0 0
    %126 = vmatpush1.bf16.msra.mxu0 0
    %127 = vmatprep.subr.bf16.mxu0 0
    %128 = vmatpush1.bf16.msra.mxu0 0
    %129 = vmatprep.subr.bf16.mxu0 0
    %130 = vmatpush1.bf16.msra.mxu0 0
    %131 = vmatprep.subr.bf16.mxu0 %v106
    %132 = vmatpush1.bf16.msra.mxu0 %v103
    %133 = vmatprep.subr.bf16.mxu0 0
    %134 = vmatpush2.bf16.msra.mxu0 0
    %135 = vmatprep.subr.bf16.mxu0 0
    %136 = vmatpush2.bf16.msra.mxu0 0
    %137 = vmatprep.subr.bf16.mxu0 0
    %138 = vmatpush2.bf16.msra.mxu0 0
    %139 = vmatprep.subr.bf16.mxu0 0
    %140 = vmatpush2.bf16.msra.mxu0 0
    %141 = vmatprep.subr.bf16.mxu0 0
    %142 = vmatpush2.bf16.msra.mxu0 0
    %143 = vmatprep.subr.bf16.mxu0 0
    %144 = vmatpush2.bf16.msra.mxu0 0
    %145 = vmatprep.subr.bf16.mxu0 0
    %146 = vmatpush2.bf16.msra.mxu0 0
    %147 = vmatprep.subr.bf16.mxu0 0
    %148 = vmatpush2.bf16.msra.mxu0 0
    %149 = vmatprep.mubr.bf16.mxu0 0
    %150 = vmatmul.mubr.bf16.gmra.mxu0 %v96
    %v151 = vpop.f32.mrf.mxu0
    %v152 = vadd.f32 0.0, %v151
    %v153 = vpop.f32.mrf.mxu0
    %v154 = vadd.f32 0.0, %v153
    %v155 = vpop.f32.mrf.mxu0
    %v156 = vadd.f32 0.0, %v155
    %v157 = vpop.f32.mrf.mxu0
    %v158 = vadd.f32 0.0, %v157
    %159 = vmatprep.mubr.bf16.mxu0 0
    %160 = vmatmul.mubr.bf16.gmra.mxu0 %v99
    %v161 = vpop.f32.mrf.mxu0
    %v162 = vadd.f32 0.0, %v161
    %v163 = vpop.f32.mrf.mxu0
    %v164 = vadd.f32 0.0, %v163
    %v165 = vpop.f32.mrf.mxu0
    %v166 = vadd.f32 0.0, %v165
    %v167 = vpop.f32.mrf.mxu0
    %v168 = vadd.f32 0.0, %v167
    %169 = vdwg.mxu0
    %170 = vmatprep.subr.bf16.mxu0 0
    %171 = vmatpush1.bf16.msra.mxu0 0
    %172 = vmatprep.subr.bf16.mxu0 0
    %173 = vmatpush1.bf16.msra.mxu0 0
    %174 = vmatprep.subr.bf16.mxu0 0
    %175 = vmatpush1.bf16.msra.mxu0 0
    %176 = vmatprep.subr.bf16.mxu0 0
    %177 = vmatpush1.bf16.msra.mxu0 0
    %178 = vmatprep.subr.bf16.mxu0 0
    %179 = vmatpush1.bf16.msra.mxu0 0
    %180 = vmatprep.subr.bf16.mxu0 0
    %181 = vmatpush1.bf16.msra.mxu0 0
    %182 = vmatprep.subr.bf16.mxu0 0
    %183 = vmatpush1.bf16.msra.mxu0 0
    %184 = vmatprep.subr.bf16.mxu0 %v112
    %185 = vmatpush1.bf16.msra.mxu0 %v109
    %186 = vmatprep.subr.bf16.mxu0 0
    %187 = vmatpush2.bf16.msra.mxu0 0
    %188 = vmatprep.subr.bf16.mxu0 0
    %189 = vmatpush2.bf16.msra.mxu0 0
    %190 = vmatprep.subr.bf16.mxu0 0
    %191 = vmatpush2.bf16.msra.mxu0 0
    %192 = vmatprep.subr.bf16.mxu0 0
    %193 = vmatpush2.bf16.msra.mxu0 0
    %194 = vmatprep.subr.bf16.mxu0 0
    %195 = vmatpush2.bf16.msra.mxu0 0
    %196 = vmatprep.subr.bf16.mxu0 0
    %197 = vmatpush2.bf16.msra.mxu0 0
    %198 = vmatprep.subr.bf16.mxu0 0
    %199 = vmatpush2.bf16.msra.mxu0 0
    %200 = vmatprep.subr.bf16.mxu0 0
    %201 = vmatpush2.bf16.msra.mxu0 0
    %202 = vmatprep.mubr.bf16.mxu0 0
    %203 = vmatmul.mubr.bf16.gmra.mxu0 %v96
    %v204 = vpop.f32.mrf.mxu0
    %v205 = vadd.f32 0.0, %v204
    %v206 = vpop.f32.mrf.mxu0
    %v207 = vadd.f32 0.0, %v206
    %v208 = vpop.f32.mrf.mxu0
    %v209 = vadd.f32 0.0, %v208
    %v210 = vpop.f32.mrf.mxu0
    %v211 = vadd.f32 0.0, %v210
    %212 = vmatprep.mubr.bf16.mxu0 0
    %213 = vmatmul.mubr.bf16.gmra.mxu0 %v99
    %v214 = vpop.f32.mrf.mxu0
    %v215 = vadd.f32 0.0, %v214
    %v216 = vpop.f32.mrf.mxu0
    %v217 = vadd.f32 0.0, %v216
    %v218 = vpop.f32.mrf.mxu0
    %v219 = vadd.f32 0.0, %v218
    %v220 = vpop.f32.mrf.mxu0
    %v221 = vadd.f32 0.0, %v220
    %222 = vdwg.mxu0
    %223 = vmatprep.subr.bf16.mxu0 0
    %224 = vmatpush1.bf16.msra.mxu0 0
    %225 = vmatprep.subr.bf16.mxu0 0
    %226 = vmatpush1.bf16.msra.mxu0 0
    %227 = vmatprep.subr.bf16.mxu0 0
    %228 = vmatpush1.bf16.msra.mxu0 0
    %229 = vmatprep.subr.bf16.mxu0 0
    %230 = vmatpush1.bf16.msra.mxu0 0
    %231 = vmatprep.subr.bf16.mxu0 0
    %232 = vmatpush1.bf16.msra.mxu0 0
    %233 = vmatprep.subr.bf16.mxu0 0
    %234 = vmatpush1.bf16.msra.mxu0 0
    %235 = vmatprep.subr.bf16.mxu0 0
    %236 = vmatpush1.bf16.msra.mxu0 0
    %237 = vmatprep.subr.bf16.mxu0 0
    %238 = vmatpush1.bf16.msra.mxu0 %v115
    %239 = vmatprep.subr.bf16.mxu0 0
    %240 = vmatpush2.bf16.msra.mxu0 0
    %241 = vmatprep.subr.bf16.mxu0 0
    %242 = vmatpush2.bf16.msra.mxu0 0
    %243 = vmatprep.subr.bf16.mxu0 0
    %244 = vmatpush2.bf16.msra.mxu0 0
    %245 = vmatprep.subr.bf16.mxu0 0
    %246 = vmatpush2.bf16.msra.mxu0 0
    %247 = vmatprep.subr.bf16.mxu0 0
    %248 = vmatpush2.bf16.msra.mxu0 0
    %249 = vmatprep.subr.bf16.mxu0 0
    %250 = vmatpush2.bf16.msra.mxu0 0
    %251 = vmatprep.subr.bf16.mxu0 0
    %252 = vmatpush2.bf16.msra.mxu0 0
    %253 = vmatprep.subr.bf16.mxu0 0
    %254 = vmatpush2.bf16.msra.mxu0 0
    %255 = vmatprep.mubr.bf16.mxu0 0
    %256 = vmatmul.mubr.bf16.gmra.mxu0 %v96
    %v257 = vpop.f32.mrf.mxu0
    %v258 = vadd.f32 0.0, %v257
    %v259 = vpop.f32.mrf.mxu0
    %v260 = vpop.f32.mrf.mxu0
    %v261 = vadd.f32 0.0, %v260
    %v262 = vpop.f32.mrf.mxu0
    %263 = vmatprep.mubr.bf16.mxu0 0
    %264 = vmatmul.mubr.bf16.gmra.mxu0 %v99
    %v265 = vpop.f32.mrf.mxu0
    %v266 = vadd.f32 0.0, %v265
    %v267 = vpop.f32.mrf.mxu0
    %v268 = vpop.f32.mrf.mxu0
    %v269 = vadd.f32 0.0, %v268
    %v270 = vpop.f32.mrf.mxu0
    %271 = vdwg.mxu0
    %v276 = vunpack.c.l.b16 %v49
    %v277 = vunpack.c.l.b16 %v50
    %v278 = vunpack.c.l.b16 %v51
    %v279 = vunpack.c.l.b16 %v52
    %v280 = vpack.c.b16 %v277, %v276
    %v281 = vpack.c.b16 %v279, %v278
    %v283 = vsel %vm94, %v280, 0
    %v286 = vsel %vm94, %v281, 0
    %v289 = vsel %vm101, %v53, 0
    %v292 = vsel %vm101, %v54, 0
    %v295 = vsel %vm101, %v55, 0
    %v298 = vsel %vm101, %v56, 0
    %v301 = vsel %vm101, %v57, 0
    %303 = vmatprep.subr.bf16.mxu0 0
    %304 = vmatpush1.bf16.msra.mxu0 0
    %305 = vmatprep.subr.bf16.mxu0 0
    %306 = vmatpush1.bf16.msra.mxu0 0
    %307 = vmatprep.subr.bf16.mxu0 0
    %308 = vmatpush1.bf16.msra.mxu0 0
    %309 = vmatprep.subr.bf16.mxu0 0
    %310 = vmatpush1.bf16.msra.mxu0 0
    %311 = vmatprep.subr.bf16.mxu0 0
    %312 = vmatpush1.bf16.msra.mxu0 0
    %313 = vmatprep.subr.bf16.mxu0 0
    %314 = vmatpush1.bf16.msra.mxu0 0
    %315 = vmatprep.subr.bf16.mxu0 0
    %316 = vmatpush1.bf16.msra.mxu0 0
    %317 = vmatprep.subr.bf16.mxu0 %v292
    %318 = vmatpush1.bf16.msra.mxu0 %v289
    %319 = vmatprep.subr.bf16.mxu0 0
    %320 = vmatpush2.bf16.msra.mxu0 0
    %321 = vmatprep.subr.bf16.mxu0 0
    %322 = vmatpush2.bf16.msra.mxu0 0
    %323 = vmatprep.subr.bf16.mxu0 0
    %324 = vmatpush2.bf16.msra.mxu0 0
    %325 = vmatprep.subr.bf16.mxu0 0
    %326 = vmatpush2.bf16.msra.mxu0 0
    %327 = vmatprep.subr.bf16.mxu0 0
    %328 = vmatpush2.bf16.msra.mxu0 0
    %329 = vmatprep.subr.bf16.mxu0 0
    %330 = vmatpush2.bf16.msra.mxu0 0
    %331 = vmatprep.subr.bf16.mxu0 0
    %332 = vmatpush2.bf16.msra.mxu0 0
    %333 = vmatprep.subr.bf16.mxu0 0
    %334 = vmatpush2.bf16.msra.mxu0 0
    %335 = vmatprep.mubr.bf16.mxu0 0
    %336 = vmatmul.mubr.bf16.gmra.mxu0 %v283
    %v337 = vpop.f32.mrf.mxu0
    %v338 = vadd.f32 %v152, %v337
    %v339 = vpop.f32.mrf.mxu0
    %v340 = vadd.f32 %v154, %v339
    %v341 = vpop.f32.mrf.mxu0
    %v342 = vadd.f32 %v156, %v341
    %v343 = vpop.f32.mrf.mxu0
    %v344 = vadd.f32 %v158, %v343
    %345 = vmatprep.mubr.bf16.mxu0 0
    %346 = vmatmul.mubr.bf16.gmra.mxu0 %v286
    %v347 = vpop.f32.mrf.mxu0
    %v348 = vadd.f32 %v162, %v347
    %v349 = vpop.f32.mrf.mxu0
    %v350 = vadd.f32 %v164, %v349
    %v351 = vpop.f32.mrf.mxu0
    %v352 = vadd.f32 %v166, %v351
    %v353 = vpop.f32.mrf.mxu0
    %v354 = vadd.f32 %v168, %v353
    %355 = vdwg.mxu0
    %356 = vmatprep.subr.bf16.mxu0 0
    %357 = vmatpush1.bf16.msra.mxu0 0
    %358 = vmatprep.subr.bf16.mxu0 0
    %359 = vmatpush1.bf16.msra.mxu0 0
    %360 = vmatprep.subr.bf16.mxu0 0
    %361 = vmatpush1.bf16.msra.mxu0 0
    %362 = vmatprep.subr.bf16.mxu0 0
    %363 = vmatpush1.bf16.msra.mxu0 0
    %364 = vmatprep.subr.bf16.mxu0 0
    %365 = vmatpush1.bf16.msra.mxu0 0
    %366 = vmatprep.subr.bf16.mxu0 0
    %367 = vmatpush1.bf16.msra.mxu0 0
    %368 = vmatprep.subr.bf16.mxu0 0
    %369 = vmatpush1.bf16.msra.mxu0 0
    %370 = vmatprep.subr.bf16.mxu0 %v298
    %371 = vmatpush1.bf16.msra.mxu0 %v295
    %372 = vmatprep.subr.bf16.mxu0 0
    %373 = vmatpush2.bf16.msra.mxu0 0
    %374 = vmatprep.subr.bf16.mxu0 0
    %375 = vmatpush2.bf16.msra.mxu0 0
    %376 = vmatprep.subr.bf16.mxu0 0
    %377 = vmatpush2.bf16.msra.mxu0 0
    %378 = vmatprep.subr.bf16.mxu0 0
    %379 = vmatpush2.bf16.msra.mxu0 0
    %380 = vmatprep.subr.bf16.mxu0 0
    %381 = vmatpush2.bf16.msra.mxu0 0
    %382 = vmatprep.subr.bf16.mxu0 0
    %383 = vmatpush2.bf16.msra.mxu0 0
    %384 = vmatprep.subr.bf16.mxu0 0
    %385 = vmatpush2.bf16.msra.mxu0 0
    %386 = vmatprep.subr.bf16.mxu0 0
    %387 = vmatpush2.bf16.msra.mxu0 0
    %388 = vmatprep.mubr.bf16.mxu0 0
    %389 = vmatmul.mubr.bf16.gmra.mxu0 %v283
    %v390 = vpop.f32.mrf.mxu0
    %v391 = vadd.f32 %v205, %v390
    %v392 = vpop.f32.mrf.mxu0
    %v393 = vadd.f32 %v207, %v392
    %v394 = vpop.f32.mrf.mxu0
    %v395 = vadd.f32 %v209, %v394
    %v396 = vpop.f32.mrf.mxu0
    %v397 = vadd.f32 %v211, %v396
    %398 = vmatprep.mubr.bf16.mxu0 0
    %399 = vmatmul.mubr.bf16.gmra.mxu0 %v286
    %v400 = vpop.f32.mrf.mxu0
    %v401 = vadd.f32 %v215, %v400
    %v402 = vpop.f32.mrf.mxu0
    %v403 = vadd.f32 %v217, %v402
    %v404 = vpop.f32.mrf.mxu0
    %v405 = vadd.f32 %v219, %v404
    %v406 = vpop.f32.mrf.mxu0
    %v407 = vadd.f32 %v221, %v406
    %408 = vdwg.mxu0
    %409 = vmatprep.subr.bf16.mxu0 0
    %410 = vmatpush1.bf16.msra.mxu0 0
    %411 = vmatprep.subr.bf16.mxu0 0
    %412 = vmatpush1.bf16.msra.mxu0 0
    %413 = vmatprep.subr.bf16.mxu0 0
    %414 = vmatpush1.bf16.msra.mxu0 0
    %415 = vmatprep.subr.bf16.mxu0 0
    %416 = vmatpush1.bf16.msra.mxu0 0
    %417 = vmatprep.subr.bf16.mxu0 0
    %418 = vmatpush1.bf16.msra.mxu0 0
    %419 = vmatprep.subr.bf16.mxu0 0
    %420 = vmatpush1.bf16.msra.mxu0 0
    %421 = vmatprep.subr.bf16.mxu0 0
    %422 = vmatpush1.bf16.msra.mxu0 0
    %423 = vmatprep.subr.bf16.mxu0 0
    %424 = vmatpush1.bf16.msra.mxu0 %v301
    %425 = vmatprep.subr.bf16.mxu0 0
    %426 = vmatpush2.bf16.msra.mxu0 0
    %427 = vmatprep.subr.bf16.mxu0 0
    %428 = vmatpush2.bf16.msra.mxu0 0
    %429 = vmatprep.subr.bf16.mxu0 0
    %430 = vmatpush2.bf16.msra.mxu0 0
    %431 = vmatprep.subr.bf16.mxu0 0
    %432 = vmatpush2.bf16.msra.mxu0 0
    %433 = vmatprep.subr.bf16.mxu0 0
    %434 = vmatpush2.bf16.msra.mxu0 0
    %435 = vmatprep.subr.bf16.mxu0 0
    %436 = vmatpush2.bf16.msra.mxu0 0
    %437 = vmatprep.subr.bf16.mxu0 0
    %438 = vmatpush2.bf16.msra.mxu0 0
    %439 = vmatprep.subr.bf16.mxu0 0
    %440 = vmatpush2.bf16.msra.mxu0 0
    %441 = vmatprep.mubr.bf16.mxu0 0
    %442 = vmatmul.mubr.bf16.gmra.mxu0 %v283
    %v443 = vpop.f32.mrf.mxu0
    %v444 = vadd.f32 %v258, %v443
    %v445 = vpop.f32.mrf.mxu0
    %v446 = vpop.f32.mrf.mxu0
    %v447 = vadd.f32 %v261, %v446
    %v448 = vpop.f32.mrf.mxu0
    %449 = vmatprep.mubr.bf16.mxu0 0
    %450 = vmatmul.mubr.bf16.gmra.mxu0 %v286
    %v451 = vpop.f32.mrf.mxu0
    %v452 = vadd.f32 %v266, %v451
    %v453 = vpop.f32.mrf.mxu0
    %v454 = vpop.f32.mrf.mxu0
    %v455 = vadd.f32 %v269, %v454
    %v456 = vpop.f32.mrf.mxu0
    %457 = vdwg.mxu0
    %458 = vrot.lane.b32.xlu0 %v22, 31
    %v459 = vpop.permute.xlu0 %458
    %460 = vrot.lane.b32.xlu0 %v27, 31
    %v461 = vpop.permute.xlu0 %460
    %462 = vrot.lane.b32.xlu0 %v23, 31
    %v463 = vpop.permute.xlu0 %462
    %464 = vrot.lane.b32.xlu0 %v28, 31
    %v465 = vpop.permute.xlu0 %464
    %466 = vrot.lane.b32.xlu0 %v24, 31
    %v467 = vpop.permute.xlu0 %466
    %vm468 = vcmp.lt.s32.totalorder %v42, 31
    %v469 = vsel %vm468, %v465, %v467
    %v470 = vsel %vm468, %v463, %v465
    %v471 = vsel %vm468, %v461, %v463
    %v472 = vsel %vm468, %v459, %v461
    %v473 = vsel %vm468, %v467, %v459
    %s474 = scalar_lea.vmem %s1, 32
    %v475 = vld [vmem:[%s474] sm:$0xf]
    %v476 = vld [vmem:[%s474 + $0x4] sm:$0xf]
    %v477 = vld [vmem:[%s474 + $0x8] sm:$0xf]
    %v478 = vld [vmem:[%s474 + $0xc] sm:$0xf]
    %v479 = vpack.c.bf16 %v473, %v473
    %v480 = vpack.c.bf16 %v472, %v472
    %v481 = vpack.c.bf16 %v471, %v471
    %v482 = vpack.c.bf16 %v470, %v470
    %v483 = vpack.c.bf16 %v469, %v469
    %v488 = vunpack.c.l.b16 %v475
    %v489 = vunpack.c.l.b16 %v476
    %v490 = vunpack.c.l.b16 %v477
    %v491 = vunpack.c.l.b16 %v478
    %v492 = vpack.c.b16 %v489, %v488
    %v493 = vpack.c.b16 %v491, %v490
    %v495 = vsel %vm94, %v492, 0
    %v498 = vsel %vm94, %v493, 0
    %v501 = vsel %vm101, %v479, 0
    %v504 = vsel %vm101, %v480, 0
    %v507 = vsel %vm101, %v481, 0
    %v510 = vsel %vm101, %v482, 0
    %v513 = vsel %vm101, %v483, 0
    %515 = vmatprep.subr.bf16.mxu0 0
    %516 = vmatpush1.bf16.msra.mxu0 0
    %517 = vmatprep.subr.bf16.mxu0 0
    %518 = vmatpush1.bf16.msra.mxu0 0
    %519 = vmatprep.subr.bf16.mxu0 0
    %520 = vmatpush1.bf16.msra.mxu0 0
    %521 = vmatprep.subr.bf16.mxu0 0
    %522 = vmatpush1.bf16.msra.mxu0 0
    %523 = vmatprep.subr.bf16.mxu0 0
    %524 = vmatpush1.bf16.msra.mxu0 0
    %525 = vmatprep.subr.bf16.mxu0 0
    %526 = vmatpush1.bf16.msra.mxu0 0
    %527 = vmatprep.subr.bf16.mxu0 0
    %528 = vmatpush1.bf16.msra.mxu0 0
    %529 = vmatprep.subr.bf16.mxu0 %v504
    %530 = vmatpush1.bf16.msra.mxu0 %v501
    %531 = vmatprep.subr.bf16.mxu0 0
    %532 = vmatpush2.bf16.msra.mxu0 0
    %533 = vmatprep.subr.bf16.mxu0 0
    %534 = vmatpush2.bf16.msra.mxu0 0
    %535 = vmatprep.subr.bf16.mxu0 0
    %536 = vmatpush2.bf16.msra.mxu0 0
    %537 = vmatprep.subr.bf16.mxu0 0
    %538 = vmatpush2.bf16.msra.mxu0 0
    %539 = vmatprep.subr.bf16.mxu0 0
    %540 = vmatpush2.bf16.msra.mxu0 0
    %541 = vmatprep.subr.bf16.mxu0 0
    %542 = vmatpush2.bf16.msra.mxu0 0
    %543 = vmatprep.subr.bf16.mxu0 0
    %544 = vmatpush2.bf16.msra.mxu0 0
    %545 = vmatprep.subr.bf16.mxu0 0
    %546 = vmatpush2.bf16.msra.mxu0 0
    %547 = vmatprep.mubr.bf16.mxu0 0
    %548 = vmatmul.mubr.bf16.gmra.mxu0 %v495
    %v549 = vpop.f32.mrf.mxu0
    %v550 = vadd.f32 0.0, %v549
    %v551 = vpop.f32.mrf.mxu0
    %v552 = vadd.f32 0.0, %v551
    %v553 = vpop.f32.mrf.mxu0
    %v554 = vadd.f32 0.0, %v553
    %v555 = vpop.f32.mrf.mxu0
    %v556 = vadd.f32 0.0, %v555
    %557 = vmatprep.mubr.bf16.mxu0 0
    %558 = vmatmul.mubr.bf16.gmra.mxu0 %v498
    %v559 = vpop.f32.mrf.mxu0
    %v560 = vadd.f32 0.0, %v559
    %v561 = vpop.f32.mrf.mxu0
    %v562 = vadd.f32 0.0, %v561
    %v563 = vpop.f32.mrf.mxu0
    %v564 = vadd.f32 0.0, %v563
    %v565 = vpop.f32.mrf.mxu0
    %v566 = vadd.f32 0.0, %v565
    %567 = vdwg.mxu0
    %568 = vmatprep.subr.bf16.mxu0 0
    %569 = vmatpush1.bf16.msra.mxu0 0
    %570 = vmatprep.subr.bf16.mxu0 0
    %571 = vmatpush1.bf16.msra.mxu0 0
    %572 = vmatprep.subr.bf16.mxu0 0
    %573 = vmatpush1.bf16.msra.mxu0 0
    %574 = vmatprep.subr.bf16.mxu0 0
    %575 = vmatpush1.bf16.msra.mxu0 0
    %576 = vmatprep.subr.bf16.mxu0 0
    %577 = vmatpush1.bf16.msra.mxu0 0
    %578 = vmatprep.subr.bf16.mxu0 0
    %579 = vmatpush1.bf16.msra.mxu0 0
    %580 = vmatprep.subr.bf16.mxu0 0
    %581 = vmatpush1.bf16.msra.mxu0 0
    %582 = vmatprep.subr.bf16.mxu0 %v510
    %583 = vmatpush1.bf16.msra.mxu0 %v507
    %584 = vmatprep.subr.bf16.mxu0 0
    %585 = vmatpush2.bf16.msra.mxu0 0
    %586 = vmatprep.subr.bf16.mxu0 0
    %587 = vmatpush2.bf16.msra.mxu0 0
    %588 = vmatprep.subr.bf16.mxu0 0
    %589 = vmatpush2.bf16.msra.mxu0 0
    %590 = vmatprep.subr.bf16.mxu0 0
    %591 = vmatpush2.bf16.msra.mxu0 0
    %592 = vmatprep.subr.bf16.mxu0 0
    %593 = vmatpush2.bf16.msra.mxu0 0
    %594 = vmatprep.subr.bf16.mxu0 0
    %595 = vmatpush2.bf16.msra.mxu0 0
    %596 = vmatprep.subr.bf16.mxu0 0
    %597 = vmatpush2.bf16.msra.mxu0 0
    %598 = vmatprep.subr.bf16.mxu0 0
    %599 = vmatpush2.bf16.msra.mxu0 0
    %600 = vmatprep.mubr.bf16.mxu0 0
    %601 = vmatmul.mubr.bf16.gmra.mxu0 %v495
    %v602 = vpop.f32.mrf.mxu0
    %v603 = vadd.f32 0.0, %v602
    %v604 = vpop.f32.mrf.mxu0
    %v605 = vadd.f32 0.0, %v604
    %v606 = vpop.f32.mrf.mxu0
    %v607 = vadd.f32 0.0, %v606
    %v608 = vpop.f32.mrf.mxu0
    %v609 = vadd.f32 0.0, %v608
    %610 = vmatprep.mubr.bf16.mxu0 0
    %611 = vmatmul.mubr.bf16.gmra.mxu0 %v498
    %v612 = vpop.f32.mrf.mxu0
    %v613 = vadd.f32 0.0, %v612
    %v614 = vpop.f32.mrf.mxu0
    %v615 = vadd.f32 0.0, %v614
    %v616 = vpop.f32.mrf.mxu0
    %v617 = vadd.f32 0.0, %v616
    %v618 = vpop.f32.mrf.mxu0
    %v619 = vadd.f32 0.0, %v618
    %620 = vdwg.mxu0
    %621 = vmatprep.subr.bf16.mxu0 0
    %622 = vmatpush1.bf16.msra.mxu0 0
    %623 = vmatprep.subr.bf16.mxu0 0
    %624 = vmatpush1.bf16.msra.mxu0 0
    %625 = vmatprep.subr.bf16.mxu0 0
    %626 = vmatpush1.bf16.msra.mxu0 0
    %627 = vmatprep.subr.bf16.mxu0 0
    %628 = vmatpush1.bf16.msra.mxu0 0
    %629 = vmatprep.subr.bf16.mxu0 0
    %630 = vmatpush1.bf16.msra.mxu0 0
    %631 = vmatprep.subr.bf16.mxu0 0
    %632 = vmatpush1.bf16.msra.mxu0 0
    %633 = vmatprep.subr.bf16.mxu0 0
    %634 = vmatpush1.bf16.msra.mxu0 0
    %635 = vmatprep.subr.bf16.mxu0 0
    %636 = vmatpush1.bf16.msra.mxu0 %v513
    %637 = vmatprep.subr.bf16.mxu0 0
    %638 = vmatpush2.bf16.msra.mxu0 0
    %639 = vmatprep.subr.bf16.mxu0 0
    %640 = vmatpush2.bf16.msra.mxu0 0
    %641 = vmatprep.subr.bf16.mxu0 0
    %642 = vmatpush2.bf16.msra.mxu0 0
    %643 = vmatprep.subr.bf16.mxu0 0
    %644 = vmatpush2.bf16.msra.mxu0 0
    %645 = vmatprep.subr.bf16.mxu0 0
    %646 = vmatpush2.bf16.msra.mxu0 0
    %647 = vmatprep.subr.bf16.mxu0 0
    %648 = vmatpush2.bf16.msra.mxu0 0
    %649 = vmatprep.subr.bf16.mxu0 0
    %650 = vmatpush2.bf16.msra.mxu0 0
    %651 = vmatprep.subr.bf16.mxu0 0
    %652 = vmatpush2.bf16.msra.mxu0 0
    %653 = vmatprep.mubr.bf16.mxu0 0
    %654 = vmatmul.mubr.bf16.gmra.mxu0 %v495
    %v655 = vpop.f32.mrf.mxu0
    %v656 = vadd.f32 0.0, %v655
    %v657 = vpop.f32.mrf.mxu0
    %v658 = vpop.f32.mrf.mxu0
    %v659 = vadd.f32 0.0, %v658
    %v660 = vpop.f32.mrf.mxu0
    %661 = vmatprep.mubr.bf16.mxu0 0
    %662 = vmatmul.mubr.bf16.gmra.mxu0 %v498
    %v663 = vpop.f32.mrf.mxu0
    %v664 = vadd.f32 0.0, %v663
    %v665 = vpop.f32.mrf.mxu0
    %v666 = vpop.f32.mrf.mxu0
    %v667 = vadd.f32 0.0, %v666
    %v668 = vpop.f32.mrf.mxu0
    %669 = vdwg.mxu0
    %v670 = vadd.f32 %v338, %v550
    %v671 = vadd.f32 %v340, %v552
    %v672 = vadd.f32 %v391, %v603
    %v673 = vadd.f32 %v393, %v605
    %v674 = vadd.f32 %v444, %v656
    %v675 = vadd.f32 %v342, %v554
    %v676 = vadd.f32 %v344, %v556
    %v677 = vadd.f32 %v395, %v607
    %v678 = vadd.f32 %v397, %v609
    %v679 = vadd.f32 %v447, %v659
    %v680 = vadd.f32 %v348, %v560
    %v681 = vadd.f32 %v350, %v562
    %v682 = vadd.f32 %v401, %v613
    %v683 = vadd.f32 %v403, %v615
    %v684 = vadd.f32 %v452, %v664
    %v685 = vadd.f32 %v352, %v564
    %v686 = vadd.f32 %v354, %v566
    %v687 = vadd.f32 %v405, %v617
    %v688 = vadd.f32 %v407, %v619
    %v689 = vadd.f32 %v455, %v667
    %690 = vrot.lane.b32.xlu0 %v22, 1
    %v691 = vpop.permute.xlu0 %690
    %692 = vrot.lane.b32.xlu0 %v27, 1
    %v693 = vpop.permute.xlu0 %692
    %694 = vrot.lane.b32.xlu0 %v23, 1
    %v695 = vpop.permute.xlu0 %694
    %696 = vrot.lane.b32.xlu0 %v28, 1
    %v697 = vpop.permute.xlu0 %696
    %698 = vrot.lane.b32.xlu0 %v24, 1
    %v699 = vpop.permute.xlu0 %698
    %vm700 = vcmp.lt.s32.totalorder %v42, 1
    %v701 = vsel %vm700, %v697, %v699
    %v702 = vsel %vm700, %v695, %v697
    %v703 = vsel %vm700, %v693, %v695
    %v704 = vsel %vm700, %v691, %v693
    %v705 = vsel %vm700, %v699, %v691
    %s706 = scalar_lea.vmem %s1, 48
    %v707 = vld [vmem:[%s706] sm:$0xf]
    %v708 = vld [vmem:[%s706 + $0x4] sm:$0xf]
    %v709 = vld [vmem:[%s706 + $0x8] sm:$0xf]
    %v710 = vld [vmem:[%s706 + $0xc] sm:$0xf]
    %v711 = vpack.c.bf16 %v705, %v705
    %v712 = vpack.c.bf16 %v704, %v704
    %v713 = vpack.c.bf16 %v703, %v703
    %v714 = vpack.c.bf16 %v702, %v702
    %v715 = vpack.c.bf16 %v701, %v701
    %v720 = vunpack.c.l.b16 %v707
    %v721 = vunpack.c.l.b16 %v708
    %v722 = vunpack.c.l.b16 %v709
    %v723 = vunpack.c.l.b16 %v710
    %v724 = vpack.c.b16 %v721, %v720
    %v725 = vpack.c.b16 %v723, %v722
    %v727 = vsel %vm94, %v724, 0
    %v730 = vsel %vm94, %v725, 0
    %v733 = vsel %vm101, %v711, 0
    %v736 = vsel %vm101, %v712, 0
    %v739 = vsel %vm101, %v713, 0
    %v742 = vsel %vm101, %v714, 0
    %v745 = vsel %vm101, %v715, 0
    %747 = vmatprep.subr.bf16.mxu0 0
    %748 = vmatpush1.bf16.msra.mxu0 0
    %749 = vmatprep.subr.bf16.mxu0 0
    %750 = vmatpush1.bf16.msra.mxu0 0
    %751 = vmatprep.subr.bf16.mxu0 0
    %752 = vmatpush1.bf16.msra.mxu0 0
    %753 = vmatprep.subr.bf16.mxu0 0
    %754 = vmatpush1.bf16.msra.mxu0 0
    %755 = vmatprep.subr.bf16.mxu0 0
    %756 = vmatpush1.bf16.msra.mxu0 0
    %757 = vmatprep.subr.bf16.mxu0 0
    %758 = vmatpush1.bf16.msra.mxu0 0
    %759 = vmatprep.subr.bf16.mxu0 0
    %760 = vmatpush1.bf16.msra.mxu0 0
    %761 = vmatprep.subr.bf16.mxu0 %v736
    %762 = vmatpush1.bf16.msra.mxu0 %v733
    %763 = vmatprep.subr.bf16.mxu0 0
    %764 = vmatpush2.bf16.msra.mxu0 0
    %765 = vmatprep.subr.bf16.mxu0 0
    %766 = vmatpush2.bf16.msra.mxu0 0
    %767 = vmatprep.subr.bf16.mxu0 0
    %768 = vmatpush2.bf16.msra.mxu0 0
    %769 = vmatprep.subr.bf16.mxu0 0
    %770 = vmatpush2.bf16.msra.mxu0 0
    %771 = vmatprep.subr.bf16.mxu0 0
    %772 = vmatpush2.bf16.msra.mxu0 0
    %773 = vmatprep.subr.bf16.mxu0 0
    %774 = vmatpush2.bf16.msra.mxu0 0
    %775 = vmatprep.subr.bf16.mxu0 0
    %776 = vmatpush2.bf16.msra.mxu0 0
    %777 = vmatprep.subr.bf16.mxu0 0
    %778 = vmatpush2.bf16.msra.mxu0 0
    %779 = vmatprep.mubr.bf16.mxu0 0
    %780 = vmatmul.mubr.bf16.gmra.mxu0 %v727
    %v781 = vpop.f32.mrf.mxu0
    %v782 = vadd.f32 0.0, %v781
    %v783 = vpop.f32.mrf.mxu0
    %v784 = vadd.f32 0.0, %v783
    %v785 = vpop.f32.mrf.mxu0
    %v786 = vadd.f32 0.0, %v785
    %v787 = vpop.f32.mrf.mxu0
    %v788 = vadd.f32 0.0, %v787
    %789 = vmatprep.mubr.bf16.mxu0 0
    %790 = vmatmul.mubr.bf16.gmra.mxu0 %v730
    %v791 = vpop.f32.mrf.mxu0
    %v792 = vadd.f32 0.0, %v791
    %v793 = vpop.f32.mrf.mxu0
    %v794 = vadd.f32 0.0, %v793
    %v795 = vpop.f32.mrf.mxu0
    %v796 = vadd.f32 0.0, %v795
    %v797 = vpop.f32.mrf.mxu0
    %v798 = vadd.f32 0.0, %v797
    %799 = vdwg.mxu0
    %800 = vmatprep.subr.bf16.mxu0 0
    %801 = vmatpush1.bf16.msra.mxu0 0
    %802 = vmatprep.subr.bf16.mxu0 0
    %803 = vmatpush1.bf16.msra.mxu0 0
    %804 = vmatprep.subr.bf16.mxu0 0
    %805 = vmatpush1.bf16.msra.mxu0 0
    %806 = vmatprep.subr.bf16.mxu0 0
    %807 = vmatpush1.bf16.msra.mxu0 0
    %808 = vmatprep.subr.bf16.mxu0 0
    %809 = vmatpush1.bf16.msra.mxu0 0
    %810 = vmatprep.subr.bf16.mxu0 0
    %811 = vmatpush1.bf16.msra.mxu0 0
    %812 = vmatprep.subr.bf16.mxu0 0
    %813 = vmatpush1.bf16.msra.mxu0 0
    %814 = vmatprep.subr.bf16.mxu0 %v742
    %815 = vmatpush1.bf16.msra.mxu0 %v739
    %816 = vmatprep.subr.bf16.mxu0 0
    %817 = vmatpush2.bf16.msra.mxu0 0
    %818 = vmatprep.subr.bf16.mxu0 0
    %819 = vmatpush2.bf16.msra.mxu0 0
    %820 = vmatprep.subr.bf16.mxu0 0
    %821 = vmatpush2.bf16.msra.mxu0 0
    %822 = vmatprep.subr.bf16.mxu0 0
    %823 = vmatpush2.bf16.msra.mxu0 0
    %824 = vmatprep.subr.bf16.mxu0 0
    %825 = vmatpush2.bf16.msra.mxu0 0
    %826 = vmatprep.subr.bf16.mxu0 0
    %827 = vmatpush2.bf16.msra.mxu0 0
    %828 = vmatprep.subr.bf16.mxu0 0
    %829 = vmatpush2.bf16.msra.mxu0 0
    %830 = vmatprep.subr.bf16.mxu0 0
    %831 = vmatpush2.bf16.msra.mxu0 0
    %832 = vmatprep.mubr.bf16.mxu0 0
    %833 = vmatmul.mubr.bf16.gmra.mxu0 %v727
    %v834 = vpop.f32.mrf.mxu0
    %v835 = vadd.f32 0.0, %v834
    %v836 = vpop.f32.mrf.mxu0
    %v837 = vadd.f32 0.0, %v836
    %v838 = vpop.f32.mrf.mxu0
    %v839 = vadd.f32 0.0, %v838
    %v840 = vpop.f32.mrf.mxu0
    %v841 = vadd.f32 0.0, %v840
    %842 = vmatprep.mubr.bf16.mxu0 0
    %843 = vmatmul.mubr.bf16.gmra.mxu0 %v730
    %v844 = vpop.f32.mrf.mxu0
    %v845 = vadd.f32 0.0, %v844
    %v846 = vpop.f32.mrf.mxu0
    %v847 = vadd.f32 0.0, %v846
    %v848 = vpop.f32.mrf.mxu0
    %v849 = vadd.f32 0.0, %v848
    %v850 = vpop.f32.mrf.mxu0
    %v851 = vadd.f32 0.0, %v850
    %852 = vdwg.mxu0
    %853 = vmatprep.subr.bf16.mxu0 0
    %854 = vmatpush1.bf16.msra.mxu0 0
    %855 = vmatprep.subr.bf16.mxu0 0
    %856 = vmatpush1.bf16.msra.mxu0 0
    %857 = vmatprep.subr.bf16.mxu0 0
    %858 = vmatpush1.bf16.msra.mxu0 0
    %859 = vmatprep.subr.bf16.mxu0 0
    %860 = vmatpush1.bf16.msra.mxu0 0
    %861 = vmatprep.subr.bf16.mxu0 0
    %862 = vmatpush1.bf16.msra.mxu0 0
    %863 = vmatprep.subr.bf16.mxu0 0
    %864 = vmatpush1.bf16.msra.mxu0 0
    %865 = vmatprep.subr.bf16.mxu0 0
    %866 = vmatpush1.bf16.msra.mxu0 0
    %867 = vmatprep.subr.bf16.mxu0 0
    %868 = vmatpush1.bf16.msra.mxu0 %v745
    %869 = vmatprep.subr.bf16.mxu0 0
    %870 = vmatpush2.bf16.msra.mxu0 0
    %871 = vmatprep.subr.bf16.mxu0 0
    %872 = vmatpush2.bf16.msra.mxu0 0
    %873 = vmatprep.subr.bf16.mxu0 0
    %874 = vmatpush2.bf16.msra.mxu0 0
    %875 = vmatprep.subr.bf16.mxu0 0
    %876 = vmatpush2.bf16.msra.mxu0 0
    %877 = vmatprep.subr.bf16.mxu0 0
    %878 = vmatpush2.bf16.msra.mxu0 0
    %879 = vmatprep.subr.bf16.mxu0 0
    %880 = vmatpush2.bf16.msra.mxu0 0
    %881 = vmatprep.subr.bf16.mxu0 0
    %882 = vmatpush2.bf16.msra.mxu0 0
    %883 = vmatprep.subr.bf16.mxu0 0
    %884 = vmatpush2.bf16.msra.mxu0 0
    %885 = vmatprep.mubr.bf16.mxu0 0
    %886 = vmatmul.mubr.bf16.gmra.mxu0 %v727
    %v887 = vpop.f32.mrf.mxu0
    %v888 = vadd.f32 0.0, %v887
    %v889 = vpop.f32.mrf.mxu0
    %v890 = vpop.f32.mrf.mxu0
    %v891 = vadd.f32 0.0, %v890
    %v892 = vpop.f32.mrf.mxu0
    %893 = vmatprep.mubr.bf16.mxu0 0
    %894 = vmatmul.mubr.bf16.gmra.mxu0 %v730
    %v895 = vpop.f32.mrf.mxu0
    %v896 = vadd.f32 0.0, %v895
    %v897 = vpop.f32.mrf.mxu0
    %v898 = vpop.f32.mrf.mxu0
    %v899 = vadd.f32 0.0, %v898
    %v900 = vpop.f32.mrf.mxu0
    %901 = vdwg.mxu0
    %v902 = vadd.f32 %v670, %v782
    %v903 = vadd.f32 %v671, %v784
    %v904 = vadd.f32 %v672, %v835
    %v905 = vadd.f32 %v673, %v837
    %v906 = vadd.f32 %v674, %v888
    %v907 = vadd.f32 %v675, %v786
    %v908 = vadd.f32 %v676, %v788
    %v909 = vadd.f32 %v677, %v839
    %v910 = vadd.f32 %v678, %v841
    %v911 = vadd.f32 %v679, %v891
    %v912 = vadd.f32 %v680, %v792
    %v913 = vadd.f32 %v681, %v794
    %v914 = vadd.f32 %v682, %v845
    %v915 = vadd.f32 %v683, %v847
    %v916 = vadd.f32 %v684, %v896
    %v917 = vadd.f32 %v685, %v796
    %v918 = vadd.f32 %v686, %v798
    %v919 = vadd.f32 %v687, %v849
    %v920 = vadd.f32 %v688, %v851
    %v921 = vadd.f32 %v689, %v899
    %s922 = scalar_lea.vmem %s1, 64
    %v923 = vld [vmem:[%s922] sm:$0xf]
    %v924 = vld [vmem:[%s922 + $0x4] sm:$0xf]
    %v925 = vld [vmem:[%s922 + $0x8] sm:$0xf]
    %v926 = vld [vmem:[%s922 + $0xc] sm:$0xf]
    %v927 = vpack.c.bf16 %v22, %v22
    %v928 = vpack.c.bf16 %v27, %v27
    %v929 = vpack.c.bf16 %v23, %v23
    %v930 = vpack.c.bf16 %v28, %v28
    %v931 = vpack.c.bf16 %v24, %v24
    %v936 = vunpack.c.l.b16 %v923
    %v937 = vunpack.c.l.b16 %v924
    %v938 = vunpack.c.l.b16 %v925
    %v939 = vunpack.c.l.b16 %v926
    %v940 = vpack.c.b16 %v937, %v936
    %v941 = vpack.c.b16 %v939, %v938
    %v943 = vsel %vm94, %v940, 0
    %v946 = vsel %vm94, %v941, 0
    %v949 = vsel %vm101, %v927, 0
    %v952 = vsel %vm101, %v928, 0
    %v955 = vsel %vm101, %v929, 0
    %v958 = vsel %vm101, %v930, 0
    %v961 = vsel %vm101, %v931, 0
    %963 = vmatprep.subr.bf16.mxu0 0
    %964 = vmatpush1.bf16.msra.mxu0 0
    %965 = vmatprep.subr.bf16.mxu0 0
    %966 = vmatpush1.bf16.msra.mxu0 0
    %967 = vmatprep.subr.bf16.mxu0 0
    %968 = vmatpush1.bf16.msra.mxu0 0
    %969 = vmatprep.subr.bf16.mxu0 0
    %970 = vmatpush1.bf16.msra.mxu0 0
    %971 = vmatprep.subr.bf16.mxu0 0
    %972 = vmatpush1.bf16.msra.mxu0 0
    %973 = vmatprep.subr.bf16.mxu0 0
    %974 = vmatpush1.bf16.msra.mxu0 0
    %975 = vmatprep.subr.bf16.mxu0 0
    %976 = vmatpush1.bf16.msra.mxu0 0
    %977 = vmatprep.subr.bf16.mxu0 %v952
    %978 = vmatpush1.bf16.msra.mxu0 %v949
    %979 = vmatprep.subr.bf16.mxu0 0
    %980 = vmatpush2.bf16.msra.mxu0 0
    %981 = vmatprep.subr.bf16.mxu0 0
    %982 = vmatpush2.bf16.msra.mxu0 0
    %983 = vmatprep.subr.bf16.mxu0 0
    %984 = vmatpush2.bf16.msra.mxu0 0
    %985 = vmatprep.subr.bf16.mxu0 0
    %986 = vmatpush2.bf16.msra.mxu0 0
    %987 = vmatprep.subr.bf16.mxu0 0
    %988 = vmatpush2.bf16.msra.mxu0 0
    %989 = vmatprep.subr.bf16.mxu0 0
    %990 = vmatpush2.bf16.msra.mxu0 0
    %991 = vmatprep.subr.bf16.mxu0 0
    %992 = vmatpush2.bf16.msra.mxu0 0
    %993 = vmatprep.subr.bf16.mxu0 0
    %994 = vmatpush2.bf16.msra.mxu0 0
    %995 = vmatprep.mubr.bf16.mxu0 0
    %996 = vmatmul.mubr.bf16.gmra.mxu0 %v943
    %v997 = vpop.f32.mrf.mxu0
    %v998 = vadd.f32 0.0, %v997
    %v999 = vpop.f32.mrf.mxu0
    %v1000 = vadd.f32 0.0, %v999
    %v1001 = vpop.f32.mrf.mxu0
    %v1002 = vadd.f32 0.0, %v1001
    %v1003 = vpop.f32.mrf.mxu0
    %v1004 = vadd.f32 0.0, %v1003
    %1005 = vmatprep.mubr.bf16.mxu0 0
    %1006 = vmatmul.mubr.bf16.gmra.mxu0 %v946
    %v1007 = vpop.f32.mrf.mxu0
    %v1008 = vadd.f32 0.0, %v1007
    %v1009 = vpop.f32.mrf.mxu0
    %v1010 = vadd.f32 0.0, %v1009
    %v1011 = vpop.f32.mrf.mxu0
    %v1012 = vadd.f32 0.0, %v1011
    %v1013 = vpop.f32.mrf.mxu0
    %v1014 = vadd.f32 0.0, %v1013
    %1015 = vdwg.mxu0
    %1016 = vmatprep.subr.bf16.mxu0 0
    %1017 = vmatpush1.bf16.msra.mxu0 0
    %1018 = vmatprep.subr.bf16.mxu0 0
    %1019 = vmatpush1.bf16.msra.mxu0 0
    %1020 = vmatprep.subr.bf16.mxu0 0
    %1021 = vmatpush1.bf16.msra.mxu0 0
    %1022 = vmatprep.subr.bf16.mxu0 0
    %1023 = vmatpush1.bf16.msra.mxu0 0
    %1024 = vmatprep.subr.bf16.mxu0 0
    %1025 = vmatpush1.bf16.msra.mxu0 0
    %1026 = vmatprep.subr.bf16.mxu0 0
    %1027 = vmatpush1.bf16.msra.mxu0 0
    %1028 = vmatprep.subr.bf16.mxu0 0
    %1029 = vmatpush1.bf16.msra.mxu0 0
    %1030 = vmatprep.subr.bf16.mxu0 %v958
    %1031 = vmatpush1.bf16.msra.mxu0 %v955
    %1032 = vmatprep.subr.bf16.mxu0 0
    %1033 = vmatpush2.bf16.msra.mxu0 0
    %1034 = vmatprep.subr.bf16.mxu0 0
    %1035 = vmatpush2.bf16.msra.mxu0 0
    %1036 = vmatprep.subr.bf16.mxu0 0
    %1037 = vmatpush2.bf16.msra.mxu0 0
    %1038 = vmatprep.subr.bf16.mxu0 0
    %1039 = vmatpush2.bf16.msra.mxu0 0
    %1040 = vmatprep.subr.bf16.mxu0 0
    %1041 = vmatpush2.bf16.msra.mxu0 0
    %1042 = vmatprep.subr.bf16.mxu0 0
    %1043 = vmatpush2.bf16.msra.mxu0 0
    %1044 = vmatprep.subr.bf16.mxu0 0
    %1045 = vmatpush2.bf16.msra.mxu0 0
    %1046 = vmatprep.subr.bf16.mxu0 0
    %1047 = vmatpush2.bf16.msra.mxu0 0
    %1048 = vmatprep.mubr.bf16.mxu0 0
    %1049 = vmatmul.mubr.bf16.gmra.mxu0 %v943
    %v1050 = vpop.f32.mrf.mxu0
    %v1051 = vadd.f32 0.0, %v1050
    %v1052 = vpop.f32.mrf.mxu0
    %v1053 = vadd.f32 0.0, %v1052
    %v1054 = vpop.f32.mrf.mxu0
    %v1055 = vadd.f32 0.0, %v1054
    %v1056 = vpop.f32.mrf.mxu0
    %v1057 = vadd.f32 0.0, %v1056
    %1058 = vmatprep.mubr.bf16.mxu0 0
    %1059 = vmatmul.mubr.bf16.gmra.mxu0 %v946
    %v1060 = vpop.f32.mrf.mxu0
    %v1061 = vadd.f32 0.0, %v1060
    %v1062 = vpop.f32.mrf.mxu0
    %v1063 = vadd.f32 0.0, %v1062
    %v1064 = vpop.f32.mrf.mxu0
    %v1065 = vadd.f32 0.0, %v1064
    %v1066 = vpop.f32.mrf.mxu0
    %v1067 = vadd.f32 0.0, %v1066
    %1068 = vdwg.mxu0
    %1069 = vmatprep.subr.bf16.mxu0 0
    %1070 = vmatpush1.bf16.msra.mxu0 0
    %1071 = vmatprep.subr.bf16.mxu0 0
    %1072 = vmatpush1.bf16.msra.mxu0 0
    %1073 = vmatprep.subr.bf16.mxu0 0
    %1074 = vmatpush1.bf16.msra.mxu0 0
    %1075 = vmatprep.subr.bf16.mxu0 0
    %1076 = vmatpush1.bf16.msra.mxu0 0
    %1077 = vmatprep.subr.bf16.mxu0 0
    %1078 = vmatpush1.bf16.msra.mxu0 0
    %1079 = vmatprep.subr.bf16.mxu0 0
    %1080 = vmatpush1.bf16.msra.mxu0 0
    %1081 = vmatprep.subr.bf16.mxu0 0
    %1082 = vmatpush1.bf16.msra.mxu0 0
    %1083 = vmatprep.subr.bf16.mxu0 0
    %1084 = vmatpush1.bf16.msra.mxu0 %v961
    %1085 = vmatprep.subr.bf16.mxu0 0
    %1086 = vmatpush2.bf16.msra.mxu0 0
    %1087 = vmatprep.subr.bf16.mxu0 0
    %1088 = vmatpush2.bf16.msra.mxu0 0
    %1089 = vmatprep.subr.bf16.mxu0 0
    %1090 = vmatpush2.bf16.msra.mxu0 0
    %1091 = vmatprep.subr.bf16.mxu0 0
    %1092 = vmatpush2.bf16.msra.mxu0 0
    %1093 = vmatprep.subr.bf16.mxu0 0
    %1094 = vmatpush2.bf16.msra.mxu0 0
    %1095 = vmatprep.subr.bf16.mxu0 0
    %1096 = vmatpush2.bf16.msra.mxu0 0
    %1097 = vmatprep.subr.bf16.mxu0 0
    %1098 = vmatpush2.bf16.msra.mxu0 0
    %1099 = vmatprep.subr.bf16.mxu0 0
    %1100 = vmatpush2.bf16.msra.mxu0 0
    %1101 = vmatprep.mubr.bf16.mxu0 0
    %1102 = vmatmul.mubr.bf16.gmra.mxu0 %v943
    %v1103 = vpop.f32.mrf.mxu0
    %v1104 = vadd.f32 0.0, %v1103
    %v1105 = vpop.f32.mrf.mxu0
    %v1106 = vpop.f32.mrf.mxu0
    %v1107 = vadd.f32 0.0, %v1106
    %v1108 = vpop.f32.mrf.mxu0
    %1109 = vmatprep.mubr.bf16.mxu0 0
    %1110 = vmatmul.mubr.bf16.gmra.mxu0 %v946
    %v1111 = vpop.f32.mrf.mxu0
    %v1112 = vadd.f32 0.0, %v1111
    %v1113 = vpop.f32.mrf.mxu0
    %v1114 = vpop.f32.mrf.mxu0
    %v1115 = vadd.f32 0.0, %v1114
    %v1116 = vpop.f32.mrf.mxu0
    %1117 = vdwg.mxu0
    %v1118 = vadd.f32 %v902, %v998
    %v1119 = vadd.f32 %v903, %v1000
    %v1120 = vadd.f32 %v904, %v1051
    %v1121 = vadd.f32 %v905, %v1053
    %v1122 = vadd.f32 %v906, %v1104
    %v1123 = vadd.f32 %v907, %v1002
    %v1124 = vadd.f32 %v908, %v1004
    %v1125 = vadd.f32 %v909, %v1055
    %v1126 = vadd.f32 %v910, %v1057
    %v1127 = vadd.f32 %v911, %v1107
    %v1128 = vadd.f32 %v912, %v1008
    %v1129 = vadd.f32 %v913, %v1010
    %v1130 = vadd.f32 %v914, %v1061
    %v1131 = vadd.f32 %v915, %v1063
    %v1132 = vadd.f32 %v916, %v1112
    %v1133 = vadd.f32 %v917, %v1012
    %v1134 = vadd.f32 %v918, %v1014
    %v1135 = vadd.f32 %v919, %v1065
    %v1136 = vadd.f32 %v920, %v1067
    %v1137 = vadd.f32 %v921, %v1115
    %1138 = vrot.lane.b32.xlu0 %v22, 127
    %v1139 = vpop.permute.xlu0 %1138
    %1140 = vrot.lane.b32.xlu0 %v27, 127
    %v1141 = vpop.permute.xlu0 %1140
    %1142 = vrot.lane.b32.xlu0 %v23, 127
    %v1143 = vpop.permute.xlu0 %1142
    %1144 = vrot.lane.b32.xlu0 %v28, 127
    %v1145 = vpop.permute.xlu0 %1144
    %1146 = vrot.lane.b32.xlu0 %v24, 127
    %v1147 = vpop.permute.xlu0 %1146
    %vm1148 = vcmp.lt.s32.totalorder %v42, 127
    %v1149 = vsel %vm1148, %v1145, %v1147
    %v1150 = vsel %vm1148, %v1143, %v1145
    %v1151 = vsel %vm1148, %v1141, %v1143
    %v1152 = vsel %vm1148, %v1139, %v1141
    %v1153 = vsel %vm1148, %v1147, %v1139
    %s1154 = scalar_lea.vmem %s1, 80
    %v1155 = vld [vmem:[%s1154] sm:$0xf]
    %v1156 = vld [vmem:[%s1154 + $0x4] sm:$0xf]
    %v1157 = vld [vmem:[%s1154 + $0x8] sm:$0xf]
    %v1158 = vld [vmem:[%s1154 + $0xc] sm:$0xf]
    %v1159 = vpack.c.bf16 %v1152, %v1152
    %v1160 = vpack.c.bf16 %v1151, %v1151
    %v1161 = vpack.c.bf16 %v1150, %v1150
    %v1162 = vpack.c.bf16 %v1149, %v1149
    %v1163 = vpack.c.bf16 %v1153, %v1153
    %v1168 = vunpack.c.l.b16 %v1155
    %v1169 = vunpack.c.l.b16 %v1156
    %v1170 = vunpack.c.l.b16 %v1157
    %v1171 = vunpack.c.l.b16 %v1158
    %v1172 = vpack.c.b16 %v1169, %v1168
    %v1173 = vpack.c.b16 %v1171, %v1170
    %v1175 = vsel %vm94, %v1172, 0
    %v1178 = vsel %vm94, %v1173, 0
    %v1181 = vsel %vm101, %v1159, 0
    %v1184 = vsel %vm101, %v1160, 0
    %v1187 = vsel %vm101, %v1161, 0
    %v1190 = vsel %vm101, %v1162, 0
    %v1193 = vsel %vm101, %v1163, 0
    %1195 = vmatprep.subr.bf16.mxu0 0
    %1196 = vmatpush1.bf16.msra.mxu0 0
    %1197 = vmatprep.subr.bf16.mxu0 0
    %1198 = vmatpush1.bf16.msra.mxu0 0
    %1199 = vmatprep.subr.bf16.mxu0 0
    %1200 = vmatpush1.bf16.msra.mxu0 0
    %1201 = vmatprep.subr.bf16.mxu0 0
    %1202 = vmatpush1.bf16.msra.mxu0 0
    %1203 = vmatprep.subr.bf16.mxu0 0
    %1204 = vmatpush1.bf16.msra.mxu0 0
    %1205 = vmatprep.subr.bf16.mxu0 0
    %1206 = vmatpush1.bf16.msra.mxu0 0
    %1207 = vmatprep.subr.bf16.mxu0 0
    %1208 = vmatpush1.bf16.msra.mxu0 0
    %1209 = vmatprep.subr.bf16.mxu0 %v1184
    %1210 = vmatpush1.bf16.msra.mxu0 %v1181
    %1211 = vmatprep.subr.bf16.mxu0 0
    %1212 = vmatpush2.bf16.msra.mxu0 0
    %1213 = vmatprep.subr.bf16.mxu0 0
    %1214 = vmatpush2.bf16.msra.mxu0 0
    %1215 = vmatprep.subr.bf16.mxu0 0
    %1216 = vmatpush2.bf16.msra.mxu0 0
    %1217 = vmatprep.subr.bf16.mxu0 0
    %1218 = vmatpush2.bf16.msra.mxu0 0
    %1219 = vmatprep.subr.bf16.mxu0 0
    %1220 = vmatpush2.bf16.msra.mxu0 0
    %1221 = vmatprep.subr.bf16.mxu0 0
    %1222 = vmatpush2.bf16.msra.mxu0 0
    %1223 = vmatprep.subr.bf16.mxu0 0
    %1224 = vmatpush2.bf16.msra.mxu0 0
    %1225 = vmatprep.subr.bf16.mxu0 0
    %1226 = vmatpush2.bf16.msra.mxu0 0
    %1227 = vmatprep.mubr.bf16.mxu0 0
    %1228 = vmatmul.mubr.bf16.gmra.mxu0 %v1175
    %v1229 = vpop.f32.mrf.mxu0
    %v1230 = vadd.f32 0.0, %v1229
    %v1231 = vpop.f32.mrf.mxu0
    %v1232 = vadd.f32 0.0, %v1231
    %v1233 = vpop.f32.mrf.mxu0
    %v1234 = vadd.f32 0.0, %v1233
    %v1235 = vpop.f32.mrf.mxu0
    %v1236 = vadd.f32 0.0, %v1235
    %1237 = vmatprep.mubr.bf16.mxu0 0
    %1238 = vmatmul.mubr.bf16.gmra.mxu0 %v1178
    %v1239 = vpop.f32.mrf.mxu0
    %v1240 = vadd.f32 0.0, %v1239
    %v1241 = vpop.f32.mrf.mxu0
    %v1242 = vadd.f32 0.0, %v1241
    %v1243 = vpop.f32.mrf.mxu0
    %v1244 = vadd.f32 0.0, %v1243
    %v1245 = vpop.f32.mrf.mxu0
    %v1246 = vadd.f32 0.0, %v1245
    %1247 = vdwg.mxu0
    %1248 = vmatprep.subr.bf16.mxu0 0
    %1249 = vmatpush1.bf16.msra.mxu0 0
    %1250 = vmatprep.subr.bf16.mxu0 0
    %1251 = vmatpush1.bf16.msra.mxu0 0
    %1252 = vmatprep.subr.bf16.mxu0 0
    %1253 = vmatpush1.bf16.msra.mxu0 0
    %1254 = vmatprep.subr.bf16.mxu0 0
    %1255 = vmatpush1.bf16.msra.mxu0 0
    %1256 = vmatprep.subr.bf16.mxu0 0
    %1257 = vmatpush1.bf16.msra.mxu0 0
    %1258 = vmatprep.subr.bf16.mxu0 0
    %1259 = vmatpush1.bf16.msra.mxu0 0
    %1260 = vmatprep.subr.bf16.mxu0 0
    %1261 = vmatpush1.bf16.msra.mxu0 0
    %1262 = vmatprep.subr.bf16.mxu0 %v1190
    %1263 = vmatpush1.bf16.msra.mxu0 %v1187
    %1264 = vmatprep.subr.bf16.mxu0 0
    %1265 = vmatpush2.bf16.msra.mxu0 0
    %1266 = vmatprep.subr.bf16.mxu0 0
    %1267 = vmatpush2.bf16.msra.mxu0 0
    %1268 = vmatprep.subr.bf16.mxu0 0
    %1269 = vmatpush2.bf16.msra.mxu0 0
    %1270 = vmatprep.subr.bf16.mxu0 0
    %1271 = vmatpush2.bf16.msra.mxu0 0
    %1272 = vmatprep.subr.bf16.mxu0 0
    %1273 = vmatpush2.bf16.msra.mxu0 0
    %1274 = vmatprep.subr.bf16.mxu0 0
    %1275 = vmatpush2.bf16.msra.mxu0 0
    %1276 = vmatprep.subr.bf16.mxu0 0
    %1277 = vmatpush2.bf16.msra.mxu0 0
    %1278 = vmatprep.subr.bf16.mxu0 0
    %1279 = vmatpush2.bf16.msra.mxu0 0
    %1280 = vmatprep.mubr.bf16.mxu0 0
    %1281 = vmatmul.mubr.bf16.gmra.mxu0 %v1175
    %v1282 = vpop.f32.mrf.mxu0
    %v1283 = vadd.f32 0.0, %v1282
    %v1284 = vpop.f32.mrf.mxu0
    %v1285 = vadd.f32 0.0, %v1284
    %v1286 = vpop.f32.mrf.mxu0
    %v1287 = vadd.f32 0.0, %v1286
    %v1288 = vpop.f32.mrf.mxu0
    %v1289 = vadd.f32 0.0, %v1288
    %1290 = vmatprep.mubr.bf16.mxu0 0
    %1291 = vmatmul.mubr.bf16.gmra.mxu0 %v1178
    %v1292 = vpop.f32.mrf.mxu0
    %v1293 = vadd.f32 0.0, %v1292
    %v1294 = vpop.f32.mrf.mxu0
    %v1295 = vadd.f32 0.0, %v1294
    %v1296 = vpop.f32.mrf.mxu0
    %v1297 = vadd.f32 0.0, %v1296
    %v1298 = vpop.f32.mrf.mxu0
    %v1299 = vadd.f32 0.0, %v1298
    %1300 = vdwg.mxu0
    %1301 = vmatprep.subr.bf16.mxu0 0
    %1302 = vmatpush1.bf16.msra.mxu0 0
    %1303 = vmatprep.subr.bf16.mxu0 0
    %1304 = vmatpush1.bf16.msra.mxu0 0
    %1305 = vmatprep.subr.bf16.mxu0 0
    %1306 = vmatpush1.bf16.msra.mxu0 0
    %1307 = vmatprep.subr.bf16.mxu0 0
    %1308 = vmatpush1.bf16.msra.mxu0 0
    %1309 = vmatprep.subr.bf16.mxu0 0
    %1310 = vmatpush1.bf16.msra.mxu0 0
    %1311 = vmatprep.subr.bf16.mxu0 0
    %1312 = vmatpush1.bf16.msra.mxu0 0
    %1313 = vmatprep.subr.bf16.mxu0 0
    %1314 = vmatpush1.bf16.msra.mxu0 0
    %1315 = vmatprep.subr.bf16.mxu0 0
    %1316 = vmatpush1.bf16.msra.mxu0 %v1193
    %1317 = vmatprep.subr.bf16.mxu0 0
    %1318 = vmatpush2.bf16.msra.mxu0 0
    %1319 = vmatprep.subr.bf16.mxu0 0
    %1320 = vmatpush2.bf16.msra.mxu0 0
    %1321 = vmatprep.subr.bf16.mxu0 0
    %1322 = vmatpush2.bf16.msra.mxu0 0
    %1323 = vmatprep.subr.bf16.mxu0 0
    %1324 = vmatpush2.bf16.msra.mxu0 0
    %1325 = vmatprep.subr.bf16.mxu0 0
    %1326 = vmatpush2.bf16.msra.mxu0 0
    %1327 = vmatprep.subr.bf16.mxu0 0
    %1328 = vmatpush2.bf16.msra.mxu0 0
    %1329 = vmatprep.subr.bf16.mxu0 0
    %1330 = vmatpush2.bf16.msra.mxu0 0
    %1331 = vmatprep.subr.bf16.mxu0 0
    %1332 = vmatpush2.bf16.msra.mxu0 0
    %1333 = vmatprep.mubr.bf16.mxu0 0
    %1334 = vmatmul.mubr.bf16.gmra.mxu0 %v1175
    %v1335 = vpop.f32.mrf.mxu0
    %v1336 = vadd.f32 0.0, %v1335
    %v1337 = vpop.f32.mrf.mxu0
    %v1338 = vpop.f32.mrf.mxu0
    %v1339 = vadd.f32 0.0, %v1338
    %v1340 = vpop.f32.mrf.mxu0
    %1341 = vmatprep.mubr.bf16.mxu0 0
    %1342 = vmatmul.mubr.bf16.gmra.mxu0 %v1178
    %v1343 = vpop.f32.mrf.mxu0
    %v1344 = vadd.f32 0.0, %v1343
    %v1345 = vpop.f32.mrf.mxu0
    %v1346 = vpop.f32.mrf.mxu0
    %v1347 = vadd.f32 0.0, %v1346
    %v1348 = vpop.f32.mrf.mxu0
    %1349 = vdwg.mxu0
    %v1350 = vadd.f32 %v1118, %v1230
    %v1351 = vadd.f32 %v1119, %v1232
    %v1352 = vadd.f32 %v1120, %v1283
    %v1353 = vadd.f32 %v1121, %v1285
    %v1354 = vadd.f32 %v1122, %v1336
    %v1355 = vadd.f32 %v1123, %v1234
    %v1356 = vadd.f32 %v1124, %v1236
    %v1357 = vadd.f32 %v1125, %v1287
    %v1358 = vadd.f32 %v1126, %v1289
    %v1359 = vadd.f32 %v1127, %v1339
    %v1360 = vadd.f32 %v1128, %v1240
    %v1361 = vadd.f32 %v1129, %v1242
    %v1362 = vadd.f32 %v1130, %v1293
    %v1363 = vadd.f32 %v1131, %v1295
    %v1364 = vadd.f32 %v1132, %v1344
    %v1365 = vadd.f32 %v1133, %v1244
    %v1366 = vadd.f32 %v1134, %v1246
    %v1367 = vadd.f32 %v1135, %v1297
    %v1368 = vadd.f32 %v1136, %v1299
    %v1369 = vadd.f32 %v1137, %v1347
    %1370 = vrot.lane.b32.xlu0 %v22, 97
    %v1371 = vpop.permute.xlu0 %1370
    %1372 = vrot.lane.b32.xlu0 %v27, 97
    %v1373 = vpop.permute.xlu0 %1372
    %1374 = vrot.lane.b32.xlu0 %v23, 97
    %v1375 = vpop.permute.xlu0 %1374
    %1376 = vrot.lane.b32.xlu0 %v28, 97
    %v1377 = vpop.permute.xlu0 %1376
    %1378 = vrot.lane.b32.xlu0 %v24, 97
    %v1379 = vpop.permute.xlu0 %1378
    %vm1380 = vcmp.lt.s32.totalorder %v42, 97
    %v1381 = vsel %vm1380, %v1377, %v1379
    %v1382 = vsel %vm1380, %v1375, %v1377
    %v1383 = vsel %vm1380, %v1373, %v1375
    %v1384 = vsel %vm1380, %v1371, %v1373
    %v1385 = vsel %vm1380, %v1379, %v1371
    %s1386 = scalar_lea.vmem %s1, 96
    %v1387 = vld [vmem:[%s1386] sm:$0xf]
    %v1388 = vld [vmem:[%s1386 + $0x4] sm:$0xf]
    %v1389 = vld [vmem:[%s1386 + $0x8] sm:$0xf]
    %v1390 = vld [vmem:[%s1386 + $0xc] sm:$0xf]
    %v1391 = vpack.c.bf16 %v1384, %v1384
    %v1392 = vpack.c.bf16 %v1383, %v1383
    %v1393 = vpack.c.bf16 %v1382, %v1382
    %v1394 = vpack.c.bf16 %v1381, %v1381
    %v1395 = vpack.c.bf16 %v1385, %v1385
    %v1400 = vunpack.c.l.b16 %v1387
    %v1401 = vunpack.c.l.b16 %v1388
    %v1402 = vunpack.c.l.b16 %v1389
    %v1403 = vunpack.c.l.b16 %v1390
    %v1404 = vpack.c.b16 %v1401, %v1400
    %v1405 = vpack.c.b16 %v1403, %v1402
    %v1407 = vsel %vm94, %v1404, 0
    %v1410 = vsel %vm94, %v1405, 0
    %v1413 = vsel %vm101, %v1391, 0
    %v1416 = vsel %vm101, %v1392, 0
    %v1419 = vsel %vm101, %v1393, 0
    %v1422 = vsel %vm101, %v1394, 0
    %v1425 = vsel %vm101, %v1395, 0
    %1427 = vmatprep.subr.bf16.mxu0 0
    %1428 = vmatpush1.bf16.msra.mxu0 0
    %1429 = vmatprep.subr.bf16.mxu0 0
    %1430 = vmatpush1.bf16.msra.mxu0 0
    %1431 = vmatprep.subr.bf16.mxu0 0
    %1432 = vmatpush1.bf16.msra.mxu0 0
    %1433 = vmatprep.subr.bf16.mxu0 0
    %1434 = vmatpush1.bf16.msra.mxu0 0
    %1435 = vmatprep.subr.bf16.mxu0 0
    %1436 = vmatpush1.bf16.msra.mxu0 0
    %1437 = vmatprep.subr.bf16.mxu0 0
    %1438 = vmatpush1.bf16.msra.mxu0 0
    %1439 = vmatprep.subr.bf16.mxu0 0
    %1440 = vmatpush1.bf16.msra.mxu0 0
    %1441 = vmatprep.subr.bf16.mxu0 %v1416
    %1442 = vmatpush1.bf16.msra.mxu0 %v1413
    %1443 = vmatprep.subr.bf16.mxu0 0
    %1444 = vmatpush2.bf16.msra.mxu0 0
    %1445 = vmatprep.subr.bf16.mxu0 0
    %1446 = vmatpush2.bf16.msra.mxu0 0
    %1447 = vmatprep.subr.bf16.mxu0 0
    %1448 = vmatpush2.bf16.msra.mxu0 0
    %1449 = vmatprep.subr.bf16.mxu0 0
    %1450 = vmatpush2.bf16.msra.mxu0 0
    %1451 = vmatprep.subr.bf16.mxu0 0
    %1452 = vmatpush2.bf16.msra.mxu0 0
    %1453 = vmatprep.subr.bf16.mxu0 0
    %1454 = vmatpush2.bf16.msra.mxu0 0
    %1455 = vmatprep.subr.bf16.mxu0 0
    %1456 = vmatpush2.bf16.msra.mxu0 0
    %1457 = vmatprep.subr.bf16.mxu0 0
    %1458 = vmatpush2.bf16.msra.mxu0 0
    %1459 = vmatprep.mubr.bf16.mxu0 0
    %1460 = vmatmul.mubr.bf16.gmra.mxu0 %v1407
    %v1461 = vpop.f32.mrf.mxu0
    %v1462 = vadd.f32 0.0, %v1461
    %v1463 = vpop.f32.mrf.mxu0
    %v1464 = vadd.f32 0.0, %v1463
    %v1465 = vpop.f32.mrf.mxu0
    %v1466 = vadd.f32 0.0, %v1465
    %v1467 = vpop.f32.mrf.mxu0
    %v1468 = vadd.f32 0.0, %v1467
    %1469 = vmatprep.mubr.bf16.mxu0 0
    %1470 = vmatmul.mubr.bf16.gmra.mxu0 %v1410
    %v1471 = vpop.f32.mrf.mxu0
    %v1472 = vadd.f32 0.0, %v1471
    %v1473 = vpop.f32.mrf.mxu0
    %v1474 = vadd.f32 0.0, %v1473
    %v1475 = vpop.f32.mrf.mxu0
    %v1476 = vadd.f32 0.0, %v1475
    %v1477 = vpop.f32.mrf.mxu0
    %v1478 = vadd.f32 0.0, %v1477
    %1479 = vdwg.mxu0
    %1480 = vmatprep.subr.bf16.mxu0 0
    %1481 = vmatpush1.bf16.msra.mxu0 0
    %1482 = vmatprep.subr.bf16.mxu0 0
    %1483 = vmatpush1.bf16.msra.mxu0 0
    %1484 = vmatprep.subr.bf16.mxu0 0
    %1485 = vmatpush1.bf16.msra.mxu0 0
    %1486 = vmatprep.subr.bf16.mxu0 0
    %1487 = vmatpush1.bf16.msra.mxu0 0
    %1488 = vmatprep.subr.bf16.mxu0 0
    %1489 = vmatpush1.bf16.msra.mxu0 0
    %1490 = vmatprep.subr.bf16.mxu0 0
    %1491 = vmatpush1.bf16.msra.mxu0 0
    %1492 = vmatprep.subr.bf16.mxu0 0
    %1493 = vmatpush1.bf16.msra.mxu0 0
    %1494 = vmatprep.subr.bf16.mxu0 %v1422
    %1495 = vmatpush1.bf16.msra.mxu0 %v1419
    %1496 = vmatprep.subr.bf16.mxu0 0
    %1497 = vmatpush2.bf16.msra.mxu0 0
    %1498 = vmatprep.subr.bf16.mxu0 0
    %1499 = vmatpush2.bf16.msra.mxu0 0
    %1500 = vmatprep.subr.bf16.mxu0 0
    %1501 = vmatpush2.bf16.msra.mxu0 0
    %1502 = vmatprep.subr.bf16.mxu0 0
    %1503 = vmatpush2.bf16.msra.mxu0 0
    %1504 = vmatprep.subr.bf16.mxu0 0
    %1505 = vmatpush2.bf16.msra.mxu0 0
    %1506 = vmatprep.subr.bf16.mxu0 0
    %1507 = vmatpush2.bf16.msra.mxu0 0
    %1508 = vmatprep.subr.bf16.mxu0 0
    %1509 = vmatpush2.bf16.msra.mxu0 0
    %1510 = vmatprep.subr.bf16.mxu0 0
    %1511 = vmatpush2.bf16.msra.mxu0 0
    %1512 = vmatprep.mubr.bf16.mxu0 0
    %1513 = vmatmul.mubr.bf16.gmra.mxu0 %v1407
    %v1514 = vpop.f32.mrf.mxu0
    %v1515 = vadd.f32 0.0, %v1514
    %v1516 = vpop.f32.mrf.mxu0
    %v1517 = vadd.f32 0.0, %v1516
    %v1518 = vpop.f32.mrf.mxu0
    %v1519 = vadd.f32 0.0, %v1518
    %v1520 = vpop.f32.mrf.mxu0
    %v1521 = vadd.f32 0.0, %v1520
    %1522 = vmatprep.mubr.bf16.mxu0 0
    %1523 = vmatmul.mubr.bf16.gmra.mxu0 %v1410
    %v1524 = vpop.f32.mrf.mxu0
    %v1525 = vadd.f32 0.0, %v1524
    %v1526 = vpop.f32.mrf.mxu0
    %v1527 = vadd.f32 0.0, %v1526
    %v1528 = vpop.f32.mrf.mxu0
    %v1529 = vadd.f32 0.0, %v1528
    %v1530 = vpop.f32.mrf.mxu0
    %v1531 = vadd.f32 0.0, %v1530
    %1532 = vdwg.mxu0
    %1533 = vmatprep.subr.bf16.mxu0 0
    %1534 = vmatpush1.bf16.msra.mxu0 0
    %1535 = vmatprep.subr.bf16.mxu0 0
    %1536 = vmatpush1.bf16.msra.mxu0 0
    %1537 = vmatprep.subr.bf16.mxu0 0
    %1538 = vmatpush1.bf16.msra.mxu0 0
    %1539 = vmatprep.subr.bf16.mxu0 0
    %1540 = vmatpush1.bf16.msra.mxu0 0
    %1541 = vmatprep.subr.bf16.mxu0 0
    %1542 = vmatpush1.bf16.msra.mxu0 0
    %1543 = vmatprep.subr.bf16.mxu0 0
    %1544 = vmatpush1.bf16.msra.mxu0 0
    %1545 = vmatprep.subr.bf16.mxu0 0
    %1546 = vmatpush1.bf16.msra.mxu0 0
    %1547 = vmatprep.subr.bf16.mxu0 0
    %1548 = vmatpush1.bf16.msra.mxu0 %v1425
    %1549 = vmatprep.subr.bf16.mxu0 0
    %1550 = vmatpush2.bf16.msra.mxu0 0
    %1551 = vmatprep.subr.bf16.mxu0 0
    %1552 = vmatpush2.bf16.msra.mxu0 0
    %1553 = vmatprep.subr.bf16.mxu0 0
    %1554 = vmatpush2.bf16.msra.mxu0 0
    %1555 = vmatprep.subr.bf16.mxu0 0
    %1556 = vmatpush2.bf16.msra.mxu0 0
    %1557 = vmatprep.subr.bf16.mxu0 0
    %1558 = vmatpush2.bf16.msra.mxu0 0
    %1559 = vmatprep.subr.bf16.mxu0 0
    %1560 = vmatpush2.bf16.msra.mxu0 0
    %1561 = vmatprep.subr.bf16.mxu0 0
    %1562 = vmatpush2.bf16.msra.mxu0 0
    %1563 = vmatprep.subr.bf16.mxu0 0
    %1564 = vmatpush2.bf16.msra.mxu0 0
    %1565 = vmatprep.mubr.bf16.mxu0 0
    %1566 = vmatmul.mubr.bf16.gmra.mxu0 %v1407
    %v1567 = vpop.f32.mrf.mxu0
    %v1568 = vadd.f32 0.0, %v1567
    %v1569 = vpop.f32.mrf.mxu0
    %v1570 = vpop.f32.mrf.mxu0
    %v1571 = vadd.f32 0.0, %v1570
    %v1572 = vpop.f32.mrf.mxu0
    %1573 = vmatprep.mubr.bf16.mxu0 0
    %1574 = vmatmul.mubr.bf16.gmra.mxu0 %v1410
    %v1575 = vpop.f32.mrf.mxu0
    %v1576 = vadd.f32 0.0, %v1575
    %v1577 = vpop.f32.mrf.mxu0
    %v1578 = vpop.f32.mrf.mxu0
    %v1579 = vadd.f32 0.0, %v1578
    %v1580 = vpop.f32.mrf.mxu0
    %1581 = vdwg.mxu0
    %v1582 = vadd.f32 %v1350, %v1462
    %v1583 = vadd.f32 %v1351, %v1464
    %v1584 = vadd.f32 %v1352, %v1515
    %v1585 = vadd.f32 %v1353, %v1517
    %v1586 = vadd.f32 %v1354, %v1568
    %v1587 = vadd.f32 %v1355, %v1466
    %v1588 = vadd.f32 %v1356, %v1468
    %v1589 = vadd.f32 %v1357, %v1519
    %v1590 = vadd.f32 %v1358, %v1521
    %v1591 = vadd.f32 %v1359, %v1571
    %v1592 = vadd.f32 %v1360, %v1472
    %v1593 = vadd.f32 %v1361, %v1474
    %v1594 = vadd.f32 %v1362, %v1525
    %v1595 = vadd.f32 %v1363, %v1527
    %v1596 = vadd.f32 %v1364, %v1576
    %v1597 = vadd.f32 %v1365, %v1476
    %v1598 = vadd.f32 %v1366, %v1478
    %v1599 = vadd.f32 %v1367, %v1529
    %v1600 = vadd.f32 %v1368, %v1531
    %v1601 = vadd.f32 %v1369, %v1579
    %1602 = vrot.lane.b32.xlu0 %v22, 96
    %v1603 = vpop.permute.xlu0 %1602
    %1604 = vrot.lane.b32.xlu0 %v27, 96
    %v1605 = vpop.permute.xlu0 %1604
    %1606 = vrot.lane.b32.xlu0 %v23, 96
    %v1607 = vpop.permute.xlu0 %1606
    %1608 = vrot.lane.b32.xlu0 %v28, 96
    %v1609 = vpop.permute.xlu0 %1608
    %1610 = vrot.lane.b32.xlu0 %v24, 96
    %v1611 = vpop.permute.xlu0 %1610
    %vm1612 = vcmp.lt.s32.totalorder %v42, 96
    %v1613 = vsel %vm1612, %v1609, %v1611
    %v1614 = vsel %vm1612, %v1607, %v1609
    %v1615 = vsel %vm1612, %v1605, %v1607
    %v1616 = vsel %vm1612, %v1603, %v1605
    %v1617 = vsel %vm1612, %v1611, %v1603
    %s1618 = scalar_lea.vmem %s1, 112
    %v1619 = vld [vmem:[%s1618] sm:$0xf]
    %v1620 = vld [vmem:[%s1618 + $0x4] sm:$0xf]
    %v1621 = vld [vmem:[%s1618 + $0x8] sm:$0xf]
    %v1622 = vld [vmem:[%s1618 + $0xc] sm:$0xf]
    %v1623 = vpack.c.bf16 %v1616, %v1616
    %v1624 = vpack.c.bf16 %v1615, %v1615
    %v1625 = vpack.c.bf16 %v1614, %v1614
    %v1626 = vpack.c.bf16 %v1613, %v1613
    %v1627 = vpack.c.bf16 %v1617, %v1617
    %v1632 = vunpack.c.l.b16 %v1619
    %v1633 = vunpack.c.l.b16 %v1620
    %v1634 = vunpack.c.l.b16 %v1621
    %v1635 = vunpack.c.l.b16 %v1622
    %v1636 = vpack.c.b16 %v1633, %v1632
    %v1637 = vpack.c.b16 %v1635, %v1634
    %v1639 = vsel %vm94, %v1636, 0
    %v1642 = vsel %vm94, %v1637, 0
    %v1645 = vsel %vm101, %v1623, 0
    %v1648 = vsel %vm101, %v1624, 0
    %v1651 = vsel %vm101, %v1625, 0
    %v1654 = vsel %vm101, %v1626, 0
    %v1657 = vsel %vm101, %v1627, 0
    %1659 = vmatprep.subr.bf16.mxu0 0
    %1660 = vmatpush1.bf16.msra.mxu0 0
    %1661 = vmatprep.subr.bf16.mxu0 0
    %1662 = vmatpush1.bf16.msra.mxu0 0
    %1663 = vmatprep.subr.bf16.mxu0 0
    %1664 = vmatpush1.bf16.msra.mxu0 0
    %1665 = vmatprep.subr.bf16.mxu0 0
    %1666 = vmatpush1.bf16.msra.mxu0 0
    %1667 = vmatprep.subr.bf16.mxu0 0
    %1668 = vmatpush1.bf16.msra.mxu0 0
    %1669 = vmatprep.subr.bf16.mxu0 0
    %1670 = vmatpush1.bf16.msra.mxu0 0
    %1671 = vmatprep.subr.bf16.mxu0 0
    %1672 = vmatpush1.bf16.msra.mxu0 0
    %1673 = vmatprep.subr.bf16.mxu0 %v1648
    %1674 = vmatpush1.bf16.msra.mxu0 %v1645
    %1675 = vmatprep.subr.bf16.mxu0 0
    %1676 = vmatpush2.bf16.msra.mxu0 0
    %1677 = vmatprep.subr.bf16.mxu0 0
    %1678 = vmatpush2.bf16.msra.mxu0 0
    %1679 = vmatprep.subr.bf16.mxu0 0
    %1680 = vmatpush2.bf16.msra.mxu0 0
    %1681 = vmatprep.subr.bf16.mxu0 0
    %1682 = vmatpush2.bf16.msra.mxu0 0
    %1683 = vmatprep.subr.bf16.mxu0 0
    %1684 = vmatpush2.bf16.msra.mxu0 0
    %1685 = vmatprep.subr.bf16.mxu0 0
    %1686 = vmatpush2.bf16.msra.mxu0 0
    %1687 = vmatprep.subr.bf16.mxu0 0
    %1688 = vmatpush2.bf16.msra.mxu0 0
    %1689 = vmatprep.subr.bf16.mxu0 0
    %1690 = vmatpush2.bf16.msra.mxu0 0
    %1691 = vmatprep.mubr.bf16.mxu0 0
    %1692 = vmatmul.mubr.bf16.gmra.mxu0 %v1639
    %v1693 = vpop.f32.mrf.mxu0
    %v1694 = vadd.f32 0.0, %v1693
    %v1695 = vpop.f32.mrf.mxu0
    %v1696 = vadd.f32 0.0, %v1695
    %v1697 = vpop.f32.mrf.mxu0
    %v1698 = vadd.f32 0.0, %v1697
    %v1699 = vpop.f32.mrf.mxu0
    %v1700 = vadd.f32 0.0, %v1699
    %1701 = vmatprep.mubr.bf16.mxu0 0
    %1702 = vmatmul.mubr.bf16.gmra.mxu0 %v1642
    %v1703 = vpop.f32.mrf.mxu0
    %v1704 = vadd.f32 0.0, %v1703
    %v1705 = vpop.f32.mrf.mxu0
    %v1706 = vadd.f32 0.0, %v1705
    %v1707 = vpop.f32.mrf.mxu0
    %v1708 = vadd.f32 0.0, %v1707
    %v1709 = vpop.f32.mrf.mxu0
    %v1710 = vadd.f32 0.0, %v1709
    %1711 = vdwg.mxu0
    %1712 = vmatprep.subr.bf16.mxu0 0
    %1713 = vmatpush1.bf16.msra.mxu0 0
    %1714 = vmatprep.subr.bf16.mxu0 0
    %1715 = vmatpush1.bf16.msra.mxu0 0
    %1716 = vmatprep.subr.bf16.mxu0 0
    %1717 = vmatpush1.bf16.msra.mxu0 0
    %1718 = vmatprep.subr.bf16.mxu0 0
    %1719 = vmatpush1.bf16.msra.mxu0 0
    %1720 = vmatprep.subr.bf16.mxu0 0
    %1721 = vmatpush1.bf16.msra.mxu0 0
    %1722 = vmatprep.subr.bf16.mxu0 0
    %1723 = vmatpush1.bf16.msra.mxu0 0
    %1724 = vmatprep.subr.bf16.mxu0 0
    %1725 = vmatpush1.bf16.msra.mxu0 0
    %1726 = vmatprep.subr.bf16.mxu0 %v1654
    %1727 = vmatpush1.bf16.msra.mxu0 %v1651
    %1728 = vmatprep.subr.bf16.mxu0 0
    %1729 = vmatpush2.bf16.msra.mxu0 0
    %1730 = vmatprep.subr.bf16.mxu0 0
    %1731 = vmatpush2.bf16.msra.mxu0 0
    %1732 = vmatprep.subr.bf16.mxu0 0
    %1733 = vmatpush2.bf16.msra.mxu0 0
    %1734 = vmatprep.subr.bf16.mxu0 0
    %1735 = vmatpush2.bf16.msra.mxu0 0
    %1736 = vmatprep.subr.bf16.mxu0 0
    %1737 = vmatpush2.bf16.msra.mxu0 0
    %1738 = vmatprep.subr.bf16.mxu0 0
    %1739 = vmatpush2.bf16.msra.mxu0 0
    %1740 = vmatprep.subr.bf16.mxu0 0
    %1741 = vmatpush2.bf16.msra.mxu0 0
    %1742 = vmatprep.subr.bf16.mxu0 0
    %1743 = vmatpush2.bf16.msra.mxu0 0
    %1744 = vmatprep.mubr.bf16.mxu0 0
    %1745 = vmatmul.mubr.bf16.gmra.mxu0 %v1639
    %v1746 = vpop.f32.mrf.mxu0
    %v1747 = vadd.f32 0.0, %v1746
    %v1748 = vpop.f32.mrf.mxu0
    %v1749 = vadd.f32 0.0, %v1748
    %v1750 = vpop.f32.mrf.mxu0
    %v1751 = vadd.f32 0.0, %v1750
    %v1752 = vpop.f32.mrf.mxu0
    %v1753 = vadd.f32 0.0, %v1752
    %1754 = vmatprep.mubr.bf16.mxu0 0
    %1755 = vmatmul.mubr.bf16.gmra.mxu0 %v1642
    %v1756 = vpop.f32.mrf.mxu0
    %v1757 = vadd.f32 0.0, %v1756
    %v1758 = vpop.f32.mrf.mxu0
    %v1759 = vadd.f32 0.0, %v1758
    %v1760 = vpop.f32.mrf.mxu0
    %v1761 = vadd.f32 0.0, %v1760
    %v1762 = vpop.f32.mrf.mxu0
    %v1763 = vadd.f32 0.0, %v1762
    %1764 = vdwg.mxu0
    %1765 = vmatprep.subr.bf16.mxu0 0
    %1766 = vmatpush1.bf16.msra.mxu0 0
    %1767 = vmatprep.subr.bf16.mxu0 0
    %1768 = vmatpush1.bf16.msra.mxu0 0
    %1769 = vmatprep.subr.bf16.mxu0 0
    %1770 = vmatpush1.bf16.msra.mxu0 0
    %1771 = vmatprep.subr.bf16.mxu0 0
    %1772 = vmatpush1.bf16.msra.mxu0 0
    %1773 = vmatprep.subr.bf16.mxu0 0
    %1774 = vmatpush1.bf16.msra.mxu0 0
    %1775 = vmatprep.subr.bf16.mxu0 0
    %1776 = vmatpush1.bf16.msra.mxu0 0
    %1777 = vmatprep.subr.bf16.mxu0 0
    %1778 = vmatpush1.bf16.msra.mxu0 0
    %1779 = vmatprep.subr.bf16.mxu0 0
    %1780 = vmatpush1.bf16.msra.mxu0 %v1657
    %1781 = vmatprep.subr.bf16.mxu0 0
    %1782 = vmatpush2.bf16.msra.mxu0 0
    %1783 = vmatprep.subr.bf16.mxu0 0
    %1784 = vmatpush2.bf16.msra.mxu0 0
    %1785 = vmatprep.subr.bf16.mxu0 0
    %1786 = vmatpush2.bf16.msra.mxu0 0
    %1787 = vmatprep.subr.bf16.mxu0 0
    %1788 = vmatpush2.bf16.msra.mxu0 0
    %1789 = vmatprep.subr.bf16.mxu0 0
    %1790 = vmatpush2.bf16.msra.mxu0 0
    %1791 = vmatprep.subr.bf16.mxu0 0
    %1792 = vmatpush2.bf16.msra.mxu0 0
    %1793 = vmatprep.subr.bf16.mxu0 0
    %1794 = vmatpush2.bf16.msra.mxu0 0
    %1795 = vmatprep.subr.bf16.mxu0 0
    %1796 = vmatpush2.bf16.msra.mxu0 0
    %1797 = vmatprep.mubr.bf16.mxu0 0
    %1798 = vmatmul.mubr.bf16.gmra.mxu0 %v1639
    %v1799 = vpop.f32.mrf.mxu0
    %v1800 = vadd.f32 0.0, %v1799
    %v1801 = vpop.f32.mrf.mxu0
    %v1802 = vpop.f32.mrf.mxu0
    %v1803 = vadd.f32 0.0, %v1802
    %v1804 = vpop.f32.mrf.mxu0
    %1805 = vmatprep.mubr.bf16.mxu0 0
    %1806 = vmatmul.mubr.bf16.gmra.mxu0 %v1642
    %v1807 = vpop.f32.mrf.mxu0
    %v1808 = vadd.f32 0.0, %v1807
    %v1809 = vpop.f32.mrf.mxu0
    %v1810 = vpop.f32.mrf.mxu0
    %v1811 = vadd.f32 0.0, %v1810
    %v1812 = vpop.f32.mrf.mxu0
    %1813 = vdwg.mxu0
    %v1814 = vadd.f32 %v1582, %v1694
    %v1815 = vadd.f32 %v1583, %v1696
    %v1816 = vadd.f32 %v1584, %v1747
    %v1817 = vadd.f32 %v1585, %v1749
    %v1818 = vadd.f32 %v1586, %v1800
    %v1819 = vadd.f32 %v1587, %v1698
    %v1820 = vadd.f32 %v1588, %v1700
    %v1821 = vadd.f32 %v1589, %v1751
    %v1822 = vadd.f32 %v1590, %v1753
    %v1823 = vadd.f32 %v1591, %v1803
    %v1824 = vadd.f32 %v1592, %v1704
    %v1825 = vadd.f32 %v1593, %v1706
    %v1826 = vadd.f32 %v1594, %v1757
    %v1827 = vadd.f32 %v1595, %v1759
    %v1828 = vadd.f32 %v1596, %v1808
    %v1829 = vadd.f32 %v1597, %v1708
    %v1830 = vadd.f32 %v1598, %v1710
    %v1831 = vadd.f32 %v1599, %v1761
    %v1832 = vadd.f32 %v1600, %v1763
    %v1833 = vadd.f32 %v1601, %v1811
    %1834 = vrot.lane.b32.xlu0 %v22, 95
    %v1835 = vpop.permute.xlu0 %1834
    %1836 = vrot.lane.b32.xlu0 %v27, 95
    %v1837 = vpop.permute.xlu0 %1836
    %1838 = vrot.lane.b32.xlu0 %v23, 95
    %v1839 = vpop.permute.xlu0 %1838
    %1840 = vrot.lane.b32.xlu0 %v28, 95
    %v1841 = vpop.permute.xlu0 %1840
    %1842 = vrot.lane.b32.xlu0 %v24, 95
    %v1843 = vpop.permute.xlu0 %1842
    %vm1844 = vcmp.lt.s32.totalorder %v42, 95
    %v1845 = vsel %vm1844, %v1841, %v1843
    %v1846 = vsel %vm1844, %v1839, %v1841
    %v1847 = vsel %vm1844, %v1837, %v1839
    %v1848 = vsel %vm1844, %v1835, %v1837
    %v1849 = vsel %vm1844, %v1843, %v1835
    %s1850 = scalar_lea.vmem %s1, 128
    %v1851 = vld [vmem:[%s1850] sm:$0xf]
    %v1852 = vld [vmem:[%s1850 + $0x4] sm:$0xf]
    %v1853 = vld [vmem:[%s1850 + $0x8] sm:$0xf]
    %v1854 = vld [vmem:[%s1850 + $0xc] sm:$0xf]
    %v1855 = vpack.c.bf16 %v1848, %v1848
    %v1856 = vpack.c.bf16 %v1847, %v1847
    %v1857 = vpack.c.bf16 %v1846, %v1846
    %v1858 = vpack.c.bf16 %v1845, %v1845
    %v1859 = vpack.c.bf16 %v1849, %v1849
    %v1864 = vunpack.c.l.b16 %v1851
    %v1865 = vunpack.c.l.b16 %v1852
    %v1866 = vunpack.c.l.b16 %v1853
    %v1867 = vunpack.c.l.b16 %v1854
    %v1868 = vpack.c.b16 %v1865, %v1864
    %v1869 = vpack.c.b16 %v1867, %v1866
    %v1871 = vsel %vm94, %v1868, 0
    %v1874 = vsel %vm94, %v1869, 0
    %v1877 = vsel %vm101, %v1855, 0
    %v1880 = vsel %vm101, %v1856, 0
    %v1883 = vsel %vm101, %v1857, 0
    %v1886 = vsel %vm101, %v1858, 0
    %v1889 = vsel %vm101, %v1859, 0
    %1891 = vmatprep.subr.bf16.mxu0 0
    %1892 = vmatpush1.bf16.msra.mxu0 0
    %1893 = vmatprep.subr.bf16.mxu0 0
    %1894 = vmatpush1.bf16.msra.mxu0 0
    %1895 = vmatprep.subr.bf16.mxu0 0
    %1896 = vmatpush1.bf16.msra.mxu0 0
    %1897 = vmatprep.subr.bf16.mxu0 0
    %1898 = vmatpush1.bf16.msra.mxu0 0
    %1899 = vmatprep.subr.bf16.mxu0 0
    %1900 = vmatpush1.bf16.msra.mxu0 0
    %1901 = vmatprep.subr.bf16.mxu0 0
    %1902 = vmatpush1.bf16.msra.mxu0 0
    %1903 = vmatprep.subr.bf16.mxu0 0
    %1904 = vmatpush1.bf16.msra.mxu0 0
    %1905 = vmatprep.subr.bf16.mxu0 %v1880
    %1906 = vmatpush1.bf16.msra.mxu0 %v1877
    %1907 = vmatprep.subr.bf16.mxu0 0
    %1908 = vmatpush2.bf16.msra.mxu0 0
    %1909 = vmatprep.subr.bf16.mxu0 0
    %1910 = vmatpush2.bf16.msra.mxu0 0
    %1911 = vmatprep.subr.bf16.mxu0 0
    %1912 = vmatpush2.bf16.msra.mxu0 0
    %1913 = vmatprep.subr.bf16.mxu0 0
    %1914 = vmatpush2.bf16.msra.mxu0 0
    %1915 = vmatprep.subr.bf16.mxu0 0
    %1916 = vmatpush2.bf16.msra.mxu0 0
    %1917 = vmatprep.subr.bf16.mxu0 0
    %1918 = vmatpush2.bf16.msra.mxu0 0
    %1919 = vmatprep.subr.bf16.mxu0 0
    %1920 = vmatpush2.bf16.msra.mxu0 0
    %1921 = vmatprep.subr.bf16.mxu0 0
    %1922 = vmatpush2.bf16.msra.mxu0 0
    %1923 = vmatprep.mubr.bf16.mxu0 0
    %1924 = vmatmul.mubr.bf16.gmra.mxu0 %v1871
    %v1925 = vpop.f32.mrf.mxu0
    %v1926 = vadd.f32 0.0, %v1925
    %v1927 = vpop.f32.mrf.mxu0
    %v1928 = vadd.f32 0.0, %v1927
    %v1929 = vpop.f32.mrf.mxu0
    %v1930 = vadd.f32 0.0, %v1929
    %v1931 = vpop.f32.mrf.mxu0
    %v1932 = vadd.f32 0.0, %v1931
    %1933 = vmatprep.mubr.bf16.mxu0 0
    %1934 = vmatmul.mubr.bf16.gmra.mxu0 %v1874
    %v1935 = vpop.f32.mrf.mxu0
    %v1936 = vadd.f32 0.0, %v1935
    %v1937 = vpop.f32.mrf.mxu0
    %v1938 = vadd.f32 0.0, %v1937
    %v1939 = vpop.f32.mrf.mxu0
    %v1940 = vadd.f32 0.0, %v1939
    %v1941 = vpop.f32.mrf.mxu0
    %v1942 = vadd.f32 0.0, %v1941
    %1943 = vdwg.mxu0
    %1944 = vmatprep.subr.bf16.mxu0 0
    %1945 = vmatpush1.bf16.msra.mxu0 0
    %1946 = vmatprep.subr.bf16.mxu0 0
    %1947 = vmatpush1.bf16.msra.mxu0 0
    %1948 = vmatprep.subr.bf16.mxu0 0
    %1949 = vmatpush1.bf16.msra.mxu0 0
    %1950 = vmatprep.subr.bf16.mxu0 0
    %1951 = vmatpush1.bf16.msra.mxu0 0
    %1952 = vmatprep.subr.bf16.mxu0 0
    %1953 = vmatpush1.bf16.msra.mxu0 0
    %1954 = vmatprep.subr.bf16.mxu0 0
    %1955 = vmatpush1.bf16.msra.mxu0 0
    %1956 = vmatprep.subr.bf16.mxu0 0
    %1957 = vmatpush1.bf16.msra.mxu0 0
    %1958 = vmatprep.subr.bf16.mxu0 %v1886
    %1959 = vmatpush1.bf16.msra.mxu0 %v1883
    %1960 = vmatprep.subr.bf16.mxu0 0
    %1961 = vmatpush2.bf16.msra.mxu0 0
    %1962 = vmatprep.subr.bf16.mxu0 0
    %1963 = vmatpush2.bf16.msra.mxu0 0
    %1964 = vmatprep.subr.bf16.mxu0 0
    %1965 = vmatpush2.bf16.msra.mxu0 0
    %1966 = vmatprep.subr.bf16.mxu0 0
    %1967 = vmatpush2.bf16.msra.mxu0 0
    %1968 = vmatprep.subr.bf16.mxu0 0
    %1969 = vmatpush2.bf16.msra.mxu0 0
    %1970 = vmatprep.subr.bf16.mxu0 0
    %1971 = vmatpush2.bf16.msra.mxu0 0
    %1972 = vmatprep.subr.bf16.mxu0 0
    %1973 = vmatpush2.bf16.msra.mxu0 0
    %1974 = vmatprep.subr.bf16.mxu0 0
    %1975 = vmatpush2.bf16.msra.mxu0 0
    %1976 = vmatprep.mubr.bf16.mxu0 0
    %1977 = vmatmul.mubr.bf16.gmra.mxu0 %v1871
    %v1978 = vpop.f32.mrf.mxu0
    %v1979 = vadd.f32 0.0, %v1978
    %v1980 = vpop.f32.mrf.mxu0
    %v1981 = vadd.f32 0.0, %v1980
    %v1982 = vpop.f32.mrf.mxu0
    %v1983 = vadd.f32 0.0, %v1982
    %v1984 = vpop.f32.mrf.mxu0
    %v1985 = vadd.f32 0.0, %v1984
    %1986 = vmatprep.mubr.bf16.mxu0 0
    %1987 = vmatmul.mubr.bf16.gmra.mxu0 %v1874
    %v1988 = vpop.f32.mrf.mxu0
    %v1989 = vadd.f32 0.0, %v1988
    %v1990 = vpop.f32.mrf.mxu0
    %v1991 = vadd.f32 0.0, %v1990
    %v1992 = vpop.f32.mrf.mxu0
    %v1993 = vadd.f32 0.0, %v1992
    %v1994 = vpop.f32.mrf.mxu0
    %v1995 = vadd.f32 0.0, %v1994
    %1996 = vdwg.mxu0
    %1997 = vmatprep.subr.bf16.mxu0 0
    %1998 = vmatpush1.bf16.msra.mxu0 0
    %1999 = vmatprep.subr.bf16.mxu0 0
    %2000 = vmatpush1.bf16.msra.mxu0 0
    %2001 = vmatprep.subr.bf16.mxu0 0
    %2002 = vmatpush1.bf16.msra.mxu0 0
    %2003 = vmatprep.subr.bf16.mxu0 0
    %2004 = vmatpush1.bf16.msra.mxu0 0
    %2005 = vmatprep.subr.bf16.mxu0 0
    %2006 = vmatpush1.bf16.msra.mxu0 0
    %2007 = vmatprep.subr.bf16.mxu0 0
    %2008 = vmatpush1.bf16.msra.mxu0 0
    %2009 = vmatprep.subr.bf16.mxu0 0
    %2010 = vmatpush1.bf16.msra.mxu0 0
    %2011 = vmatprep.subr.bf16.mxu0 0
    %2012 = vmatpush1.bf16.msra.mxu0 %v1889
    %2013 = vmatprep.subr.bf16.mxu0 0
    %2014 = vmatpush2.bf16.msra.mxu0 0
    %2015 = vmatprep.subr.bf16.mxu0 0
    %2016 = vmatpush2.bf16.msra.mxu0 0
    %2017 = vmatprep.subr.bf16.mxu0 0
    %2018 = vmatpush2.bf16.msra.mxu0 0
    %2019 = vmatprep.subr.bf16.mxu0 0
    %2020 = vmatpush2.bf16.msra.mxu0 0
    %2021 = vmatprep.subr.bf16.mxu0 0
    %2022 = vmatpush2.bf16.msra.mxu0 0
    %2023 = vmatprep.subr.bf16.mxu0 0
    %2024 = vmatpush2.bf16.msra.mxu0 0
    %2025 = vmatprep.subr.bf16.mxu0 0
    %2026 = vmatpush2.bf16.msra.mxu0 0
    %2027 = vmatprep.subr.bf16.mxu0 0
    %2028 = vmatpush2.bf16.msra.mxu0 0
    %2029 = vmatprep.mubr.bf16.mxu0 0
    %2030 = vmatmul.mubr.bf16.gmra.mxu0 %v1871
    %v2031 = vpop.f32.mrf.mxu0
    %v2032 = vadd.f32 0.0, %v2031
    %v2033 = vpop.f32.mrf.mxu0
    %v2034 = vpop.f32.mrf.mxu0
    %v2035 = vadd.f32 0.0, %v2034
    %v2036 = vpop.f32.mrf.mxu0
    %2037 = vmatprep.mubr.bf16.mxu0 0
    %2038 = vmatmul.mubr.bf16.gmra.mxu0 %v1874
    %v2039 = vpop.f32.mrf.mxu0
    %v2040 = vadd.f32 0.0, %v2039
    %v2041 = vpop.f32.mrf.mxu0
    %v2042 = vpop.f32.mrf.mxu0
    %v2043 = vadd.f32 0.0, %v2042
    %v2044 = vpop.f32.mrf.mxu0
    %2045 = vdwg.mxu0
    %v2046 = vadd.f32 %v1814, %v1926
    %v2047 = vadd.f32 %v1815, %v1928
    %v2048 = vadd.f32 %v1816, %v1979
    %v2049 = vadd.f32 %v1817, %v1981
    %v2050 = vadd.f32 %v1818, %v2032
    %v2051 = vadd.f32 %v1819, %v1930
    %v2052 = vadd.f32 %v1820, %v1932
    %v2053 = vadd.f32 %v1821, %v1983
    %v2054 = vadd.f32 %v1822, %v1985
    %v2055 = vadd.f32 %v1823, %v2035
    %v2056 = vadd.f32 %v1824, %v1936
    %v2057 = vadd.f32 %v1825, %v1938
    %v2058 = vadd.f32 %v1826, %v1989
    %v2059 = vadd.f32 %v1827, %v1991
    %v2060 = vadd.f32 %v1828, %v2040
    %v2061 = vadd.f32 %v1829, %v1940
    %v2062 = vadd.f32 %v1830, %v1942
    %v2063 = vadd.f32 %v1831, %v1993
    %v2064 = vadd.f32 %v1832, %v1995
    %v2065 = vadd.f32 %v1833, %v2043
    %v2066 = vld [vmem:[%s2] sm:$0xff]
    %v2067 = vld [vmem:[%s2 + $0x8] sm:$0xff]
    %v2068 = vld [vmem:[%s2 + $0x10] sm:$0xff]
    %v2069 = vld [vmem:[%s2 + $0x18] sm:$0xff]
    %2071 = vset.pattern.permute.xlu0 0
    %2072 = vperm.xlu0 %2071, %v2066
    %v2073 = vpop.permute.xlu0 %2072
    %2076 = vset.pattern.permute.xlu0 0
    %2077 = vperm.xlu0 %2076, %v2067
    %v2078 = vpop.permute.xlu0 %2077
    %2081 = vset.pattern.permute.xlu0 0
    %2082 = vperm.xlu0 %2081, %v2068
    %v2083 = vpop.permute.xlu0 %2082
    %2086 = vset.pattern.permute.xlu0 0
    %2087 = vperm.xlu0 %2086, %v2069
    %v2088 = vpop.permute.xlu0 %2087
    %v2090 = vadd.f32 %v2046, %v2073
    %v2091 = vadd.f32 %v2047, %v2073
    %v2092 = vadd.f32 %v2048, %v2073
    %v2093 = vadd.f32 %v2049, %v2073
    %v2094 = vadd.f32 %v2050, %v2073
    %v2095 = vadd.f32 %v2051, %v2078
    %v2096 = vadd.f32 %v2052, %v2078
    %v2097 = vadd.f32 %v2053, %v2078
    %v2098 = vadd.f32 %v2054, %v2078
    %v2099 = vadd.f32 %v2055, %v2078
    %v2100 = vadd.f32 %v2056, %v2083
    %v2101 = vadd.f32 %v2057, %v2083
    %v2102 = vadd.f32 %v2058, %v2083
    %v2103 = vadd.f32 %v2059, %v2083
    %v2104 = vadd.f32 %v2060, %v2083
    %v2105 = vadd.f32 %v2061, %v2088
    %v2106 = vadd.f32 %v2062, %v2088
    %v2107 = vadd.f32 %v2063, %v2088
    %v2108 = vadd.f32 %v2064, %v2088
    %v2109 = vadd.f32 %v2065, %v2088
    %v2110 = vmax.f32 %v2090, 0.0
    %v2111 = vmax.f32 %v2091, 0.0
    %v2112 = vmax.f32 %v2092, 0.0
    %v2113 = vmax.f32 %v2093, 0.0
    %v2114 = vmax.f32 %v2094, 0.0
    %v2115 = vmax.f32 %v2095, 0.0
    %v2116 = vmax.f32 %v2096, 0.0
    %v2117 = vmax.f32 %v2097, 0.0
    %v2118 = vmax.f32 %v2098, 0.0
    %v2119 = vmax.f32 %v2099, 0.0
    %v2120 = vmax.f32 %v2100, 0.0
    %v2121 = vmax.f32 %v2101, 0.0
    %v2122 = vmax.f32 %v2102, 0.0
    %v2123 = vmax.f32 %v2103, 0.0
    %v2124 = vmax.f32 %v2104, 0.0
    %v2125 = vmax.f32 %v2105, 0.0
    %v2126 = vmax.f32 %v2106, 0.0
    %v2127 = vmax.f32 %v2107, 0.0
    %v2128 = vmax.f32 %v2108, 0.0
    %v2129 = vmax.f32 %v2109, 0.0
    %v2130 = vld [vmem:[%s3] sm:$0xf]
    %v2131 = vld [vmem:[%s3 + $0x4] sm:$0xf]
    %v2132 = vld [vmem:[%s3 + $0x8] sm:$0xf]
    %v2133 = vpack.c.bf16 %v2115, %v2110
    %v2134 = vpack.c.bf16 %v2116, %v2111
    %v2135 = vpack.c.bf16 %v2117, %v2112
    %v2136 = vpack.c.bf16 %v2118, %v2113
    %v2137 = vpack.c.bf16 %v2119, %v2114
    %v2138 = vpack.c.bf16 %v2125, %v2120
    %v2139 = vpack.c.bf16 %v2126, %v2121
    %v2140 = vpack.c.bf16 %v2127, %v2122
    %v2141 = vpack.c.bf16 %v2128, %v2123
    %v2142 = vpack.c.bf16 %v2129, %v2124
    %v2143 = vld [vmem:[%s4] sm:$0xff]
    %v2144 = vld [vmem:[%s4 + $0x8] sm:$0xff]
    %v2145 = vld [vmem:[%s4 + $0x10] sm:$0xff]
    %2147 = vset.pattern.permute.xlu0 0
    %2148 = vperm.xlu0 %2147, %v2143
    %v2149 = vpop.permute.xlu0 %2148
    %2152 = vset.pattern.permute.xlu0 0
    %2153 = vperm.xlu0 %2152, %v2144
    %v2154 = vpop.permute.xlu0 %2153
    %2157 = vset.pattern.permute.xlu0 0
    %2158 = vperm.xlu0 %2157, %v2145
    %v2159 = vpop.permute.xlu0 %2158
    %v2164 = vunpack.c.l.b16 %v2130
    %v2165 = vunpack.c.l.b16 %v2131
    %v2166 = vunpack.c.l.b16 %v2132
    %v2167 = vpack.c.b16 %v2165, %v2164
    %v2168 = vpack.c.b16 %v2166, %v2166
    %vm2169 = vcmask 261120
    %v2171 = vsel %vm2169, %v2167, 0
    %v2174 = vsel %vm2169, %v2168, 0
    %2176 = vmatprep.subr.bf16.mxu0 0
    %2177 = vmatpush1.bf16.msra.mxu0 0
    %2178 = vmatprep.subr.bf16.mxu0 0
    %2179 = vmatpush1.bf16.msra.mxu0 0
    %2180 = vmatprep.subr.bf16.mxu0 0
    %2181 = vmatpush1.bf16.msra.mxu0 0
    %2182 = vmatprep.subr.bf16.mxu0 0
    %2183 = vmatpush1.bf16.msra.mxu0 0
    %2184 = vmatprep.subr.bf16.mxu0 0
    %2185 = vmatpush1.bf16.msra.mxu0 0
    %2186 = vmatprep.subr.bf16.mxu0 0
    %2187 = vmatpush1.bf16.msra.mxu0 0
    %2188 = vmatprep.subr.bf16.mxu0 %v2139
    %2189 = vmatpush1.bf16.msra.mxu0 %v2138
    %2190 = vmatprep.subr.bf16.mxu0 %v2134
    %2191 = vmatpush1.bf16.msra.mxu0 %v2133
    %2192 = vmatprep.subr.bf16.mxu0 0
    %2193 = vmatpush2.bf16.msra.mxu0 0
    %2194 = vmatprep.subr.bf16.mxu0 0
    %2195 = vmatpush2.bf16.msra.mxu0 0
    %2196 = vmatprep.subr.bf16.mxu0 0
    %2197 = vmatpush2.bf16.msra.mxu0 0
    %2198 = vmatprep.subr.bf16.mxu0 0
    %2199 = vmatpush2.bf16.msra.mxu0 0
    %2200 = vmatprep.subr.bf16.mxu0 0
    %2201 = vmatpush2.bf16.msra.mxu0 0
    %2202 = vmatprep.subr.bf16.mxu0 0
    %2203 = vmatpush2.bf16.msra.mxu0 0
    %2204 = vmatprep.subr.bf16.mxu0 0
    %2205 = vmatpush2.bf16.msra.mxu0 0
    %2206 = vmatprep.subr.bf16.mxu0 0
    %2207 = vmatpush2.bf16.msra.mxu0 0
    %2208 = vmatprep.mubr.bf16.mxu0 0
    %2209 = vmatmul.mubr.bf16.gmra.mxu0 %v2171
    %v2210 = vpop.f32.mrf.mxu0
    %v2211 = vadd.f32 %v2149, %v2210
    %v2212 = vpop.f32.mrf.mxu0
    %v2213 = vadd.f32 %v2149, %v2212
    %v2214 = vpop.f32.mrf.mxu0
    %v2215 = vadd.f32 %v2154, %v2214
    %v2216 = vpop.f32.mrf.mxu0
    %v2217 = vadd.f32 %v2154, %v2216
    %2218 = vmatprep.mubr.bf16.mxu0 0
    %2219 = vmatmul.mubr.bf16.gmra.mxu0 %v2174
    %v2220 = vpop.f32.mrf.mxu0
    %v2221 = vadd.f32 %v2159, %v2220
    %v2222 = vpop.f32.mrf.mxu0
    %v2223 = vadd.f32 %v2159, %v2222
    %v2224 = vpop.f32.mrf.mxu0
    %v2225 = vpop.f32.mrf.mxu0
    %2226 = vdwg.mxu0
    %2227 = vmatprep.subr.bf16.mxu0 0
    %2228 = vmatpush1.bf16.msra.mxu0 0
    %2229 = vmatprep.subr.bf16.mxu0 0
    %2230 = vmatpush1.bf16.msra.mxu0 0
    %2231 = vmatprep.subr.bf16.mxu0 0
    %2232 = vmatpush1.bf16.msra.mxu0 0
    %2233 = vmatprep.subr.bf16.mxu0 0
    %2234 = vmatpush1.bf16.msra.mxu0 0
    %2235 = vmatprep.subr.bf16.mxu0 0
    %2236 = vmatpush1.bf16.msra.mxu0 0
    %2237 = vmatprep.subr.bf16.mxu0 0
    %2238 = vmatpush1.bf16.msra.mxu0 0
    %2239 = vmatprep.subr.bf16.mxu0 %v2141
    %2240 = vmatpush1.bf16.msra.mxu0 %v2140
    %2241 = vmatprep.subr.bf16.mxu0 %v2136
    %2242 = vmatpush1.bf16.msra.mxu0 %v2135
    %2243 = vmatprep.subr.bf16.mxu0 0
    %2244 = vmatpush2.bf16.msra.mxu0 0
    %2245 = vmatprep.subr.bf16.mxu0 0
    %2246 = vmatpush2.bf16.msra.mxu0 0
    %2247 = vmatprep.subr.bf16.mxu0 0
    %2248 = vmatpush2.bf16.msra.mxu0 0
    %2249 = vmatprep.subr.bf16.mxu0 0
    %2250 = vmatpush2.bf16.msra.mxu0 0
    %2251 = vmatprep.subr.bf16.mxu0 0
    %2252 = vmatpush2.bf16.msra.mxu0 0
    %2253 = vmatprep.subr.bf16.mxu0 0
    %2254 = vmatpush2.bf16.msra.mxu0 0
    %2255 = vmatprep.subr.bf16.mxu0 0
    %2256 = vmatpush2.bf16.msra.mxu0 0
    %2257 = vmatprep.subr.bf16.mxu0 0
    %2258 = vmatpush2.bf16.msra.mxu0 0
    %2259 = vmatprep.mubr.bf16.mxu0 0
    %2260 = vmatmul.mubr.bf16.gmra.mxu0 %v2171
    %v2261 = vpop.f32.mrf.mxu0
    %v2262 = vadd.f32 %v2149, %v2261
    %v2263 = vpop.f32.mrf.mxu0
    %v2264 = vadd.f32 %v2149, %v2263
    %v2265 = vpop.f32.mrf.mxu0
    %v2266 = vadd.f32 %v2154, %v2265
    %v2267 = vpop.f32.mrf.mxu0
    %v2268 = vadd.f32 %v2154, %v2267
    %2269 = vmatprep.mubr.bf16.mxu0 0
    %2270 = vmatmul.mubr.bf16.gmra.mxu0 %v2174
    %v2271 = vpop.f32.mrf.mxu0
    %v2272 = vadd.f32 %v2159, %v2271
    %v2273 = vpop.f32.mrf.mxu0
    %v2274 = vadd.f32 %v2159, %v2273
    %v2275 = vpop.f32.mrf.mxu0
    %v2276 = vpop.f32.mrf.mxu0
    %2277 = vdwg.mxu0
    %2278 = vmatprep.subr.bf16.mxu0 0
    %2279 = vmatpush1.bf16.msra.mxu0 0
    %2280 = vmatprep.subr.bf16.mxu0 0
    %2281 = vmatpush1.bf16.msra.mxu0 0
    %2282 = vmatprep.subr.bf16.mxu0 0
    %2283 = vmatpush1.bf16.msra.mxu0 0
    %2284 = vmatprep.subr.bf16.mxu0 0
    %2285 = vmatpush1.bf16.msra.mxu0 0
    %2286 = vmatprep.subr.bf16.mxu0 0
    %2287 = vmatpush1.bf16.msra.mxu0 0
    %2288 = vmatprep.subr.bf16.mxu0 0
    %2289 = vmatpush1.bf16.msra.mxu0 0
    %2290 = vmatprep.subr.bf16.mxu0 0
    %2291 = vmatpush1.bf16.msra.mxu0 %v2142
    %2292 = vmatprep.subr.bf16.mxu0 0
    %2293 = vmatpush1.bf16.msra.mxu0 %v2137
    %2294 = vmatprep.subr.bf16.mxu0 0
    %2295 = vmatpush2.bf16.msra.mxu0 0
    %2296 = vmatprep.subr.bf16.mxu0 0
    %2297 = vmatpush2.bf16.msra.mxu0 0
    %2298 = vmatprep.subr.bf16.mxu0 0
    %2299 = vmatpush2.bf16.msra.mxu0 0
    %2300 = vmatprep.subr.bf16.mxu0 0
    %2301 = vmatpush2.bf16.msra.mxu0 0
    %2302 = vmatprep.subr.bf16.mxu0 0
    %2303 = vmatpush2.bf16.msra.mxu0 0
    %2304 = vmatprep.subr.bf16.mxu0 0
    %2305 = vmatpush2.bf16.msra.mxu0 0
    %2306 = vmatprep.subr.bf16.mxu0 0
    %2307 = vmatpush2.bf16.msra.mxu0 0
    %2308 = vmatprep.subr.bf16.mxu0 0
    %2309 = vmatpush2.bf16.msra.mxu0 0
    %2310 = vmatprep.mubr.bf16.mxu0 0
    %2311 = vmatmul.mubr.bf16.gmra.mxu0 %v2171
    %v2312 = vpop.f32.mrf.mxu0
    %v2313 = vadd.f32 %v2149, %v2312
    %v2314 = vpop.f32.mrf.mxu0
    %v2315 = vpop.f32.mrf.mxu0
    %v2316 = vadd.f32 %v2154, %v2315
    %v2317 = vpop.f32.mrf.mxu0
    %2318 = vmatprep.mubr.bf16.mxu0 0
    %2319 = vmatmul.mubr.bf16.gmra.mxu0 %v2174
    %v2320 = vpop.f32.mrf.mxu0
    %v2321 = vadd.f32 %v2159, %v2320
    %v2322 = vpop.f32.mrf.mxu0
    %v2323 = vpop.f32.mrf.mxu0
    %v2324 = vpop.f32.mrf.mxu0
    %2325 = vdwg.mxu0
    %2326 = vst [vmem:[#allocation2] sm:$0xff] %v2211
    %2327 = vst [vmem:[#allocation2 + $0x8] sm:$0xff] %v2213
    %2328 = vst [vmem:[#allocation2 + $0x10] sm:$0xff] %v2262
    %2329 = vst [vmem:[#allocation2 + $0x18] sm:$0xff] %v2264
    %2330 = vst [vmem:[#allocation2 + $0x20] sm:$0xff] %v2313
    %2331 = vst [vmem:[#allocation2 + $0x28] sm:$0xff] %v2215
    %2332 = vst [vmem:[#allocation2 + $0x30] sm:$0xff] %v2217
    %2333 = vst [vmem:[#allocation2 + $0x38] sm:$0xff] %v2266
    %2334 = vst [vmem:[#allocation2 + $0x40] sm:$0xff] %v2268
    %2335 = vst [vmem:[#allocation2 + $0x48] sm:$0xff] %v2316
    %2336 = vst [vmem:[#allocation2 + $0x50] sm:$0xff] %v2221
    %2337 = vst [vmem:[#allocation2 + $0x58] sm:$0xff] %v2223
    %2338 = vst [vmem:[#allocation2 + $0x60] sm:$0xff] %v2272
    %2339 = vst [vmem:[#allocation2 + $0x68] sm:$0xff] %v2274
    %2340 = vst [vmem:[#allocation2 + $0x70] sm:$0xff] %v2321
    %s2341 = scalar_lea.vmem %s0, 20
    %v2342 = vld [vmem:[%s2341] sm:$0xff]
    %v2343 = vld [vmem:[%s2341 + $0x8] sm:$0xff]
    %v2344 = vld [vmem:[%s2341 + $0x10] sm:$0xf]
    %v2347 = vcombine.high %v2342, %v2342
    %v2348 = vcombine.high %v2343, %v2343
    %2351 = vrot.lane.b32.xlu0 %v2342, 33
    %v2352 = vpop.permute.xlu0 %2351
    %2353 = vrot.lane.b32.xlu0 %v2347, 33
    %v2354 = vpop.permute.xlu0 %2353
    %2355 = vrot.lane.b32.xlu0 %v2343, 33
    %v2356 = vpop.permute.xlu0 %2355
    %2357 = vrot.lane.b32.xlu0 %v2348, 33
    %v2358 = vpop.permute.xlu0 %2357
    %2359 = vrot.lane.b32.xlu0 %v2344, 33
    %v2360 = vpop.permute.xlu0 %2359
    %v2361 = vsel %vm43, %v2358, %v2360
    %v2362 = vsel %vm43, %v2356, %v2358
    %v2363 = vsel %vm43, %v2354, %v2356
    %v2364 = vsel %vm43, %v2352, %v2354
    %v2365 = vsel %vm43, %v2360, %v2352
    %v2366 = vld [vmem:[%s1] sm:$0xf]
    %v2367 = vld [vmem:[%s1 + $0x4] sm:$0xf]
    %v2368 = vld [vmem:[%s1 + $0x8] sm:$0xf]
    %v2369 = vld [vmem:[%s1 + $0xc] sm:$0xf]
    %v2370 = vpack.c.bf16 %v2365, %v2365
    %v2371 = vpack.c.bf16 %v2364, %v2364
    %v2372 = vpack.c.bf16 %v2363, %v2363
    %v2373 = vpack.c.bf16 %v2362, %v2362
    %v2374 = vpack.c.bf16 %v2361, %v2361
    %2375 = vrot.lane.b32.xlu0 %v2342, 32
    %v2376 = vpop.permute.xlu0 %2375
    %2377 = vrot.lane.b32.xlu0 %v2347, 32
    %v2378 = vpop.permute.xlu0 %2377
    %2379 = vrot.lane.b32.xlu0 %v2343, 32
    %v2380 = vpop.permute.xlu0 %2379
    %2381 = vrot.lane.b32.xlu0 %v2348, 32
    %v2382 = vpop.permute.xlu0 %2381
    %2383 = vrot.lane.b32.xlu0 %v2344, 32
    %v2384 = vpop.permute.xlu0 %2383
    %v2385 = vsel %vm68, %v2382, %v2384
    %v2386 = vsel %vm68, %v2380, %v2382
    %v2387 = vsel %vm68, %v2378, %v2380
    %v2388 = vsel %vm68, %v2376, %v2378
    %v2389 = vsel %vm68, %v2384, %v2376
    %v2390 = vld [vmem:[%s74] sm:$0xf]
    %v2391 = vld [vmem:[%s74 + $0x4] sm:$0xf]
    %v2392 = vld [vmem:[%s74 + $0x8] sm:$0xf]
    %v2393 = vld [vmem:[%s74 + $0xc] sm:$0xf]
    %v2394 = vpack.c.bf16 %v2389, %v2389
    %v2395 = vpack.c.bf16 %v2388, %v2388
    %v2396 = vpack.c.bf16 %v2387, %v2387
    %v2397 = vpack.c.bf16 %v2386, %v2386
    %v2398 = vpack.c.bf16 %v2385, %v2385
    %v2403 = vunpack.c.l.b16 %v2390
    %v2404 = vunpack.c.l.b16 %v2391
    %v2405 = vunpack.c.l.b16 %v2392
    %v2406 = vunpack.c.l.b16 %v2393
    %v2407 = vpack.c.b16 %v2404, %v2403
    %v2408 = vpack.c.b16 %v2406, %v2405
    %v2410 = vsel %vm94, %v2407, 0
    %v2413 = vsel %vm94, %v2408, 0
    %v2416 = vsel %vm101, %v2394, 0
    %v2419 = vsel %vm101, %v2395, 0
    %v2422 = vsel %vm101, %v2396, 0
    %v2425 = vsel %vm101, %v2397, 0
    %v2428 = vsel %vm101, %v2398, 0
    %2430 = vmatprep.subr.bf16.mxu0 0
    %2431 = vmatpush1.bf16.msra.mxu0 0
    %2432 = vmatprep.subr.bf16.mxu0 0
    %2433 = vmatpush1.bf16.msra.mxu0 0
    %2434 = vmatprep.subr.bf16.mxu0 0
    %2435 = vmatpush1.bf16.msra.mxu0 0
    %2436 = vmatprep.subr.bf16.mxu0 0
    %2437 = vmatpush1.bf16.msra.mxu0 0
    %2438 = vmatprep.subr.bf16.mxu0 0
    %2439 = vmatpush1.bf16.msra.mxu0 0
    %2440 = vmatprep.subr.bf16.mxu0 0
    %2441 = vmatpush1.bf16.msra.mxu0 0
    %2442 = vmatprep.subr.bf16.mxu0 0
    %2443 = vmatpush1.bf16.msra.mxu0 0
    %2444 = vmatprep.subr.bf16.mxu0 %v2419
    %2445 = vmatpush1.bf16.msra.mxu0 %v2416
    %2446 = vmatprep.subr.bf16.mxu0 0
    %2447 = vmatpush2.bf16.msra.mxu0 0
    %2448 = vmatprep.subr.bf16.mxu0 0
    %2449 = vmatpush2.bf16.msra.mxu0 0
    %2450 = vmatprep.subr.bf16.mxu0 0
    %2451 = vmatpush2.bf16.msra.mxu0 0
    %2452 = vmatprep.subr.bf16.mxu0 0
    %2453 = vmatpush2.bf16.msra.mxu0 0
    %2454 = vmatprep.subr.bf16.mxu0 0
    %2455 = vmatpush2.bf16.msra.mxu0 0
    %2456 = vmatprep.subr.bf16.mxu0 0
    %2457 = vmatpush2.bf16.msra.mxu0 0
    %2458 = vmatprep.subr.bf16.mxu0 0
    %2459 = vmatpush2.bf16.msra.mxu0 0
    %2460 = vmatprep.subr.bf16.mxu0 0
    %2461 = vmatpush2.bf16.msra.mxu0 0
    %2462 = vmatprep.mubr.bf16.mxu0 0
    %2463 = vmatmul.mubr.bf16.gmra.mxu0 %v2410
    %v2464 = vpop.f32.mrf.mxu0
    %v2465 = vadd.f32 0.0, %v2464
    %v2466 = vpop.f32.mrf.mxu0
    %v2467 = vadd.f32 0.0, %v2466
    %v2468 = vpop.f32.mrf.mxu0
    %v2469 = vadd.f32 0.0, %v2468
    %v2470 = vpop.f32.mrf.mxu0
    %v2471 = vadd.f32 0.0, %v2470
    %2472 = vmatprep.mubr.bf16.mxu0 0
    %2473 = vmatmul.mubr.bf16.gmra.mxu0 %v2413
    %v2474 = vpop.f32.mrf.mxu0
    %v2475 = vadd.f32 0.0, %v2474
    %v2476 = vpop.f32.mrf.mxu0
    %v2477 = vadd.f32 0.0, %v2476
    %v2478 = vpop.f32.mrf.mxu0
    %v2479 = vadd.f32 0.0, %v2478
    %v2480 = vpop.f32.mrf.mxu0
    %v2481 = vadd.f32 0.0, %v2480
    %2482 = vdwg.mxu0
    %2483 = vmatprep.subr.bf16.mxu0 0
    %2484 = vmatpush1.bf16.msra.mxu0 0
    %2485 = vmatprep.subr.bf16.mxu0 0
    %2486 = vmatpush1.bf16.msra.mxu0 0
    %2487 = vmatprep.subr.bf16.mxu0 0
    %2488 = vmatpush1.bf16.msra.mxu0 0
    %2489 = vmatprep.subr.bf16.mxu0 0
    %2490 = vmatpush1.bf16.msra.mxu0 0
    %2491 = vmatprep.subr.bf16.mxu0 0
    %2492 = vmatpush1.bf16.msra.mxu0 0
    %2493 = vmatprep.subr.bf16.mxu0 0
    %2494 = vmatpush1.bf16.msra.mxu0 0
    %2495 = vmatprep.subr.bf16.mxu0 0
    %2496 = vmatpush1.bf16.msra.mxu0 0
    %2497 = vmatprep.subr.bf16.mxu0 %v2425
    %2498 = vmatpush1.bf16.msra.mxu0 %v2422
    %2499 = vmatprep.subr.bf16.mxu0 0
    %2500 = vmatpush2.bf16.msra.mxu0 0
    %2501 = vmatprep.subr.bf16.mxu0 0
    %2502 = vmatpush2.bf16.msra.mxu0 0
    %2503 = vmatprep.subr.bf16.mxu0 0
    %2504 = vmatpush2.bf16.msra.mxu0 0
    %2505 = vmatprep.subr.bf16.mxu0 0
    %2506 = vmatpush2.bf16.msra.mxu0 0
    %2507 = vmatprep.subr.bf16.mxu0 0
    %2508 = vmatpush2.bf16.msra.mxu0 0
    %2509 = vmatprep.subr.bf16.mxu0 0
    %2510 = vmatpush2.bf16.msra.mxu0 0
    %2511 = vmatprep.subr.bf16.mxu0 0
    %2512 = vmatpush2.bf16.msra.mxu0 0
    %2513 = vmatprep.subr.bf16.mxu0 0
    %2514 = vmatpush2.bf16.msra.mxu0 0
    %2515 = vmatprep.mubr.bf16.mxu0 0
    %2516 = vmatmul.mubr.bf16.gmra.mxu0 %v2410
    %v2517 = vpop.f32.mrf.mxu0
    %v2518 = vadd.f32 0.0, %v2517
    %v2519 = vpop.f32.mrf.mxu0
    %v2520 = vadd.f32 0.0, %v2519
    %v2521 = vpop.f32.mrf.mxu0
    %v2522 = vadd.f32 0.0, %v2521
    %v2523 = vpop.f32.mrf.mxu0
    %v2524 = vadd.f32 0.0, %v2523
    %2525 = vmatprep.mubr.bf16.mxu0 0
    %2526 = vmatmul.mubr.bf16.gmra.mxu0 %v2413
    %v2527 = vpop.f32.mrf.mxu0
    %v2528 = vadd.f32 0.0, %v2527
    %v2529 = vpop.f32.mrf.mxu0
    %v2530 = vadd.f32 0.0, %v2529
    %v2531 = vpop.f32.mrf.mxu0
    %v2532 = vadd.f32 0.0, %v2531
    %v2533 = vpop.f32.mrf.mxu0
    %v2534 = vadd.f32 0.0, %v2533
    %2535 = vdwg.mxu0
    %2536 = vmatprep.subr.bf16.mxu0 0
    %2537 = vmatpush1.bf16.msra.mxu0 0
    %2538 = vmatprep.subr.bf16.mxu0 0
    %2539 = vmatpush1.bf16.msra.mxu0 0
    %2540 = vmatprep.subr.bf16.mxu0 0
    %2541 = vmatpush1.bf16.msra.mxu0 0
    %2542 = vmatprep.subr.bf16.mxu0 0
    %2543 = vmatpush1.bf16.msra.mxu0 0
    %2544 = vmatprep.subr.bf16.mxu0 0
    %2545 = vmatpush1.bf16.msra.mxu0 0
    %2546 = vmatprep.subr.bf16.mxu0 0
    %2547 = vmatpush1.bf16.msra.mxu0 0
    %2548 = vmatprep.subr.bf16.mxu0 0
    %2549 = vmatpush1.bf16.msra.mxu0 0
    %2550 = vmatprep.subr.bf16.mxu0 0
    %2551 = vmatpush1.bf16.msra.mxu0 %v2428
    %2552 = vmatprep.subr.bf16.mxu0 0
    %2553 = vmatpush2.bf16.msra.mxu0 0
    %2554 = vmatprep.subr.bf16.mxu0 0
    %2555 = vmatpush2.bf16.msra.mxu0 0
    %2556 = vmatprep.subr.bf16.mxu0 0
    %2557 = vmatpush2.bf16.msra.mxu0 0
    %2558 = vmatprep.subr.bf16.mxu0 0
    %2559 = vmatpush2.bf16.msra.mxu0 0
    %2560 = vmatprep.subr.bf16.mxu0 0
    %2561 = vmatpush2.bf16.msra.mxu0 0
    %2562 = vmatprep.subr.bf16.mxu0 0
    %2563 = vmatpush2.bf16.msra.mxu0 0
    %2564 = vmatprep.subr.bf16.mxu0 0
    %2565 = vmatpush2.bf16.msra.mxu0 0
    %2566 = vmatprep.subr.bf16.mxu0 0
    %2567 = vmatpush2.bf16.msra.mxu0 0
    %2568 = vmatprep.mubr.bf16.mxu0 0
    %2569 = vmatmul.mubr.bf16.gmra.mxu0 %v2410
    %v2570 = vpop.f32.mrf.mxu0
    %v2571 = vadd.f32 0.0, %v2570
    %v2572 = vpop.f32.mrf.mxu0
    %v2573 = vpop.f32.mrf.mxu0
    %v2574 = vadd.f32 0.0, %v2573
    %v2575 = vpop.f32.mrf.mxu0
    %2576 = vmatprep.mubr.bf16.mxu0 0
    %2577 = vmatmul.mubr.bf16.gmra.mxu0 %v2413
    %v2578 = vpop.f32.mrf.mxu0
    %v2579 = vadd.f32 0.0, %v2578
    %v2580 = vpop.f32.mrf.mxu0
    %v2581 = vpop.f32.mrf.mxu0
    %v2582 = vadd.f32 0.0, %v2581
    %v2583 = vpop.f32.mrf.mxu0
    %2584 = vdwg.mxu0
    %v2589 = vunpack.c.l.b16 %v2366
    %v2590 = vunpack.c.l.b16 %v2367
    %v2591 = vunpack.c.l.b16 %v2368
    %v2592 = vunpack.c.l.b16 %v2369
    %v2593 = vpack.c.b16 %v2590, %v2589
    %v2594 = vpack.c.b16 %v2592, %v2591
    %v2596 = vsel %vm94, %v2593, 0
    %v2599 = vsel %vm94, %v2594, 0
    %v2602 = vsel %vm101, %v2370, 0
    %v2605 = vsel %vm101, %v2371, 0
    %v2608 = vsel %vm101, %v2372, 0
    %v2611 = vsel %vm101, %v2373, 0
    %v2614 = vsel %vm101, %v2374, 0
    %2616 = vmatprep.subr.bf16.mxu0 0
    %2617 = vmatpush1.bf16.msra.mxu0 0
    %2618 = vmatprep.subr.bf16.mxu0 0
    %2619 = vmatpush1.bf16.msra.mxu0 0
    %2620 = vmatprep.subr.bf16.mxu0 0
    %2621 = vmatpush1.bf16.msra.mxu0 0
    %2622 = vmatprep.subr.bf16.mxu0 0
    %2623 = vmatpush1.bf16.msra.mxu0 0
    %2624 = vmatprep.subr.bf16.mxu0 0
    %2625 = vmatpush1.bf16.msra.mxu0 0
    %2626 = vmatprep.subr.bf16.mxu0 0
    %2627 = vmatpush1.bf16.msra.mxu0 0
    %2628 = vmatprep.subr.bf16.mxu0 0
    %2629 = vmatpush1.bf16.msra.mxu0 0
    %2630 = vmatprep.subr.bf16.mxu0 %v2605
    %2631 = vmatpush1.bf16.msra.mxu0 %v2602
    %2632 = vmatprep.subr.bf16.mxu0 0
    %2633 = vmatpush2.bf16.msra.mxu0 0
    %2634 = vmatprep.subr.bf16.mxu0 0
    %2635 = vmatpush2.bf16.msra.mxu0 0
    %2636 = vmatprep.subr.bf16.mxu0 0
    %2637 = vmatpush2.bf16.msra.mxu0 0
    %2638 = vmatprep.subr.bf16.mxu0 0
    %2639 = vmatpush2.bf16.msra.mxu0 0
    %2640 = vmatprep.subr.bf16.mxu0 0
    %2641 = vmatpush2.bf16.msra.mxu0 0
    %2642 = vmatprep.subr.bf16.mxu0 0
    %2643 = vmatpush2.bf16.msra.mxu0 0
    %2644 = vmatprep.subr.bf16.mxu0 0
    %2645 = vmatpush2.bf16.msra.mxu0 0
    %2646 = vmatprep.subr.bf16.mxu0 0
    %2647 = vmatpush2.bf16.msra.mxu0 0
    %2648 = vmatprep.mubr.bf16.mxu0 0
    %2649 = vmatmul.mubr.bf16.gmra.mxu0 %v2596
    %v2650 = vpop.f32.mrf.mxu0
    %v2651 = vadd.f32 %v2465, %v2650
    %v2652 = vpop.f32.mrf.mxu0
    %v2653 = vadd.f32 %v2467, %v2652
    %v2654 = vpop.f32.mrf.mxu0
    %v2655 = vadd.f32 %v2469, %v2654
    %v2656 = vpop.f32.mrf.mxu0
    %v2657 = vadd.f32 %v2471, %v2656
    %2658 = vmatprep.mubr.bf16.mxu0 0
    %2659 = vmatmul.mubr.bf16.gmra.mxu0 %v2599
    %v2660 = vpop.f32.mrf.mxu0
    %v2661 = vadd.f32 %v2475, %v2660
    %v2662 = vpop.f32.mrf.mxu0
    %v2663 = vadd.f32 %v2477, %v2662
    %v2664 = vpop.f32.mrf.mxu0
    %v2665 = vadd.f32 %v2479, %v2664
    %v2666 = vpop.f32.mrf.mxu0
    %v2667 = vadd.f32 %v2481, %v2666
    %2668 = vdwg.mxu0
    %2669 = vmatprep.subr.bf16.mxu0 0
    %2670 = vmatpush1.bf16.msra.mxu0 0
    %2671 = vmatprep.subr.bf16.mxu0 0
    %2672 = vmatpush1.bf16.msra.mxu0 0
    %2673 = vmatprep.subr.bf16.mxu0 0
    %2674 = vmatpush1.bf16.msra.mxu0 0
    %2675 = vmatprep.subr.bf16.mxu0 0
    %2676 = vmatpush1.bf16.msra.mxu0 0
    %2677 = vmatprep.subr.bf16.mxu0 0
    %2678 = vmatpush1.bf16.msra.mxu0 0
    %2679 = vmatprep.subr.bf16.mxu0 0
    %2680 = vmatpush1.bf16.msra.mxu0 0
    %2681 = vmatprep.subr.bf16.mxu0 0
    %2682 = vmatpush1.bf16.msra.mxu0 0
    %2683 = vmatprep.subr.bf16.mxu0 %v2611
    %2684 = vmatpush1.bf16.msra.mxu0 %v2608
    %2685 = vmatprep.subr.bf16.mxu0 0
    %2686 = vmatpush2.bf16.msra.mxu0 0
    %2687 = vmatprep.subr.bf16.mxu0 0
    %2688 = vmatpush2.bf16.msra.mxu0 0
    %2689 = vmatprep.subr.bf16.mxu0 0
    %2690 = vmatpush2.bf16.msra.mxu0 0
    %2691 = vmatprep.subr.bf16.mxu0 0
    %2692 = vmatpush2.bf16.msra.mxu0 0
    %2693 = vmatprep.subr.bf16.mxu0 0
    %2694 = vmatpush2.bf16.msra.mxu0 0
    %2695 = vmatprep.subr.bf16.mxu0 0
    %2696 = vmatpush2.bf16.msra.mxu0 0
    %2697 = vmatprep.subr.bf16.mxu0 0
    %2698 = vmatpush2.bf16.msra.mxu0 0
    %2699 = vmatprep.subr.bf16.mxu0 0
    %2700 = vmatpush2.bf16.msra.mxu0 0
    %2701 = vmatprep.mubr.bf16.mxu0 0
    %2702 = vmatmul.mubr.bf16.gmra.mxu0 %v2596
    %v2703 = vpop.f32.mrf.mxu0
    %v2704 = vadd.f32 %v2518, %v2703
    %v2705 = vpop.f32.mrf.mxu0
    %v2706 = vadd.f32 %v2520, %v2705
    %v2707 = vpop.f32.mrf.mxu0
    %v2708 = vadd.f32 %v2522, %v2707
    %v2709 = vpop.f32.mrf.mxu0
    %v2710 = vadd.f32 %v2524, %v2709
    %2711 = vmatprep.mubr.bf16.mxu0 0
    %2712 = vmatmul.mubr.bf16.gmra.mxu0 %v2599
    %v2713 = vpop.f32.mrf.mxu0
    %v2714 = vadd.f32 %v2528, %v2713
    %v2715 = vpop.f32.mrf.mxu0
    %v2716 = vadd.f32 %v2530, %v2715
    %v2717 = vpop.f32.mrf.mxu0
    %v2718 = vadd.f32 %v2532, %v2717
    %v2719 = vpop.f32.mrf.mxu0
    %v2720 = vadd.f32 %v2534, %v2719
    %2721 = vdwg.mxu0
    %2722 = vmatprep.subr.bf16.mxu0 0
    %2723 = vmatpush1.bf16.msra.mxu0 0
    %2724 = vmatprep.subr.bf16.mxu0 0
    %2725 = vmatpush1.bf16.msra.mxu0 0
    %2726 = vmatprep.subr.bf16.mxu0 0
    %2727 = vmatpush1.bf16.msra.mxu0 0
    %2728 = vmatprep.subr.bf16.mxu0 0
    %2729 = vmatpush1.bf16.msra.mxu0 0
    %2730 = vmatprep.subr.bf16.mxu0 0
    %2731 = vmatpush1.bf16.msra.mxu0 0
    %2732 = vmatprep.subr.bf16.mxu0 0
    %2733 = vmatpush1.bf16.msra.mxu0 0
    %2734 = vmatprep.subr.bf16.mxu0 0
    %2735 = vmatpush1.bf16.msra.mxu0 0
    %2736 = vmatprep.subr.bf16.mxu0 0
    %2737 = vmatpush1.bf16.msra.mxu0 %v2614
    %2738 = vmatprep.subr.bf16.mxu0 0
    %2739 = vmatpush2.bf16.msra.mxu0 0
    %2740 = vmatprep.subr.bf16.mxu0 0
    %2741 = vmatpush2.bf16.msra.mxu0 0
    %2742 = vmatprep.subr.bf16.mxu0 0
    %2743 = vmatpush2.bf16.msra.mxu0 0
    %2744 = vmatprep.subr.bf16.mxu0 0
    %2745 = vmatpush2.bf16.msra.mxu0 0
    %2746 = vmatprep.subr.bf16.mxu0 0
    %2747 = vmatpush2.bf16.msra.mxu0 0
    %2748 = vmatprep.subr.bf16.mxu0 0
    %2749 = vmatpush2.bf16.msra.mxu0 0
    %2750 = vmatprep.subr.bf16.mxu0 0
    %2751 = vmatpush2.bf16.msra.mxu0 0
    %2752 = vmatprep.subr.bf16.mxu0 0
    %2753 = vmatpush2.bf16.msra.mxu0 0
    %2754 = vmatprep.mubr.bf16.mxu0 0
    %2755 = vmatmul.mubr.bf16.gmra.mxu0 %v2596
    %v2756 = vpop.f32.mrf.mxu0
    %v2757 = vadd.f32 %v2571, %v2756
    %v2758 = vpop.f32.mrf.mxu0
    %v2759 = vpop.f32.mrf.mxu0
    %v2760 = vadd.f32 %v2574, %v2759
    %v2761 = vpop.f32.mrf.mxu0
    %2762 = vmatprep.mubr.bf16.mxu0 0
    %2763 = vmatmul.mubr.bf16.gmra.mxu0 %v2599
    %v2764 = vpop.f32.mrf.mxu0
    %v2765 = vadd.f32 %v2579, %v2764
    %v2766 = vpop.f32.mrf.mxu0
    %v2767 = vpop.f32.mrf.mxu0
    %v2768 = vadd.f32 %v2582, %v2767
    %v2769 = vpop.f32.mrf.mxu0
    %2770 = vdwg.mxu0
    %2771 = vrot.lane.b32.xlu0 %v2342, 31
    %v2772 = vpop.permute.xlu0 %2771
    %2773 = vrot.lane.b32.xlu0 %v2347, 31
    %v2774 = vpop.permute.xlu0 %2773
    %2775 = vrot.lane.b32.xlu0 %v2343, 31
    %v2776 = vpop.permute.xlu0 %2775
    %2777 = vrot.lane.b32.xlu0 %v2348, 31
    %v2778 = vpop.permute.xlu0 %2777
    %2779 = vrot.lane.b32.xlu0 %v2344, 31
    %v2780 = vpop.permute.xlu0 %2779
    %v2781 = vsel %vm468, %v2778, %v2780
    %v2782 = vsel %vm468, %v2776, %v2778
    %v2783 = vsel %vm468, %v2774, %v2776
    %v2784 = vsel %vm468, %v2772, %v2774
    %v2785 = vsel %vm468, %v2780, %v2772
    %v2786 = vld [vmem:[%s474] sm:$0xf]
    %v2787 = vld [vmem:[%s474 + $0x4] sm:$0xf]
    %v2788 = vld [vmem:[%s474 + $0x8] sm:$0xf]
    %v2789 = vld [vmem:[%s474 + $0xc] sm:$0xf]
    %v2790 = vpack.c.bf16 %v2785, %v2785
    %v2791 = vpack.c.bf16 %v2784, %v2784
    %v2792 = vpack.c.bf16 %v2783, %v2783
    %v2793 = vpack.c.bf16 %v2782, %v2782
    %v2794 = vpack.c.bf16 %v2781, %v2781
    %v2799 = vunpack.c.l.b16 %v2786
    %v2800 = vunpack.c.l.b16 %v2787
    %v2801 = vunpack.c.l.b16 %v2788
    %v2802 = vunpack.c.l.b16 %v2789
    %v2803 = vpack.c.b16 %v2800, %v2799
    %v2804 = vpack.c.b16 %v2802, %v2801
    %v2806 = vsel %vm94, %v2803, 0
    %v2809 = vsel %vm94, %v2804, 0
    %v2812 = vsel %vm101, %v2790, 0
    %v2815 = vsel %vm101, %v2791, 0
    %v2818 = vsel %vm101, %v2792, 0
    %v2821 = vsel %vm101, %v2793, 0
    %v2824 = vsel %vm101, %v2794, 0
    %2826 = vmatprep.subr.bf16.mxu0 0
    %2827 = vmatpush1.bf16.msra.mxu0 0
    %2828 = vmatprep.subr.bf16.mxu0 0
    %2829 = vmatpush1.bf16.msra.mxu0 0
    %2830 = vmatprep.subr.bf16.mxu0 0
    %2831 = vmatpush1.bf16.msra.mxu0 0
    %2832 = vmatprep.subr.bf16.mxu0 0
    %2833 = vmatpush1.bf16.msra.mxu0 0
    %2834 = vmatprep.subr.bf16.mxu0 0
    %2835 = vmatpush1.bf16.msra.mxu0 0
    %2836 = vmatprep.subr.bf16.mxu0 0
    %2837 = vmatpush1.bf16.msra.mxu0 0
    %2838 = vmatprep.subr.bf16.mxu0 0
    %2839 = vmatpush1.bf16.msra.mxu0 0
    %2840 = vmatprep.subr.bf16.mxu0 %v2815
    %2841 = vmatpush1.bf16.msra.mxu0 %v2812
    %2842 = vmatprep.subr.bf16.mxu0 0
    %2843 = vmatpush2.bf16.msra.mxu0 0
    %2844 = vmatprep.subr.bf16.mxu0 0
    %2845 = vmatpush2.bf16.msra.mxu0 0
    %2846 = vmatprep.subr.bf16.mxu0 0
    %2847 = vmatpush2.bf16.msra.mxu0 0
    %2848 = vmatprep.subr.bf16.mxu0 0
    %2849 = vmatpush2.bf16.msra.mxu0 0
    %2850 = vmatprep.subr.bf16.mxu0 0
    %2851 = vmatpush2.bf16.msra.mxu0 0
    %2852 = vmatprep.subr.bf16.mxu0 0
    %2853 = vmatpush2.bf16.msra.mxu0 0
    %2854 = vmatprep.subr.bf16.mxu0 0
    %2855 = vmatpush2.bf16.msra.mxu0 0
    %2856 = vmatprep.subr.bf16.mxu0 0
    %2857 = vmatpush2.bf16.msra.mxu0 0
    %2858 = vmatprep.mubr.bf16.mxu0 0
    %2859 = vmatmul.mubr.bf16.gmra.mxu0 %v2806
    %v2860 = vpop.f32.mrf.mxu0
    %v2861 = vadd.f32 0.0, %v2860
    %v2862 = vpop.f32.mrf.mxu0
    %v2863 = vadd.f32 0.0, %v2862
    %v2864 = vpop.f32.mrf.mxu0
    %v2865 = vadd.f32 0.0, %v2864
    %v2866 = vpop.f32.mrf.mxu0
    %v2867 = vadd.f32 0.0, %v2866
    %2868 = vmatprep.mubr.bf16.mxu0 0
    %2869 = vmatmul.mubr.bf16.gmra.mxu0 %v2809
    %v2870 = vpop.f32.mrf.mxu0
    %v2871 = vadd.f32 0.0, %v2870
    %v2872 = vpop.f32.mrf.mxu0
    %v2873 = vadd.f32 0.0, %v2872
    %v2874 = vpop.f32.mrf.mxu0
    %v2875 = vadd.f32 0.0, %v2874
    %v2876 = vpop.f32.mrf.mxu0
    %v2877 = vadd.f32 0.0, %v2876
    %2878 = vdwg.mxu0
    %2879 = vmatprep.subr.bf16.mxu0 0
    %2880 = vmatpush1.bf16.msra.mxu0 0
    %2881 = vmatprep.subr.bf16.mxu0 0
    %2882 = vmatpush1.bf16.msra.mxu0 0
    %2883 = vmatprep.subr.bf16.mxu0 0
    %2884 = vmatpush1.bf16.msra.mxu0 0
    %2885 = vmatprep.subr.bf16.mxu0 0
    %2886 = vmatpush1.bf16.msra.mxu0 0
    %2887 = vmatprep.subr.bf16.mxu0 0
    %2888 = vmatpush1.bf16.msra.mxu0 0
    %2889 = vmatprep.subr.bf16.mxu0 0
    %2890 = vmatpush1.bf16.msra.mxu0 0
    %2891 = vmatprep.subr.bf16.mxu0 0
    %2892 = vmatpush1.bf16.msra.mxu0 0
    %2893 = vmatprep.subr.bf16.mxu0 %v2821
    %2894 = vmatpush1.bf16.msra.mxu0 %v2818
    %2895 = vmatprep.subr.bf16.mxu0 0
    %2896 = vmatpush2.bf16.msra.mxu0 0
    %2897 = vmatprep.subr.bf16.mxu0 0
    %2898 = vmatpush2.bf16.msra.mxu0 0
    %2899 = vmatprep.subr.bf16.mxu0 0
    %2900 = vmatpush2.bf16.msra.mxu0 0
    %2901 = vmatprep.subr.bf16.mxu0 0
    %2902 = vmatpush2.bf16.msra.mxu0 0
    %2903 = vmatprep.subr.bf16.mxu0 0
    %2904 = vmatpush2.bf16.msra.mxu0 0
    %2905 = vmatprep.subr.bf16.mxu0 0
    %2906 = vmatpush2.bf16.msra.mxu0 0
    %2907 = vmatprep.subr.bf16.mxu0 0
    %2908 = vmatpush2.bf16.msra.mxu0 0
    %2909 = vmatprep.subr.bf16.mxu0 0
    %2910 = vmatpush2.bf16.msra.mxu0 0
    %2911 = vmatprep.mubr.bf16.mxu0 0
    %2912 = vmatmul.mubr.bf16.gmra.mxu0 %v2806
    %v2913 = vpop.f32.mrf.mxu0
    %v2914 = vadd.f32 0.0, %v2913
    %v2915 = vpop.f32.mrf.mxu0
    %v2916 = vadd.f32 0.0, %v2915
    %v2917 = vpop.f32.mrf.mxu0
    %v2918 = vadd.f32 0.0, %v2917
    %v2919 = vpop.f32.mrf.mxu0
    %v2920 = vadd.f32 0.0, %v2919
    %2921 = vmatprep.mubr.bf16.mxu0 0
    %2922 = vmatmul.mubr.bf16.gmra.mxu0 %v2809
    %v2923 = vpop.f32.mrf.mxu0
    %v2924 = vadd.f32 0.0, %v2923
    %v2925 = vpop.f32.mrf.mxu0
    %v2926 = vadd.f32 0.0, %v2925
    %v2927 = vpop.f32.mrf.mxu0
    %v2928 = vadd.f32 0.0, %v2927
    %v2929 = vpop.f32.mrf.mxu0
    %v2930 = vadd.f32 0.0, %v2929
    %2931 = vdwg.mxu0
    %2932 = vmatprep.subr.bf16.mxu0 0
    %2933 = vmatpush1.bf16.msra.mxu0 0
    %2934 = vmatprep.subr.bf16.mxu0 0
    %2935 = vmatpush1.bf16.msra.mxu0 0
    %2936 = vmatprep.subr.bf16.mxu0 0
    %2937 = vmatpush1.bf16.msra.mxu0 0
    %2938 = vmatprep.subr.bf16.mxu0 0
    %2939 = vmatpush1.bf16.msra.mxu0 0
    %2940 = vmatprep.subr.bf16.mxu0 0
    %2941 = vmatpush1.bf16.msra.mxu0 0
    %2942 = vmatprep.subr.bf16.mxu0 0
    %2943 = vmatpush1.bf16.msra.mxu0 0
    %2944 = vmatprep.subr.bf16.mxu0 0
    %2945 = vmatpush1.bf16.msra.mxu0 0
    %2946 = vmatprep.subr.bf16.mxu0 0
    %2947 = vmatpush1.bf16.msra.mxu0 %v2824
    %2948 = vmatprep.subr.bf16.mxu0 0
    %2949 = vmatpush2.bf16.msra.mxu0 0
    %2950 = vmatprep.subr.bf16.mxu0 0
    %2951 = vmatpush2.bf16.msra.mxu0 0
    %2952 = vmatprep.subr.bf16.mxu0 0
    %2953 = vmatpush2.bf16.msra.mxu0 0
    %2954 = vmatprep.subr.bf16.mxu0 0
    %2955 = vmatpush2.bf16.msra.mxu0 0
    %2956 = vmatprep.subr.bf16.mxu0 0
    %2957 = vmatpush2.bf16.msra.mxu0 0
    %2958 = vmatprep.subr.bf16.mxu0 0
    %2959 = vmatpush2.bf16.msra.mxu0 0
    %2960 = vmatprep.subr.bf16.mxu0 0
    %2961 = vmatpush2.bf16.msra.mxu0 0
    %2962 = vmatprep.subr.bf16.mxu0 0
    %2963 = vmatpush2.bf16.msra.mxu0 0
    %2964 = vmatprep.mubr.bf16.mxu0 0
    %2965 = vmatmul.mubr.bf16.gmra.mxu0 %v2806
    %v2966 = vpop.f32.mrf.mxu0
    %v2967 = vadd.f32 0.0, %v2966
    %v2968 = vpop.f32.mrf.mxu0
    %v2969 = vpop.f32.mrf.mxu0
    %v2970 = vadd.f32 0.0, %v2969
    %v2971 = vpop.f32.mrf.mxu0
    %2972 = vmatprep.mubr.bf16.mxu0 0
    %2973 = vmatmul.mubr.bf16.gmra.mxu0 %v2809
    %v2974 = vpop.f32.mrf.mxu0
    %v2975 = vadd.f32 0.0, %v2974
    %v2976 = vpop.f32.mrf.mxu0
    %v2977 = vpop.f32.mrf.mxu0
    %v2978 = vadd.f32 0.0, %v2977
    %v2979 = vpop.f32.mrf.mxu0
    %2980 = vdwg.mxu0
    %v2981 = vadd.f32 %v2651, %v2861
    %v2982 = vadd.f32 %v2653, %v2863
    %v2983 = vadd.f32 %v2704, %v2914
    %v2984 = vadd.f32 %v2706, %v2916
    %v2985 = vadd.f32 %v2757, %v2967
    %v2986 = vadd.f32 %v2655, %v2865
    %v2987 = vadd.f32 %v2657, %v2867
    %v2988 = vadd.f32 %v2708, %v2918
    %v2989 = vadd.f32 %v2710, %v2920
    %v2990 = vadd.f32 %v2760, %v2970
    %v2991 = vadd.f32 %v2661, %v2871
    %v2992 = vadd.f32 %v2663, %v2873
    %v2993 = vadd.f32 %v2714, %v2924
    %v2994 = vadd.f32 %v2716, %v2926
    %v2995 = vadd.f32 %v2765, %v2975
    %v2996 = vadd.f32 %v2665, %v2875
    %v2997 = vadd.f32 %v2667, %v2877
    %v2998 = vadd.f32 %v2718, %v2928
    %v2999 = vadd.f32 %v2720, %v2930
    %v3000 = vadd.f32 %v2768, %v2978
    %3001 = vrot.lane.b32.xlu0 %v2342, 1
    %v3002 = vpop.permute.xlu0 %3001
    %3003 = vrot.lane.b32.xlu0 %v2347, 1
    %v3004 = vpop.permute.xlu0 %3003
    %3005 = vrot.lane.b32.xlu0 %v2343, 1
    %v3006 = vpop.permute.xlu0 %3005
    %3007 = vrot.lane.b32.xlu0 %v2348, 1
    %v3008 = vpop.permute.xlu0 %3007
    %3009 = vrot.lane.b32.xlu0 %v2344, 1
    %v3010 = vpop.permute.xlu0 %3009
    %v3011 = vsel %vm700, %v3008, %v3010
    %v3012 = vsel %vm700, %v3006, %v3008
    %v3013 = vsel %vm700, %v3004, %v3006
    %v3014 = vsel %vm700, %v3002, %v3004
    %v3015 = vsel %vm700, %v3010, %v3002
    %v3016 = vld [vmem:[%s706] sm:$0xf]
    %v3017 = vld [vmem:[%s706 + $0x4] sm:$0xf]
    %v3018 = vld [vmem:[%s706 + $0x8] sm:$0xf]
    %v3019 = vld [vmem:[%s706 + $0xc] sm:$0xf]
    %v3020 = vpack.c.bf16 %v3015, %v3015
    %v3021 = vpack.c.bf16 %v3014, %v3014
    %v3022 = vpack.c.bf16 %v3013, %v3013
    %v3023 = vpack.c.bf16 %v3012, %v3012
    %v3024 = vpack.c.bf16 %v3011, %v3011
    %v3029 = vunpack.c.l.b16 %v3016
    %v3030 = vunpack.c.l.b16 %v3017
    %v3031 = vunpack.c.l.b16 %v3018
    %v3032 = vunpack.c.l.b16 %v3019
    %v3033 = vpack.c.b16 %v3030, %v3029
    %v3034 = vpack.c.b16 %v3032, %v3031
    %v3036 = vsel %vm94, %v3033, 0
    %v3039 = vsel %vm94, %v3034, 0
    %v3042 = vsel %vm101, %v3020, 0
    %v3045 = vsel %vm101, %v3021, 0
    %v3048 = vsel %vm101, %v3022, 0
    %v3051 = vsel %vm101, %v3023, 0
    %v3054 = vsel %vm101, %v3024, 0
    %3056 = vmatprep.subr.bf16.mxu0 0
    %3057 = vmatpush1.bf16.msra.mxu0 0
    %3058 = vmatprep.subr.bf16.mxu0 0
    %3059 = vmatpush1.bf16.msra.mxu0 0
    %3060 = vmatprep.subr.bf16.mxu0 0
    %3061 = vmatpush1.bf16.msra.mxu0 0
    %3062 = vmatprep.subr.bf16.mxu0 0
    %3063 = vmatpush1.bf16.msra.mxu0 0
    %3064 = vmatprep.subr.bf16.mxu0 0
    %3065 = vmatpush1.bf16.msra.mxu0 0
    %3066 = vmatprep.subr.bf16.mxu0 0
    %3067 = vmatpush1.bf16.msra.mxu0 0
    %3068 = vmatprep.subr.bf16.mxu0 0
    %3069 = vmatpush1.bf16.msra.mxu0 0
    %3070 = vmatprep.subr.bf16.mxu0 %v3045
    %3071 = vmatpush1.bf16.msra.mxu0 %v3042
    %3072 = vmatprep.subr.bf16.mxu0 0
    %3073 = vmatpush2.bf16.msra.mxu0 0
    %3074 = vmatprep.subr.bf16.mxu0 0
    %3075 = vmatpush2.bf16.msra.mxu0 0
    %3076 = vmatprep.subr.bf16.mxu0 0
    %3077 = vmatpush2.bf16.msra.mxu0 0
    %3078 = vmatprep.subr.bf16.mxu0 0
    %3079 = vmatpush2.bf16.msra.mxu0 0
    %3080 = vmatprep.subr.bf16.mxu0 0
    %3081 = vmatpush2.bf16.msra.mxu0 0
    %3082 = vmatprep.subr.bf16.mxu0 0
    %3083 = vmatpush2.bf16.msra.mxu0 0
    %3084 = vmatprep.subr.bf16.mxu0 0
    %3085 = vmatpush2.bf16.msra.mxu0 0
    %3086 = vmatprep.subr.bf16.mxu0 0
    %3087 = vmatpush2.bf16.msra.mxu0 0
    %3088 = vmatprep.mubr.bf16.mxu0 0
    %3089 = vmatmul.mubr.bf16.gmra.mxu0 %v3036
    %v3090 = vpop.f32.mrf.mxu0
    %v3091 = vadd.f32 0.0, %v3090
    %v3092 = vpop.f32.mrf.mxu0
    %v3093 = vadd.f32 0.0, %v3092
    %v3094 = vpop.f32.mrf.mxu0
    %v3095 = vadd.f32 0.0, %v3094
    %v3096 = vpop.f32.mrf.mxu0
    %v3097 = vadd.f32 0.0, %v3096
    %3098 = vmatprep.mubr.bf16.mxu0 0
    %3099 = vmatmul.mubr.bf16.gmra.mxu0 %v3039
    %v3100 = vpop.f32.mrf.mxu0
    %v3101 = vadd.f32 0.0, %v3100
    %v3102 = vpop.f32.mrf.mxu0
    %v3103 = vadd.f32 0.0, %v3102
    %v3104 = vpop.f32.mrf.mxu0
    %v3105 = vadd.f32 0.0, %v3104
    %v3106 = vpop.f32.mrf.mxu0
    %v3107 = vadd.f32 0.0, %v3106
    %3108 = vdwg.mxu0
    %3109 = vmatprep.subr.bf16.mxu0 0
    %3110 = vmatpush1.bf16.msra.mxu0 0
    %3111 = vmatprep.subr.bf16.mxu0 0
    %3112 = vmatpush1.bf16.msra.mxu0 0
    %3113 = vmatprep.subr.bf16.mxu0 0
    %3114 = vmatpush1.bf16.msra.mxu0 0
    %3115 = vmatprep.subr.bf16.mxu0 0
    %3116 = vmatpush1.bf16.msra.mxu0 0
    %3117 = vmatprep.subr.bf16.mxu0 0
    %3118 = vmatpush1.bf16.msra.mxu0 0
    %3119 = vmatprep.subr.bf16.mxu0 0
    %3120 = vmatpush1.bf16.msra.mxu0 0
    %3121 = vmatprep.subr.bf16.mxu0 0
    %3122 = vmatpush1.bf16.msra.mxu0 0
    %3123 = vmatprep.subr.bf16.mxu0 %v3051
    %3124 = vmatpush1.bf16.msra.mxu0 %v3048
    %3125 = vmatprep.subr.bf16.mxu0 0
    %3126 = vmatpush2.bf16.msra.mxu0 0
    %3127 = vmatprep.subr.bf16.mxu0 0
    %3128 = vmatpush2.bf16.msra.mxu0 0
    %3129 = vmatprep.subr.bf16.mxu0 0
    %3130 = vmatpush2.bf16.msra.mxu0 0
    %3131 = vmatprep.subr.bf16.mxu0 0
    %3132 = vmatpush2.bf16.msra.mxu0 0
    %3133 = vmatprep.subr.bf16.mxu0 0
    %3134 = vmatpush2.bf16.msra.mxu0 0
    %3135 = vmatprep.subr.bf16.mxu0 0
    %3136 = vmatpush2.bf16.msra.mxu0 0
    %3137 = vmatprep.subr.bf16.mxu0 0
    %3138 = vmatpush2.bf16.msra.mxu0 0
    %3139 = vmatprep.subr.bf16.mxu0 0
    %3140 = vmatpush2.bf16.msra.mxu0 0
    %3141 = vmatprep.mubr.bf16.mxu0 0
    %3142 = vmatmul.mubr.bf16.gmra.mxu0 %v3036
    %v3143 = vpop.f32.mrf.mxu0
    %v3144 = vadd.f32 0.0, %v3143
    %v3145 = vpop.f32.mrf.mxu0
    %v3146 = vadd.f32 0.0, %v3145
    %v3147 = vpop.f32.mrf.mxu0
    %v3148 = vadd.f32 0.0, %v3147
    %v3149 = vpop.f32.mrf.mxu0
    %v3150 = vadd.f32 0.0, %v3149
    %3151 = vmatprep.mubr.bf16.mxu0 0
    %3152 = vmatmul.mubr.bf16.gmra.mxu0 %v3039
    %v3153 = vpop.f32.mrf.mxu0
    %v3154 = vadd.f32 0.0, %v3153
    %v3155 = vpop.f32.mrf.mxu0
    %v3156 = vadd.f32 0.0, %v3155
    %v3157 = vpop.f32.mrf.mxu0
    %v3158 = vadd.f32 0.0, %v3157
    %v3159 = vpop.f32.mrf.mxu0
    %v3160 = vadd.f32 0.0, %v3159
    %3161 = vdwg.mxu0
    %3162 = vmatprep.subr.bf16.mxu0 0
    %3163 = vmatpush1.bf16.msra.mxu0 0
    %3164 = vmatprep.subr.bf16.mxu0 0
    %3165 = vmatpush1.bf16.msra.mxu0 0
    %3166 = vmatprep.subr.bf16.mxu0 0
    %3167 = vmatpush1.bf16.msra.mxu0 0
    %3168 = vmatprep.subr.bf16.mxu0 0
    %3169 = vmatpush1.bf16.msra.mxu0 0
    %3170 = vmatprep.subr.bf16.mxu0 0
    %3171 = vmatpush1.bf16.msra.mxu0 0
    %3172 = vmatprep.subr.bf16.mxu0 0
    %3173 = vmatpush1.bf16.msra.mxu0 0
    %3174 = vmatprep.subr.bf16.mxu0 0
    %3175 = vmatpush1.bf16.msra.mxu0 0
    %3176 = vmatprep.subr.bf16.mxu0 0
    %3177 = vmatpush1.bf16.msra.mxu0 %v3054
    %3178 = vmatprep.subr.bf16.mxu0 0
    %3179 = vmatpush2.bf16.msra.mxu0 0
    %3180 = vmatprep.subr.bf16.mxu0 0
    %3181 = vmatpush2.bf16.msra.mxu0 0
    %3182 = vmatprep.subr.bf16.mxu0 0
    %3183 = vmatpush2.bf16.msra.mxu0 0
    %3184 = vmatprep.subr.bf16.mxu0 0
    %3185 = vmatpush2.bf16.msra.mxu0 0
    %3186 = vmatprep.subr.bf16.mxu0 0
    %3187 = vmatpush2.bf16.msra.mxu0 0
    %3188 = vmatprep.subr.bf16.mxu0 0
    %3189 = vmatpush2.bf16.msra.mxu0 0
    %3190 = vmatprep.subr.bf16.mxu0 0
    %3191 = vmatpush2.bf16.msra.mxu0 0
    %3192 = vmatprep.subr.bf16.mxu0 0
    %3193 = vmatpush2.bf16.msra.mxu0 0
    %3194 = vmatprep.mubr.bf16.mxu0 0
    %3195 = vmatmul.mubr.bf16.gmra.mxu0 %v3036
    %v3196 = vpop.f32.mrf.mxu0
    %v3197 = vadd.f32 0.0, %v3196
    %v3198 = vpop.f32.mrf.mxu0
    %v3199 = vpop.f32.mrf.mxu0
    %v3200 = vadd.f32 0.0, %v3199
    %v3201 = vpop.f32.mrf.mxu0
    %3202 = vmatprep.mubr.bf16.mxu0 0
    %3203 = vmatmul.mubr.bf16.gmra.mxu0 %v3039
    %v3204 = vpop.f32.mrf.mxu0
    %v3205 = vadd.f32 0.0, %v3204
    %v3206 = vpop.f32.mrf.mxu0
    %v3207 = vpop.f32.mrf.mxu0
    %v3208 = vadd.f32 0.0, %v3207
    %v3209 = vpop.f32.mrf.mxu0
    %3210 = vdwg.mxu0
    %v3211 = vadd.f32 %v2981, %v3091
    %v3212 = vadd.f32 %v2982, %v3093
    %v3213 = vadd.f32 %v2983, %v3144
    %v3214 = vadd.f32 %v2984, %v3146
    %v3215 = vadd.f32 %v2985, %v3197
    %v3216 = vadd.f32 %v2986, %v3095
    %v3217 = vadd.f32 %v2987, %v3097
    %v3218 = vadd.f32 %v2988, %v3148
    %v3219 = vadd.f32 %v2989, %v3150
    %v3220 = vadd.f32 %v2990, %v3200
    %v3221 = vadd.f32 %v2991, %v3101
    %v3222 = vadd.f32 %v2992, %v3103
    %v3223 = vadd.f32 %v2993, %v3154
    %v3224 = vadd.f32 %v2994, %v3156
    %v3225 = vadd.f32 %v2995, %v3205
    %v3226 = vadd.f32 %v2996, %v3105
    %v3227 = vadd.f32 %v2997, %v3107
    %v3228 = vadd.f32 %v2998, %v3158
    %v3229 = vadd.f32 %v2999, %v3160
    %v3230 = vadd.f32 %v3000, %v3208
    %v3231 = vld [vmem:[%s922] sm:$0xf]
    %v3232 = vld [vmem:[%s922 + $0x4] sm:$0xf]
    %v3233 = vld [vmem:[%s922 + $0x8] sm:$0xf]
    %v3234 = vld [vmem:[%s922 + $0xc] sm:$0xf]
    %v3235 = vpack.c.bf16 %v2342, %v2342
    %v3236 = vpack.c.bf16 %v2347, %v2347
    %v3237 = vpack.c.bf16 %v2343, %v2343
    %v3238 = vpack.c.bf16 %v2348, %v2348
    %v3239 = vpack.c.bf16 %v2344, %v2344
    %v3244 = vunpack.c.l.b16 %v3231
    %v3245 = vunpack.c.l.b16 %v3232
    %v3246 = vunpack.c.l.b16 %v3233
    %v3247 = vunpack.c.l.b16 %v3234
    %v3248 = vpack.c.b16 %v3245, %v3244
    %v3249 = vpack.c.b16 %v3247, %v3246
    %v3251 = vsel %vm94, %v3248, 0
    %v3254 = vsel %vm94, %v3249, 0
    %v3257 = vsel %vm101, %v3235, 0
    %v3260 = vsel %vm101, %v3236, 0
    %v3263 = vsel %vm101, %v3237, 0
    %v3266 = vsel %vm101, %v3238, 0
    %v3269 = vsel %vm101, %v3239, 0
    %3271 = vmatprep.subr.bf16.mxu0 0
    %3272 = vmatpush1.bf16.msra.mxu0 0
    %3273 = vmatprep.subr.bf16.mxu0 0
    %3274 = vmatpush1.bf16.msra.mxu0 0
    %3275 = vmatprep.subr.bf16.mxu0 0
    %3276 = vmatpush1.bf16.msra.mxu0 0
    %3277 = vmatprep.subr.bf16.mxu0 0
    %3278 = vmatpush1.bf16.msra.mxu0 0
    %3279 = vmatprep.subr.bf16.mxu0 0
    %3280 = vmatpush1.bf16.msra.mxu0 0
    %3281 = vmatprep.subr.bf16.mxu0 0
    %3282 = vmatpush1.bf16.msra.mxu0 0
    %3283 = vmatprep.subr.bf16.mxu0 0
    %3284 = vmatpush1.bf16.msra.mxu0 0
    %3285 = vmatprep.subr.bf16.mxu0 %v3260
    %3286 = vmatpush1.bf16.msra.mxu0 %v3257
    %3287 = vmatprep.subr.bf16.mxu0 0
    %3288 = vmatpush2.bf16.msra.mxu0 0
    %3289 = vmatprep.subr.bf16.mxu0 0
    %3290 = vmatpush2.bf16.msra.mxu0 0
    %3291 = vmatprep.subr.bf16.mxu0 0
    %3292 = vmatpush2.bf16.msra.mxu0 0
    %3293 = vmatprep.subr.bf16.mxu0 0
    %3294 = vmatpush2.bf16.msra.mxu0 0
    %3295 = vmatprep.subr.bf16.mxu0 0
    %3296 = vmatpush2.bf16.msra.mxu0 0
    %3297 = vmatprep.subr.bf16.mxu0 0
    %3298 = vmatpush2.bf16.msra.mxu0 0
    %3299 = vmatprep.subr.bf16.mxu0 0
    %3300 = vmatpush2.bf16.msra.mxu0 0
    %3301 = vmatprep.subr.bf16.mxu0 0
    %3302 = vmatpush2.bf16.msra.mxu0 0
    %3303 = vmatprep.mubr.bf16.mxu0 0
    %3304 = vmatmul.mubr.bf16.gmra.mxu0 %v3251
    %v3305 = vpop.f32.mrf.mxu0
    %v3306 = vadd.f32 0.0, %v3305
    %v3307 = vpop.f32.mrf.mxu0
    %v3308 = vadd.f32 0.0, %v3307
    %v3309 = vpop.f32.mrf.mxu0
    %v3310 = vadd.f32 0.0, %v3309
    %v3311 = vpop.f32.mrf.mxu0
    %v3312 = vadd.f32 0.0, %v3311
    %3313 = vmatprep.mubr.bf16.mxu0 0
    %3314 = vmatmul.mubr.bf16.gmra.mxu0 %v3254
    %v3315 = vpop.f32.mrf.mxu0
    %v3316 = vadd.f32 0.0, %v3315
    %v3317 = vpop.f32.mrf.mxu0
    %v3318 = vadd.f32 0.0, %v3317
    %v3319 = vpop.f32.mrf.mxu0
    %v3320 = vadd.f32 0.0, %v3319
    %v3321 = vpop.f32.mrf.mxu0
    %v3322 = vadd.f32 0.0, %v3321
    %3323 = vdwg.mxu0
    %3324 = vmatprep.subr.bf16.mxu0 0
    %3325 = vmatpush1.bf16.msra.mxu0 0
    %3326 = vmatprep.subr.bf16.mxu0 0
    %3327 = vmatpush1.bf16.msra.mxu0 0
    %3328 = vmatprep.subr.bf16.mxu0 0
    %3329 = vmatpush1.bf16.msra.mxu0 0
    %3330 = vmatprep.subr.bf16.mxu0 0
    %3331 = vmatpush1.bf16.msra.mxu0 0
    %3332 = vmatprep.subr.bf16.mxu0 0
    %3333 = vmatpush1.bf16.msra.mxu0 0
    %3334 = vmatprep.subr.bf16.mxu0 0
    %3335 = vmatpush1.bf16.msra.mxu0 0
    %3336 = vmatprep.subr.bf16.mxu0 0
    %3337 = vmatpush1.bf16.msra.mxu0 0
    %3338 = vmatprep.subr.bf16.mxu0 %v3266
    %3339 = vmatpush1.bf16.msra.mxu0 %v3263
    %3340 = vmatprep.subr.bf16.mxu0 0
    %3341 = vmatpush2.bf16.msra.mxu0 0
    %3342 = vmatprep.subr.bf16.mxu0 0
    %3343 = vmatpush2.bf16.msra.mxu0 0
    %3344 = vmatprep.subr.bf16.mxu0 0
    %3345 = vmatpush2.bf16.msra.mxu0 0
    %3346 = vmatprep.subr.bf16.mxu0 0
    %3347 = vmatpush2.bf16.msra.mxu0 0
    %3348 = vmatprep.subr.bf16.mxu0 0
    %3349 = vmatpush2.bf16.msra.mxu0 0
    %3350 = vmatprep.subr.bf16.mxu0 0
    %3351 = vmatpush2.bf16.msra.mxu0 0
    %3352 = vmatprep.subr.bf16.mxu0 0
    %3353 = vmatpush2.bf16.msra.mxu0 0
    %3354 = vmatprep.subr.bf16.mxu0 0
    %3355 = vmatpush2.bf16.msra.mxu0 0
    %3356 = vmatprep.mubr.bf16.mxu0 0
    %3357 = vmatmul.mubr.bf16.gmra.mxu0 %v3251
    %v3358 = vpop.f32.mrf.mxu0
    %v3359 = vadd.f32 0.0, %v3358
    %v3360 = vpop.f32.mrf.mxu0
    %v3361 = vadd.f32 0.0, %v3360
    %v3362 = vpop.f32.mrf.mxu0
    %v3363 = vadd.f32 0.0, %v3362
    %v3364 = vpop.f32.mrf.mxu0
    %v3365 = vadd.f32 0.0, %v3364
    %3366 = vmatprep.mubr.bf16.mxu0 0
    %3367 = vmatmul.mubr.bf16.gmra.mxu0 %v3254
    %v3368 = vpop.f32.mrf.mxu0
    %v3369 = vadd.f32 0.0, %v3368
    %v3370 = vpop.f32.mrf.mxu0
    %v3371 = vadd.f32 0.0, %v3370
    %v3372 = vpop.f32.mrf.mxu0
    %v3373 = vadd.f32 0.0, %v3372
    %v3374 = vpop.f32.mrf.mxu0
    %v3375 = vadd.f32 0.0, %v3374
    %3376 = vdwg.mxu0
    %3377 = vmatprep.subr.bf16.mxu0 0
    %3378 = vmatpush1.bf16.msra.mxu0 0
    %3379 = vmatprep.subr.bf16.mxu0 0
    %3380 = vmatpush1.bf16.msra.mxu0 0
    %3381 = vmatprep.subr.bf16.mxu0 0
    %3382 = vmatpush1.bf16.msra.mxu0 0
    %3383 = vmatprep.subr.bf16.mxu0 0
    %3384 = vmatpush1.bf16.msra.mxu0 0
    %3385 = vmatprep.subr.bf16.mxu0 0
    %3386 = vmatpush1.bf16.msra.mxu0 0
    %3387 = vmatprep.subr.bf16.mxu0 0
    %3388 = vmatpush1.bf16.msra.mxu0 0
    %3389 = vmatprep.subr.bf16.mxu0 0
    %3390 = vmatpush1.bf16.msra.mxu0 0
    %3391 = vmatprep.subr.bf16.mxu0 0
    %3392 = vmatpush1.bf16.msra.mxu0 %v3269
    %3393 = vmatprep.subr.bf16.mxu0 0
    %3394 = vmatpush2.bf16.msra.mxu0 0
    %3395 = vmatprep.subr.bf16.mxu0 0
    %3396 = vmatpush2.bf16.msra.mxu0 0
    %3397 = vmatprep.subr.bf16.mxu0 0
    %3398 = vmatpush2.bf16.msra.mxu0 0
    %3399 = vmatprep.subr.bf16.mxu0 0
    %3400 = vmatpush2.bf16.msra.mxu0 0
    %3401 = vmatprep.subr.bf16.mxu0 0
    %3402 = vmatpush2.bf16.msra.mxu0 0
    %3403 = vmatprep.subr.bf16.mxu0 0
    %3404 = vmatpush2.bf16.msra.mxu0 0
    %3405 = vmatprep.subr.bf16.mxu0 0
    %3406 = vmatpush2.bf16.msra.mxu0 0
    %3407 = vmatprep.subr.bf16.mxu0 0
    %3408 = vmatpush2.bf16.msra.mxu0 0
    %3409 = vmatprep.mubr.bf16.mxu0 0
    %3410 = vmatmul.mubr.bf16.gmra.mxu0 %v3251
    %v3411 = vpop.f32.mrf.mxu0
    %v3412 = vadd.f32 0.0, %v3411
    %v3413 = vpop.f32.mrf.mxu0
    %v3414 = vpop.f32.mrf.mxu0
    %v3415 = vadd.f32 0.0, %v3414
    %v3416 = vpop.f32.mrf.mxu0
    %3417 = vmatprep.mubr.bf16.mxu0 0
    %3418 = vmatmul.mubr.bf16.gmra.mxu0 %v3254
    %v3419 = vpop.f32.mrf.mxu0
    %v3420 = vadd.f32 0.0, %v3419
    %v3421 = vpop.f32.mrf.mxu0
    %v3422 = vpop.f32.mrf.mxu0
    %v3423 = vadd.f32 0.0, %v3422
    %v3424 = vpop.f32.mrf.mxu0
    %3425 = vdwg.mxu0
    %v3426 = vadd.f32 %v3211, %v3306
    %v3427 = vadd.f32 %v3212, %v3308
    %v3428 = vadd.f32 %v3213, %v3359
    %v3429 = vadd.f32 %v3214, %v3361
    %v3430 = vadd.f32 %v3215, %v3412
    %v3431 = vadd.f32 %v3216, %v3310
    %v3432 = vadd.f32 %v3217, %v3312
    %v3433 = vadd.f32 %v3218, %v3363
    %v3434 = vadd.f32 %v3219, %v3365
    %v3435 = vadd.f32 %v3220, %v3415
    %v3436 = vadd.f32 %v3221, %v3316
    %v3437 = vadd.f32 %v3222, %v3318
    %v3438 = vadd.f32 %v3223, %v3369
    %v3439 = vadd.f32 %v3224, %v3371
    %v3440 = vadd.f32 %v3225, %v3420
    %v3441 = vadd.f32 %v3226, %v3320
    %v3442 = vadd.f32 %v3227, %v3322
    %v3443 = vadd.f32 %v3228, %v3373
    %v3444 = vadd.f32 %v3229, %v3375
    %v3445 = vadd.f32 %v3230, %v3423
    %3446 = vrot.lane.b32.xlu0 %v2342, 127
    %v3447 = vpop.permute.xlu0 %3446
    %3448 = vrot.lane.b32.xlu0 %v2347, 127
    %v3449 = vpop.permute.xlu0 %3448
    %3450 = vrot.lane.b32.xlu0 %v2343, 127
    %v3451 = vpop.permute.xlu0 %3450
    %3452 = vrot.lane.b32.xlu0 %v2348, 127
    %v3453 = vpop.permute.xlu0 %3452
    %3454 = vrot.lane.b32.xlu0 %v2344, 127
    %v3455 = vpop.permute.xlu0 %3454
    %v3456 = vsel %vm1148, %v3453, %v3455
    %v3457 = vsel %vm1148, %v3451, %v3453
    %v3458 = vsel %vm1148, %v3449, %v3451
    %v3459 = vsel %vm1148, %v3447, %v3449
    %v3460 = vsel %vm1148, %v3455, %v3447
    %v3461 = vld [vmem:[%s1154] sm:$0xf]
    %v3462 = vld [vmem:[%s1154 + $0x4] sm:$0xf]
    %v3463 = vld [vmem:[%s1154 + $0x8] sm:$0xf]
    %v3464 = vld [vmem:[%s1154 + $0xc] sm:$0xf]
    %v3465 = vpack.c.bf16 %v3459, %v3459
    %v3466 = vpack.c.bf16 %v3458, %v3458
    %v3467 = vpack.c.bf16 %v3457, %v3457
    %v3468 = vpack.c.bf16 %v3456, %v3456
    %v3469 = vpack.c.bf16 %v3460, %v3460
    %v3474 = vunpack.c.l.b16 %v3461
    %v3475 = vunpack.c.l.b16 %v3462
    %v3476 = vunpack.c.l.b16 %v3463
    %v3477 = vunpack.c.l.b16 %v3464
    %v3478 = vpack.c.b16 %v3475, %v3474
    %v3479 = vpack.c.b16 %v3477, %v3476
    %v3481 = vsel %vm94, %v3478, 0
    %v3484 = vsel %vm94, %v3479, 0
    %v3487 = vsel %vm101, %v3465, 0
    %v3490 = vsel %vm101, %v3466, 0
    %v3493 = vsel %vm101, %v3467, 0
    %v3496 = vsel %vm101, %v3468, 0
    %v3499 = vsel %vm101, %v3469, 0
    %3501 = vmatprep.subr.bf16.mxu0 0
    %3502 = vmatpush1.bf16.msra.mxu0 0
    %3503 = vmatprep.subr.bf16.mxu0 0
    %3504 = vmatpush1.bf16.msra.mxu0 0
    %3505 = vmatprep.subr.bf16.mxu0 0
    %3506 = vmatpush1.bf16.msra.mxu0 0
    %3507 = vmatprep.subr.bf16.mxu0 0
    %3508 = vmatpush1.bf16.msra.mxu0 0
    %3509 = vmatprep.subr.bf16.mxu0 0
    %3510 = vmatpush1.bf16.msra.mxu0 0
    %3511 = vmatprep.subr.bf16.mxu0 0
    %3512 = vmatpush1.bf16.msra.mxu0 0
    %3513 = vmatprep.subr.bf16.mxu0 0
    %3514 = vmatpush1.bf16.msra.mxu0 0
    %3515 = vmatprep.subr.bf16.mxu0 %v3490
    %3516 = vmatpush1.bf16.msra.mxu0 %v3487
    %3517 = vmatprep.subr.bf16.mxu0 0
    %3518 = vmatpush2.bf16.msra.mxu0 0
    %3519 = vmatprep.subr.bf16.mxu0 0
    %3520 = vmatpush2.bf16.msra.mxu0 0
    %3521 = vmatprep.subr.bf16.mxu0 0
    %3522 = vmatpush2.bf16.msra.mxu0 0
    %3523 = vmatprep.subr.bf16.mxu0 0
    %3524 = vmatpush2.bf16.msra.mxu0 0
    %3525 = vmatprep.subr.bf16.mxu0 0
    %3526 = vmatpush2.bf16.msra.mxu0 0
    %3527 = vmatprep.subr.bf16.mxu0 0
    %3528 = vmatpush2.bf16.msra.mxu0 0
    %3529 = vmatprep.subr.bf16.mxu0 0
    %3530 = vmatpush2.bf16.msra.mxu0 0
    %3531 = vmatprep.subr.bf16.mxu0 0
    %3532 = vmatpush2.bf16.msra.mxu0 0
    %3533 = vmatprep.mubr.bf16.mxu0 0
    %3534 = vmatmul.mubr.bf16.gmra.mxu0 %v3481
    %v3535 = vpop.f32.mrf.mxu0
    %v3536 = vadd.f32 0.0, %v3535
    %v3537 = vpop.f32.mrf.mxu0
    %v3538 = vadd.f32 0.0, %v3537
    %v3539 = vpop.f32.mrf.mxu0
    %v3540 = vadd.f32 0.0, %v3539
    %v3541 = vpop.f32.mrf.mxu0
    %v3542 = vadd.f32 0.0, %v3541
    %3543 = vmatprep.mubr.bf16.mxu0 0
    %3544 = vmatmul.mubr.bf16.gmra.mxu0 %v3484
    %v3545 = vpop.f32.mrf.mxu0
    %v3546 = vadd.f32 0.0, %v3545
    %v3547 = vpop.f32.mrf.mxu0
    %v3548 = vadd.f32 0.0, %v3547
    %v3549 = vpop.f32.mrf.mxu0
    %v3550 = vadd.f32 0.0, %v3549
    %v3551 = vpop.f32.mrf.mxu0
    %v3552 = vadd.f32 0.0, %v3551
    %3553 = vdwg.mxu0
    %3554 = vmatprep.subr.bf16.mxu0 0
    %3555 = vmatpush1.bf16.msra.mxu0 0
    %3556 = vmatprep.subr.bf16.mxu0 0
    %3557 = vmatpush1.bf16.msra.mxu0 0
    %3558 = vmatprep.subr.bf16.mxu0 0
    %3559 = vmatpush1.bf16.msra.mxu0 0
    %3560 = vmatprep.subr.bf16.mxu0 0
    %3561 = vmatpush1.bf16.msra.mxu0 0
    %3562 = vmatprep.subr.bf16.mxu0 0
    %3563 = vmatpush1.bf16.msra.mxu0 0
    %3564 = vmatprep.subr.bf16.mxu0 0
    %3565 = vmatpush1.bf16.msra.mxu0 0
    %3566 = vmatprep.subr.bf16.mxu0 0
    %3567 = vmatpush1.bf16.msra.mxu0 0
    %3568 = vmatprep.subr.bf16.mxu0 %v3496
    %3569 = vmatpush1.bf16.msra.mxu0 %v3493
    %3570 = vmatprep.subr.bf16.mxu0 0
    %3571 = vmatpush2.bf16.msra.mxu0 0
    %3572 = vmatprep.subr.bf16.mxu0 0
    %3573 = vmatpush2.bf16.msra.mxu0 0
    %3574 = vmatprep.subr.bf16.mxu0 0
    %3575 = vmatpush2.bf16.msra.mxu0 0
    %3576 = vmatprep.subr.bf16.mxu0 0
    %3577 = vmatpush2.bf16.msra.mxu0 0
    %3578 = vmatprep.subr.bf16.mxu0 0
    %3579 = vmatpush2.bf16.msra.mxu0 0
    %3580 = vmatprep.subr.bf16.mxu0 0
    %3581 = vmatpush2.bf16.msra.mxu0 0
    %3582 = vmatprep.subr.bf16.mxu0 0
    %3583 = vmatpush2.bf16.msra.mxu0 0
    %3584 = vmatprep.subr.bf16.mxu0 0
    %3585 = vmatpush2.bf16.msra.mxu0 0
    %3586 = vmatprep.mubr.bf16.mxu0 0
    %3587 = vmatmul.mubr.bf16.gmra.mxu0 %v3481
    %v3588 = vpop.f32.mrf.mxu0
    %v3589 = vadd.f32 0.0, %v3588
    %v3590 = vpop.f32.mrf.mxu0
    %v3591 = vadd.f32 0.0, %v3590
    %v3592 = vpop.f32.mrf.mxu0
    %v3593 = vadd.f32 0.0, %v3592
    %v3594 = vpop.f32.mrf.mxu0
    %v3595 = vadd.f32 0.0, %v3594
    %3596 = vmatprep.mubr.bf16.mxu0 0
    %3597 = vmatmul.mubr.bf16.gmra.mxu0 %v3484
    %v3598 = vpop.f32.mrf.mxu0
    %v3599 = vadd.f32 0.0, %v3598
    %v3600 = vpop.f32.mrf.mxu0
    %v3601 = vadd.f32 0.0, %v3600
    %v3602 = vpop.f32.mrf.mxu0
    %v3603 = vadd.f32 0.0, %v3602
    %v3604 = vpop.f32.mrf.mxu0
    %v3605 = vadd.f32 0.0, %v3604
    %3606 = vdwg.mxu0
    %3607 = vmatprep.subr.bf16.mxu0 0
    %3608 = vmatpush1.bf16.msra.mxu0 0
    %3609 = vmatprep.subr.bf16.mxu0 0
    %3610 = vmatpush1.bf16.msra.mxu0 0
    %3611 = vmatprep.subr.bf16.mxu0 0
    %3612 = vmatpush1.bf16.msra.mxu0 0
    %3613 = vmatprep.subr.bf16.mxu0 0
    %3614 = vmatpush1.bf16.msra.mxu0 0
    %3615 = vmatprep.subr.bf16.mxu0 0
    %3616 = vmatpush1.bf16.msra.mxu0 0
    %3617 = vmatprep.subr.bf16.mxu0 0
    %3618 = vmatpush1.bf16.msra.mxu0 0
    %3619 = vmatprep.subr.bf16.mxu0 0
    %3620 = vmatpush1.bf16.msra.mxu0 0
    %3621 = vmatprep.subr.bf16.mxu0 0
    %3622 = vmatpush1.bf16.msra.mxu0 %v3499
    %3623 = vmatprep.subr.bf16.mxu0 0
    %3624 = vmatpush2.bf16.msra.mxu0 0
    %3625 = vmatprep.subr.bf16.mxu0 0
    %3626 = vmatpush2.bf16.msra.mxu0 0
    %3627 = vmatprep.subr.bf16.mxu0 0
    %3628 = vmatpush2.bf16.msra.mxu0 0
    %3629 = vmatprep.subr.bf16.mxu0 0
    %3630 = vmatpush2.bf16.msra.mxu0 0
    %3631 = vmatprep.subr.bf16.mxu0 0
    %3632 = vmatpush2.bf16.msra.mxu0 0
    %3633 = vmatprep.subr.bf16.mxu0 0
    %3634 = vmatpush2.bf16.msra.mxu0 0
    %3635 = vmatprep.subr.bf16.mxu0 0
    %3636 = vmatpush2.bf16.msra.mxu0 0
    %3637 = vmatprep.subr.bf16.mxu0 0
    %3638 = vmatpush2.bf16.msra.mxu0 0
    %3639 = vmatprep.mubr.bf16.mxu0 0
    %3640 = vmatmul.mubr.bf16.gmra.mxu0 %v3481
    %v3641 = vpop.f32.mrf.mxu0
    %v3642 = vadd.f32 0.0, %v3641
    %v3643 = vpop.f32.mrf.mxu0
    %v3644 = vpop.f32.mrf.mxu0
    %v3645 = vadd.f32 0.0, %v3644
    %v3646 = vpop.f32.mrf.mxu0
    %3647 = vmatprep.mubr.bf16.mxu0 0
    %3648 = vmatmul.mubr.bf16.gmra.mxu0 %v3484
    %v3649 = vpop.f32.mrf.mxu0
    %v3650 = vadd.f32 0.0, %v3649
    %v3651 = vpop.f32.mrf.mxu0
    %v3652 = vpop.f32.mrf.mxu0
    %v3653 = vadd.f32 0.0, %v3652
    %v3654 = vpop.f32.mrf.mxu0
    %3655 = vdwg.mxu0
    %v3656 = vadd.f32 %v3426, %v3536
    %v3657 = vadd.f32 %v3427, %v3538
    %v3658 = vadd.f32 %v3428, %v3589
    %v3659 = vadd.f32 %v3429, %v3591
    %v3660 = vadd.f32 %v3430, %v3642
    %v3661 = vadd.f32 %v3431, %v3540
    %v3662 = vadd.f32 %v3432, %v3542
    %v3663 = vadd.f32 %v3433, %v3593
    %v3664 = vadd.f32 %v3434, %v3595
    %v3665 = vadd.f32 %v3435, %v3645
    %v3666 = vadd.f32 %v3436, %v3546
    %v3667 = vadd.f32 %v3437, %v3548
    %v3668 = vadd.f32 %v3438, %v3599
    %v3669 = vadd.f32 %v3439, %v3601
    %v3670 = vadd.f32 %v3440, %v3650
    %v3671 = vadd.f32 %v3441, %v3550
    %v3672 = vadd.f32 %v3442, %v3552
    %v3673 = vadd.f32 %v3443, %v3603
    %v3674 = vadd.f32 %v3444, %v3605
    %v3675 = vadd.f32 %v3445, %v3653
    %3676 = vrot.lane.b32.xlu0 %v2342, 97
    %v3677 = vpop.permute.xlu0 %3676
    %3678 = vrot.lane.b32.xlu0 %v2347, 97
    %v3679 = vpop.permute.xlu0 %3678
    %3680 = vrot.lane.b32.xlu0 %v2343, 97
    %v3681 = vpop.permute.xlu0 %3680
    %3682 = vrot.lane.b32.xlu0 %v2348, 97
    %v3683 = vpop.permute.xlu0 %3682
    %3684 = vrot.lane.b32.xlu0 %v2344, 97
    %v3685 = vpop.permute.xlu0 %3684
    %v3686 = vsel %vm1380, %v3683, %v3685
    %v3687 = vsel %vm1380, %v3681, %v3683
    %v3688 = vsel %vm1380, %v3679, %v3681
    %v3689 = vsel %vm1380, %v3677, %v3679
    %v3690 = vsel %vm1380, %v3685, %v3677
    %v3691 = vld [vmem:[%s1386] sm:$0xf]
    %v3692 = vld [vmem:[%s1386 + $0x4] sm:$0xf]
    %v3693 = vld [vmem:[%s1386 + $0x8] sm:$0xf]
    %v3694 = vld [vmem:[%s1386 + $0xc] sm:$0xf]
    %v3695 = vpack.c.bf16 %v3689, %v3689
    %v3696 = vpack.c.bf16 %v3688, %v3688
    %v3697 = vpack.c.bf16 %v3687, %v3687
    %v3698 = vpack.c.bf16 %v3686, %v3686
    %v3699 = vpack.c.bf16 %v3690, %v3690
    %v3704 = vunpack.c.l.b16 %v3691
    %v3705 = vunpack.c.l.b16 %v3692
    %v3706 = vunpack.c.l.b16 %v3693
    %v3707 = vunpack.c.l.b16 %v3694
    %v3708 = vpack.c.b16 %v3705, %v3704
    %v3709 = vpack.c.b16 %v3707, %v3706
    %v3711 = vsel %vm94, %v3708, 0
    %v3714 = vsel %vm94, %v3709, 0
    %v3717 = vsel %vm101, %v3695, 0
    %v3720 = vsel %vm101, %v3696, 0
    %v3723 = vsel %vm101, %v3697, 0
    %v3726 = vsel %vm101, %v3698, 0
    %v3729 = vsel %vm101, %v3699, 0
    %3731 = vmatprep.subr.bf16.mxu0 0
    %3732 = vmatpush1.bf16.msra.mxu0 0
    %3733 = vmatprep.subr.bf16.mxu0 0
    %3734 = vmatpush1.bf16.msra.mxu0 0
    %3735 = vmatprep.subr.bf16.mxu0 0
    %3736 = vmatpush1.bf16.msra.mxu0 0
    %3737 = vmatprep.subr.bf16.mxu0 0
    %3738 = vmatpush1.bf16.msra.mxu0 0
    %3739 = vmatprep.subr.bf16.mxu0 0
    %3740 = vmatpush1.bf16.msra.mxu0 0
    %3741 = vmatprep.subr.bf16.mxu0 0
    %3742 = vmatpush1.bf16.msra.mxu0 0
    %3743 = vmatprep.subr.bf16.mxu0 0
    %3744 = vmatpush1.bf16.msra.mxu0 0
    %3745 = vmatprep.subr.bf16.mxu0 %v3720
    %3746 = vmatpush1.bf16.msra.mxu0 %v3717
    %3747 = vmatprep.subr.bf16.mxu0 0
    %3748 = vmatpush2.bf16.msra.mxu0 0
    %3749 = vmatprep.subr.bf16.mxu0 0
    %3750 = vmatpush2.bf16.msra.mxu0 0
    %3751 = vmatprep.subr.bf16.mxu0 0
    %3752 = vmatpush2.bf16.msra.mxu0 0
    %3753 = vmatprep.subr.bf16.mxu0 0
    %3754 = vmatpush2.bf16.msra.mxu0 0
    %3755 = vmatprep.subr.bf16.mxu0 0
    %3756 = vmatpush2.bf16.msra.mxu0 0
    %3757 = vmatprep.subr.bf16.mxu0 0
    %3758 = vmatpush2.bf16.msra.mxu0 0
    %3759 = vmatprep.subr.bf16.mxu0 0
    %3760 = vmatpush2.bf16.msra.mxu0 0
    %3761 = vmatprep.subr.bf16.mxu0 0
    %3762 = vmatpush2.bf16.msra.mxu0 0
    %3763 = vmatprep.mubr.bf16.mxu0 0
    %3764 = vmatmul.mubr.bf16.gmra.mxu0 %v3711
    %v3765 = vpop.f32.mrf.mxu0
    %v3766 = vadd.f32 0.0, %v3765
    %v3767 = vpop.f32.mrf.mxu0
    %v3768 = vadd.f32 0.0, %v3767
    %v3769 = vpop.f32.mrf.mxu0
    %v3770 = vadd.f32 0.0, %v3769
    %v3771 = vpop.f32.mrf.mxu0
    %v3772 = vadd.f32 0.0, %v3771
    %3773 = vmatprep.mubr.bf16.mxu0 0
    %3774 = vmatmul.mubr.bf16.gmra.mxu0 %v3714
    %v3775 = vpop.f32.mrf.mxu0
    %v3776 = vadd.f32 0.0, %v3775
    %v3777 = vpop.f32.mrf.mxu0
    %v3778 = vadd.f32 0.0, %v3777
    %v3779 = vpop.f32.mrf.mxu0
    %v3780 = vadd.f32 0.0, %v3779
    %v3781 = vpop.f32.mrf.mxu0
    %v3782 = vadd.f32 0.0, %v3781
    %3783 = vdwg.mxu0
    %3784 = vmatprep.subr.bf16.mxu0 0
    %3785 = vmatpush1.bf16.msra.mxu0 0
    %3786 = vmatprep.subr.bf16.mxu0 0
    %3787 = vmatpush1.bf16.msra.mxu0 0
    %3788 = vmatprep.subr.bf16.mxu0 0
    %3789 = vmatpush1.bf16.msra.mxu0 0
    %3790 = vmatprep.subr.bf16.mxu0 0
    %3791 = vmatpush1.bf16.msra.mxu0 0
    %3792 = vmatprep.subr.bf16.mxu0 0
    %3793 = vmatpush1.bf16.msra.mxu0 0
    %3794 = vmatprep.subr.bf16.mxu0 0
    %3795 = vmatpush1.bf16.msra.mxu0 0
    %3796 = vmatprep.subr.bf16.mxu0 0
    %3797 = vmatpush1.bf16.msra.mxu0 0
    %3798 = vmatprep.subr.bf16.mxu0 %v3726
    %3799 = vmatpush1.bf16.msra.mxu0 %v3723
    %3800 = vmatprep.subr.bf16.mxu0 0
    %3801 = vmatpush2.bf16.msra.mxu0 0
    %3802 = vmatprep.subr.bf16.mxu0 0
    %3803 = vmatpush2.bf16.msra.mxu0 0
    %3804 = vmatprep.subr.bf16.mxu0 0
    %3805 = vmatpush2.bf16.msra.mxu0 0
    %3806 = vmatprep.subr.bf16.mxu0 0
    %3807 = vmatpush2.bf16.msra.mxu0 0
    %3808 = vmatprep.subr.bf16.mxu0 0
    %3809 = vmatpush2.bf16.msra.mxu0 0
    %3810 = vmatprep.subr.bf16.mxu0 0
    %3811 = vmatpush2.bf16.msra.mxu0 0
    %3812 = vmatprep.subr.bf16.mxu0 0
    %3813 = vmatpush2.bf16.msra.mxu0 0
    %3814 = vmatprep.subr.bf16.mxu0 0
    %3815 = vmatpush2.bf16.msra.mxu0 0
    %3816 = vmatprep.mubr.bf16.mxu0 0
    %3817 = vmatmul.mubr.bf16.gmra.mxu0 %v3711
    %v3818 = vpop.f32.mrf.mxu0
    %v3819 = vadd.f32 0.0, %v3818
    %v3820 = vpop.f32.mrf.mxu0
    %v3821 = vadd.f32 0.0, %v3820
    %v3822 = vpop.f32.mrf.mxu0
    %v3823 = vadd.f32 0.0, %v3822
    %v3824 = vpop.f32.mrf.mxu0
    %v3825 = vadd.f32 0.0, %v3824
    %3826 = vmatprep.mubr.bf16.mxu0 0
    %3827 = vmatmul.mubr.bf16.gmra.mxu0 %v3714
    %v3828 = vpop.f32.mrf.mxu0
    %v3829 = vadd.f32 0.0, %v3828
    %v3830 = vpop.f32.mrf.mxu0
    %v3831 = vadd.f32 0.0, %v3830
    %v3832 = vpop.f32.mrf.mxu0
    %v3833 = vadd.f32 0.0, %v3832
    %v3834 = vpop.f32.mrf.mxu0
    %v3835 = vadd.f32 0.0, %v3834
    %3836 = vdwg.mxu0
    %3837 = vmatprep.subr.bf16.mxu0 0
    %3838 = vmatpush1.bf16.msra.mxu0 0
    %3839 = vmatprep.subr.bf16.mxu0 0
    %3840 = vmatpush1.bf16.msra.mxu0 0
    %3841 = vmatprep.subr.bf16.mxu0 0
    %3842 = vmatpush1.bf16.msra.mxu0 0
    %3843 = vmatprep.subr.bf16.mxu0 0
    %3844 = vmatpush1.bf16.msra.mxu0 0
    %3845 = vmatprep.subr.bf16.mxu0 0
    %3846 = vmatpush1.bf16.msra.mxu0 0
    %3847 = vmatprep.subr.bf16.mxu0 0
    %3848 = vmatpush1.bf16.msra.mxu0 0
    %3849 = vmatprep.subr.bf16.mxu0 0
    %3850 = vmatpush1.bf16.msra.mxu0 0
    %3851 = vmatprep.subr.bf16.mxu0 0
    %3852 = vmatpush1.bf16.msra.mxu0 %v3729
    %3853 = vmatprep.subr.bf16.mxu0 0
    %3854 = vmatpush2.bf16.msra.mxu0 0
    %3855 = vmatprep.subr.bf16.mxu0 0
    %3856 = vmatpush2.bf16.msra.mxu0 0
    %3857 = vmatprep.subr.bf16.mxu0 0
    %3858 = vmatpush2.bf16.msra.mxu0 0
    %3859 = vmatprep.subr.bf16.mxu0 0
    %3860 = vmatpush2.bf16.msra.mxu0 0
    %3861 = vmatprep.subr.bf16.mxu0 0
    %3862 = vmatpush2.bf16.msra.mxu0 0
    %3863 = vmatprep.subr.bf16.mxu0 0
    %3864 = vmatpush2.bf16.msra.mxu0 0
    %3865 = vmatprep.subr.bf16.mxu0 0
    %3866 = vmatpush2.bf16.msra.mxu0 0
    %3867 = vmatprep.subr.bf16.mxu0 0
    %3868 = vmatpush2.bf16.msra.mxu0 0
    %3869 = vmatprep.mubr.bf16.mxu0 0
    %3870 = vmatmul.mubr.bf16.gmra.mxu0 %v3711
    %v3871 = vpop.f32.mrf.mxu0
    %v3872 = vadd.f32 0.0, %v3871
    %v3873 = vpop.f32.mrf.mxu0
    %v3874 = vpop.f32.mrf.mxu0
    %v3875 = vadd.f32 0.0, %v3874
    %v3876 = vpop.f32.mrf.mxu0
    %3877 = vmatprep.mubr.bf16.mxu0 0
    %3878 = vmatmul.mubr.bf16.gmra.mxu0 %v3714
    %v3879 = vpop.f32.mrf.mxu0
    %v3880 = vadd.f32 0.0, %v3879
    %v3881 = vpop.f32.mrf.mxu0
    %v3882 = vpop.f32.mrf.mxu0
    %v3883 = vadd.f32 0.0, %v3882
    %v3884 = vpop.f32.mrf.mxu0
    %3885 = vdwg.mxu0
    %v3886 = vadd.f32 %v3656, %v3766
    %v3887 = vadd.f32 %v3657, %v3768
    %v3888 = vadd.f32 %v3658, %v3819
    %v3889 = vadd.f32 %v3659, %v3821
    %v3890 = vadd.f32 %v3660, %v3872
    %v3891 = vadd.f32 %v3661, %v3770
    %v3892 = vadd.f32 %v3662, %v3772
    %v3893 = vadd.f32 %v3663, %v3823
    %v3894 = vadd.f32 %v3664, %v3825
    %v3895 = vadd.f32 %v3665, %v3875
    %v3896 = vadd.f32 %v3666, %v3776
    %v3897 = vadd.f32 %v3667, %v3778
    %v3898 = vadd.f32 %v3668, %v3829
    %v3899 = vadd.f32 %v3669, %v3831
    %v3900 = vadd.f32 %v3670, %v3880
    %v3901 = vadd.f32 %v3671, %v3780
    %v3902 = vadd.f32 %v3672, %v3782
    %v3903 = vadd.f32 %v3673, %v3833
    %v3904 = vadd.f32 %v3674, %v3835
    %v3905 = vadd.f32 %v3675, %v3883
    %3906 = vrot.lane.b32.xlu0 %v2342, 96
    %v3907 = vpop.permute.xlu0 %3906
    %3908 = vrot.lane.b32.xlu0 %v2347, 96
    %v3909 = vpop.permute.xlu0 %3908
    %3910 = vrot.lane.b32.xlu0 %v2343, 96
    %v3911 = vpop.permute.xlu0 %3910
    %3912 = vrot.lane.b32.xlu0 %v2348, 96
    %v3913 = vpop.permute.xlu0 %3912
    %3914 = vrot.lane.b32.xlu0 %v2344, 96
    %v3915 = vpop.permute.xlu0 %3914
    %v3916 = vsel %vm1612, %v3913, %v3915
    %v3917 = vsel %vm1612, %v3911, %v3913
    %v3918 = vsel %vm1612, %v3909, %v3911
    %v3919 = vsel %vm1612, %v3907, %v3909
    %v3920 = vsel %vm1612, %v3915, %v3907
    %v3921 = vld [vmem:[%s1618] sm:$0xf]
    %v3922 = vld [vmem:[%s1618 + $0x4] sm:$0xf]
    %v3923 = vld [vmem:[%s1618 + $0x8] sm:$0xf]
    %v3924 = vld [vmem:[%s1618 + $0xc] sm:$0xf]
    %v3925 = vpack.c.bf16 %v3919, %v3919
    %v3926 = vpack.c.bf16 %v3918, %v3918
    %v3927 = vpack.c.bf16 %v3917, %v3917
    %v3928 = vpack.c.bf16 %v3916, %v3916
    %v3929 = vpack.c.bf16 %v3920, %v3920
    %v3934 = vunpack.c.l.b16 %v3921
    %v3935 = vunpack.c.l.b16 %v3922
    %v3936 = vunpack.c.l.b16 %v3923
    %v3937 = vunpack.c.l.b16 %v3924
    %v3938 = vpack.c.b16 %v3935, %v3934
    %v3939 = vpack.c.b16 %v3937, %v3936
    %v3941 = vsel %vm94, %v3938, 0
    %v3944 = vsel %vm94, %v3939, 0
    %v3947 = vsel %vm101, %v3925, 0
    %v3950 = vsel %vm101, %v3926, 0
    %v3953 = vsel %vm101, %v3927, 0
    %v3956 = vsel %vm101, %v3928, 0
    %v3959 = vsel %vm101, %v3929, 0
    %3961 = vmatprep.subr.bf16.mxu0 0
    %3962 = vmatpush1.bf16.msra.mxu0 0
    %3963 = vmatprep.subr.bf16.mxu0 0
    %3964 = vmatpush1.bf16.msra.mxu0 0
    %3965 = vmatprep.subr.bf16.mxu0 0
    %3966 = vmatpush1.bf16.msra.mxu0 0
    %3967 = vmatprep.subr.bf16.mxu0 0
    %3968 = vmatpush1.bf16.msra.mxu0 0
    %3969 = vmatprep.subr.bf16.mxu0 0
    %3970 = vmatpush1.bf16.msra.mxu0 0
    %3971 = vmatprep.subr.bf16.mxu0 0
    %3972 = vmatpush1.bf16.msra.mxu0 0
    %3973 = vmatprep.subr.bf16.mxu0 0
    %3974 = vmatpush1.bf16.msra.mxu0 0
    %3975 = vmatprep.subr.bf16.mxu0 %v3950
    %3976 = vmatpush1.bf16.msra.mxu0 %v3947
    %3977 = vmatprep.subr.bf16.mxu0 0
    %3978 = vmatpush2.bf16.msra.mxu0 0
    %3979 = vmatprep.subr.bf16.mxu0 0
    %3980 = vmatpush2.bf16.msra.mxu0 0
    %3981 = vmatprep.subr.bf16.mxu0 0
    %3982 = vmatpush2.bf16.msra.mxu0 0
    %3983 = vmatprep.subr.bf16.mxu0 0
    %3984 = vmatpush2.bf16.msra.mxu0 0
    %3985 = vmatprep.subr.bf16.mxu0 0
    %3986 = vmatpush2.bf16.msra.mxu0 0
    %3987 = vmatprep.subr.bf16.mxu0 0
    %3988 = vmatpush2.bf16.msra.mxu0 0
    %3989 = vmatprep.subr.bf16.mxu0 0
    %3990 = vmatpush2.bf16.msra.mxu0 0
    %3991 = vmatprep.subr.bf16.mxu0 0
    %3992 = vmatpush2.bf16.msra.mxu0 0
    %3993 = vmatprep.mubr.bf16.mxu0 0
    %3994 = vmatmul.mubr.bf16.gmra.mxu0 %v3941
    %v3995 = vpop.f32.mrf.mxu0
    %v3996 = vadd.f32 0.0, %v3995
    %v3997 = vpop.f32.mrf.mxu0
    %v3998 = vadd.f32 0.0, %v3997
    %v3999 = vpop.f32.mrf.mxu0
    %v4000 = vadd.f32 0.0, %v3999
    %v4001 = vpop.f32.mrf.mxu0
    %v4002 = vadd.f32 0.0, %v4001
    %4003 = vmatprep.mubr.bf16.mxu0 0
    %4004 = vmatmul.mubr.bf16.gmra.mxu0 %v3944
    %v4005 = vpop.f32.mrf.mxu0
    %v4006 = vadd.f32 0.0, %v4005
    %v4007 = vpop.f32.mrf.mxu0
    %v4008 = vadd.f32 0.0, %v4007
    %v4009 = vpop.f32.mrf.mxu0
    %v4010 = vadd.f32 0.0, %v4009
    %v4011 = vpop.f32.mrf.mxu0
    %v4012 = vadd.f32 0.0, %v4011
    %4013 = vdwg.mxu0
    %4014 = vmatprep.subr.bf16.mxu0 0
    %4015 = vmatpush1.bf16.msra.mxu0 0
    %4016 = vmatprep.subr.bf16.mxu0 0
    %4017 = vmatpush1.bf16.msra.mxu0 0
    %4018 = vmatprep.subr.bf16.mxu0 0
    %4019 = vmatpush1.bf16.msra.mxu0 0
    %4020 = vmatprep.subr.bf16.mxu0 0
    %4021 = vmatpush1.bf16.msra.mxu0 0
    %4022 = vmatprep.subr.bf16.mxu0 0
    %4023 = vmatpush1.bf16.msra.mxu0 0
    %4024 = vmatprep.subr.bf16.mxu0 0
    %4025 = vmatpush1.bf16.msra.mxu0 0
    %4026 = vmatprep.subr.bf16.mxu0 0
    %4027 = vmatpush1.bf16.msra.mxu0 0
    %4028 = vmatprep.subr.bf16.mxu0 %v3956
    %4029 = vmatpush1.bf16.msra.mxu0 %v3953
    %4030 = vmatprep.subr.bf16.mxu0 0
    %4031 = vmatpush2.bf16.msra.mxu0 0
    %4032 = vmatprep.subr.bf16.mxu0 0
    %4033 = vmatpush2.bf16.msra.mxu0 0
    %4034 = vmatprep.subr.bf16.mxu0 0
    %4035 = vmatpush2.bf16.msra.mxu0 0
    %4036 = vmatprep.subr.bf16.mxu0 0
    %4037 = vmatpush2.bf16.msra.mxu0 0
    %4038 = vmatprep.subr.bf16.mxu0 0
    %4039 = vmatpush2.bf16.msra.mxu0 0
    %4040 = vmatprep.subr.bf16.mxu0 0
    %4041 = vmatpush2.bf16.msra.mxu0 0
    %4042 = vmatprep.subr.bf16.mxu0 0
    %4043 = vmatpush2.bf16.msra.mxu0 0
    %4044 = vmatprep.subr.bf16.mxu0 0
    %4045 = vmatpush2.bf16.msra.mxu0 0
    %4046 = vmatprep.mubr.bf16.mxu0 0
    %4047 = vmatmul.mubr.bf16.gmra.mxu0 %v3941
    %v4048 = vpop.f32.mrf.mxu0
    %v4049 = vadd.f32 0.0, %v4048
    %v4050 = vpop.f32.mrf.mxu0
    %v4051 = vadd.f32 0.0, %v4050
    %v4052 = vpop.f32.mrf.mxu0
    %v4053 = vadd.f32 0.0, %v4052
    %v4054 = vpop.f32.mrf.mxu0
    %v4055 = vadd.f32 0.0, %v4054
    %4056 = vmatprep.mubr.bf16.mxu0 0
    %4057 = vmatmul.mubr.bf16.gmra.mxu0 %v3944
    %v4058 = vpop.f32.mrf.mxu0
    %v4059 = vadd.f32 0.0, %v4058
    %v4060 = vpop.f32.mrf.mxu0
    %v4061 = vadd.f32 0.0, %v4060
    %v4062 = vpop.f32.mrf.mxu0
    %v4063 = vadd.f32 0.0, %v4062
    %v4064 = vpop.f32.mrf.mxu0
    %v4065 = vadd.f32 0.0, %v4064
    %4066 = vdwg.mxu0
    %4067 = vmatprep.subr.bf16.mxu0 0
    %4068 = vmatpush1.bf16.msra.mxu0 0
    %4069 = vmatprep.subr.bf16.mxu0 0
    %4070 = vmatpush1.bf16.msra.mxu0 0
    %4071 = vmatprep.subr.bf16.mxu0 0
    %4072 = vmatpush1.bf16.msra.mxu0 0
    %4073 = vmatprep.subr.bf16.mxu0 0
    %4074 = vmatpush1.bf16.msra.mxu0 0
    %4075 = vmatprep.subr.bf16.mxu0 0
    %4076 = vmatpush1.bf16.msra.mxu0 0
    %4077 = vmatprep.subr.bf16.mxu0 0
    %4078 = vmatpush1.bf16.msra.mxu0 0
    %4079 = vmatprep.subr.bf16.mxu0 0
    %4080 = vmatpush1.bf16.msra.mxu0 0
    %4081 = vmatprep.subr.bf16.mxu0 0
    %4082 = vmatpush1.bf16.msra.mxu0 %v3959
    %4083 = vmatprep.subr.bf16.mxu0 0
    %4084 = vmatpush2.bf16.msra.mxu0 0
    %4085 = vmatprep.subr.bf16.mxu0 0
    %4086 = vmatpush2.bf16.msra.mxu0 0
    %4087 = vmatprep.subr.bf16.mxu0 0
    %4088 = vmatpush2.bf16.msra.mxu0 0
    %4089 = vmatprep.subr.bf16.mxu0 0
    %4090 = vmatpush2.bf16.msra.mxu0 0
    %4091 = vmatprep.subr.bf16.mxu0 0
    %4092 = vmatpush2.bf16.msra.mxu0 0
    %4093 = vmatprep.subr.bf16.mxu0 0
    %4094 = vmatpush2.bf16.msra.mxu0 0
    %4095 = vmatprep.subr.bf16.mxu0 0
    %4096 = vmatpush2.bf16.msra.mxu0 0
    %4097 = vmatprep.subr.bf16.mxu0 0
    %4098 = vmatpush2.bf16.msra.mxu0 0
    %4099 = vmatprep.mubr.bf16.mxu0 0
    %4100 = vmatmul.mubr.bf16.gmra.mxu0 %v3941
    %v4101 = vpop.f32.mrf.mxu0
    %v4102 = vadd.f32 0.0, %v4101
    %v4103 = vpop.f32.mrf.mxu0
    %v4104 = vpop.f32.mrf.mxu0
    %v4105 = vadd.f32 0.0, %v4104
    %v4106 = vpop.f32.mrf.mxu0
    %4107 = vmatprep.mubr.bf16.mxu0 0
    %4108 = vmatmul.mubr.bf16.gmra.mxu0 %v3944
    %v4109 = vpop.f32.mrf.mxu0
    %v4110 = vadd.f32 0.0, %v4109
    %v4111 = vpop.f32.mrf.mxu0
    %v4112 = vpop.f32.mrf.mxu0
    %v4113 = vadd.f32 0.0, %v4112
    %v4114 = vpop.f32.mrf.mxu0
    %4115 = vdwg.mxu0
    %v4116 = vadd.f32 %v3886, %v3996
    %v4117 = vadd.f32 %v3887, %v3998
    %v4118 = vadd.f32 %v3888, %v4049
    %v4119 = vadd.f32 %v3889, %v4051
    %v4120 = vadd.f32 %v3890, %v4102
    %v4121 = vadd.f32 %v3891, %v4000
    %v4122 = vadd.f32 %v3892, %v4002
    %v4123 = vadd.f32 %v3893, %v4053
    %v4124 = vadd.f32 %v3894, %v4055
    %v4125 = vadd.f32 %v3895, %v4105
    %v4126 = vadd.f32 %v3896, %v4006
    %v4127 = vadd.f32 %v3897, %v4008
    %v4128 = vadd.f32 %v3898, %v4059
    %v4129 = vadd.f32 %v3899, %v4061
    %v4130 = vadd.f32 %v3900, %v4110
    %v4131 = vadd.f32 %v3901, %v4010
    %v4132 = vadd.f32 %v3902, %v4012
    %v4133 = vadd.f32 %v3903, %v4063
    %v4134 = vadd.f32 %v3904, %v4065
    %v4135 = vadd.f32 %v3905, %v4113
    %4136 = vrot.lane.b32.xlu0 %v2342, 95
    %v4137 = vpop.permute.xlu0 %4136
    %4138 = vrot.lane.b32.xlu0 %v2347, 95
    %v4139 = vpop.permute.xlu0 %4138
    %4140 = vrot.lane.b32.xlu0 %v2343, 95
    %v4141 = vpop.permute.xlu0 %4140
    %4142 = vrot.lane.b32.xlu0 %v2348, 95
    %v4143 = vpop.permute.xlu0 %4142
    %4144 = vrot.lane.b32.xlu0 %v2344, 95
    %v4145 = vpop.permute.xlu0 %4144
    %v4146 = vsel %vm1844, %v4143, %v4145
    %v4147 = vsel %vm1844, %v4141, %v4143
    %v4148 = vsel %vm1844, %v4139, %v4141
    %v4149 = vsel %vm1844, %v4137, %v4139
    %v4150 = vsel %vm1844, %v4145, %v4137
    %v4151 = vld [vmem:[%s1850] sm:$0xf]
    %v4152 = vld [vmem:[%s1850 + $0x4] sm:$0xf]
    %v4153 = vld [vmem:[%s1850 + $0x8] sm:$0xf]
    %v4154 = vld [vmem:[%s1850 + $0xc] sm:$0xf]
    %v4155 = vpack.c.bf16 %v4149, %v4149
    %v4156 = vpack.c.bf16 %v4148, %v4148
    %v4157 = vpack.c.bf16 %v4147, %v4147
    %v4158 = vpack.c.bf16 %v4146, %v4146
    %v4159 = vpack.c.bf16 %v4150, %v4150
    %v4164 = vunpack.c.l.b16 %v4151
    %v4165 = vunpack.c.l.b16 %v4152
    %v4166 = vunpack.c.l.b16 %v4153
    %v4167 = vunpack.c.l.b16 %v4154
    %v4168 = vpack.c.b16 %v4165, %v4164
    %v4169 = vpack.c.b16 %v4167, %v4166
    %v4171 = vsel %vm94, %v4168, 0
    %v4174 = vsel %vm94, %v4169, 0
    %v4177 = vsel %vm101, %v4155, 0
    %v4180 = vsel %vm101, %v4156, 0
    %v4183 = vsel %vm101, %v4157, 0
    %v4186 = vsel %vm101, %v4158, 0
    %v4189 = vsel %vm101, %v4159, 0
    %4191 = vmatprep.subr.bf16.mxu0 0
    %4192 = vmatpush1.bf16.msra.mxu0 0
    %4193 = vmatprep.subr.bf16.mxu0 0
    %4194 = vmatpush1.bf16.msra.mxu0 0
    %4195 = vmatprep.subr.bf16.mxu0 0
    %4196 = vmatpush1.bf16.msra.mxu0 0
    %4197 = vmatprep.subr.bf16.mxu0 0
    %4198 = vmatpush1.bf16.msra.mxu0 0
    %4199 = vmatprep.subr.bf16.mxu0 0
    %4200 = vmatpush1.bf16.msra.mxu0 0
    %4201 = vmatprep.subr.bf16.mxu0 0
    %4202 = vmatpush1.bf16.msra.mxu0 0
    %4203 = vmatprep.subr.bf16.mxu0 0
    %4204 = vmatpush1.bf16.msra.mxu0 0
    %4205 = vmatprep.subr.bf16.mxu0 %v4180
    %4206 = vmatpush1.bf16.msra.mxu0 %v4177
    %4207 = vmatprep.subr.bf16.mxu0 0
    %4208 = vmatpush2.bf16.msra.mxu0 0
    %4209 = vmatprep.subr.bf16.mxu0 0
    %4210 = vmatpush2.bf16.msra.mxu0 0
    %4211 = vmatprep.subr.bf16.mxu0 0
    %4212 = vmatpush2.bf16.msra.mxu0 0
    %4213 = vmatprep.subr.bf16.mxu0 0
    %4214 = vmatpush2.bf16.msra.mxu0 0
    %4215 = vmatprep.subr.bf16.mxu0 0
    %4216 = vmatpush2.bf16.msra.mxu0 0
    %4217 = vmatprep.subr.bf16.mxu0 0
    %4218 = vmatpush2.bf16.msra.mxu0 0
    %4219 = vmatprep.subr.bf16.mxu0 0
    %4220 = vmatpush2.bf16.msra.mxu0 0
    %4221 = vmatprep.subr.bf16.mxu0 0
    %4222 = vmatpush2.bf16.msra.mxu0 0
    %4223 = vmatprep.mubr.bf16.mxu0 0
    %4224 = vmatmul.mubr.bf16.gmra.mxu0 %v4171
    %v4225 = vpop.f32.mrf.mxu0
    %v4226 = vadd.f32 0.0, %v4225
    %v4227 = vpop.f32.mrf.mxu0
    %v4228 = vadd.f32 0.0, %v4227
    %v4229 = vpop.f32.mrf.mxu0
    %v4230 = vadd.f32 0.0, %v4229
    %v4231 = vpop.f32.mrf.mxu0
    %v4232 = vadd.f32 0.0, %v4231
    %4233 = vmatprep.mubr.bf16.mxu0 0
    %4234 = vmatmul.mubr.bf16.gmra.mxu0 %v4174
    %v4235 = vpop.f32.mrf.mxu0
    %v4236 = vadd.f32 0.0, %v4235
    %v4237 = vpop.f32.mrf.mxu0
    %v4238 = vadd.f32 0.0, %v4237
    %v4239 = vpop.f32.mrf.mxu0
    %v4240 = vadd.f32 0.0, %v4239
    %v4241 = vpop.f32.mrf.mxu0
    %v4242 = vadd.f32 0.0, %v4241
    %4243 = vdwg.mxu0
    %4244 = vmatprep.subr.bf16.mxu0 0
    %4245 = vmatpush1.bf16.msra.mxu0 0
    %4246 = vmatprep.subr.bf16.mxu0 0
    %4247 = vmatpush1.bf16.msra.mxu0 0
    %4248 = vmatprep.subr.bf16.mxu0 0
    %4249 = vmatpush1.bf16.msra.mxu0 0
    %4250 = vmatprep.subr.bf16.mxu0 0
    %4251 = vmatpush1.bf16.msra.mxu0 0
    %4252 = vmatprep.subr.bf16.mxu0 0
    %4253 = vmatpush1.bf16.msra.mxu0 0
    %4254 = vmatprep.subr.bf16.mxu0 0
    %4255 = vmatpush1.bf16.msra.mxu0 0
    %4256 = vmatprep.subr.bf16.mxu0 0
    %4257 = vmatpush1.bf16.msra.mxu0 0
    %4258 = vmatprep.subr.bf16.mxu0 %v4186
    %4259 = vmatpush1.bf16.msra.mxu0 %v4183
    %4260 = vmatprep.subr.bf16.mxu0 0
    %4261 = vmatpush2.bf16.msra.mxu0 0
    %4262 = vmatprep.subr.bf16.mxu0 0
    %4263 = vmatpush2.bf16.msra.mxu0 0
    %4264 = vmatprep.subr.bf16.mxu0 0
    %4265 = vmatpush2.bf16.msra.mxu0 0
    %4266 = vmatprep.subr.bf16.mxu0 0
    %4267 = vmatpush2.bf16.msra.mxu0 0
    %4268 = vmatprep.subr.bf16.mxu0 0
    %4269 = vmatpush2.bf16.msra.mxu0 0
    %4270 = vmatprep.subr.bf16.mxu0 0
    %4271 = vmatpush2.bf16.msra.mxu0 0
    %4272 = vmatprep.subr.bf16.mxu0 0
    %4273 = vmatpush2.bf16.msra.mxu0 0
    %4274 = vmatprep.subr.bf16.mxu0 0
    %4275 = vmatpush2.bf16.msra.mxu0 0
    %4276 = vmatprep.mubr.bf16.mxu0 0
    %4277 = vmatmul.mubr.bf16.gmra.mxu0 %v4171
    %v4278 = vpop.f32.mrf.mxu0
    %v4279 = vadd.f32 0.0, %v4278
    %v4280 = vpop.f32.mrf.mxu0
    %v4281 = vadd.f32 0.0, %v4280
    %v4282 = vpop.f32.mrf.mxu0
    %v4283 = vadd.f32 0.0, %v4282
    %v4284 = vpop.f32.mrf.mxu0
    %v4285 = vadd.f32 0.0, %v4284
    %4286 = vmatprep.mubr.bf16.mxu0 0
    %4287 = vmatmul.mubr.bf16.gmra.mxu0 %v4174
    %v4288 = vpop.f32.mrf.mxu0
    %v4289 = vadd.f32 0.0, %v4288
    %v4290 = vpop.f32.mrf.mxu0
    %v4291 = vadd.f32 0.0, %v4290
    %v4292 = vpop.f32.mrf.mxu0
    %v4293 = vadd.f32 0.0, %v4292
    %v4294 = vpop.f32.mrf.mxu0
    %v4295 = vadd.f32 0.0, %v4294
    %4296 = vdwg.mxu0
    %4297 = vmatprep.subr.bf16.mxu0 0
    %4298 = vmatpush1.bf16.msra.mxu0 0
    %4299 = vmatprep.subr.bf16.mxu0 0
    %4300 = vmatpush1.bf16.msra.mxu0 0
    %4301 = vmatprep.subr.bf16.mxu0 0
    %4302 = vmatpush1.bf16.msra.mxu0 0
    %4303 = vmatprep.subr.bf16.mxu0 0
    %4304 = vmatpush1.bf16.msra.mxu0 0
    %4305 = vmatprep.subr.bf16.mxu0 0
    %4306 = vmatpush1.bf16.msra.mxu0 0
    %4307 = vmatprep.subr.bf16.mxu0 0
    %4308 = vmatpush1.bf16.msra.mxu0 0
    %4309 = vmatprep.subr.bf16.mxu0 0
    %4310 = vmatpush1.bf16.msra.mxu0 0
    %4311 = vmatprep.subr.bf16.mxu0 0
    %4312 = vmatpush1.bf16.msra.mxu0 %v4189
    %4313 = vmatprep.subr.bf16.mxu0 0
    %4314 = vmatpush2.bf16.msra.mxu0 0
    %4315 = vmatprep.subr.bf16.mxu0 0
    %4316 = vmatpush2.bf16.msra.mxu0 0
    %4317 = vmatprep.subr.bf16.mxu0 0
    %4318 = vmatpush2.bf16.msra.mxu0 0
    %4319 = vmatprep.subr.bf16.mxu0 0
    %4320 = vmatpush2.bf16.msra.mxu0 0
    %4321 = vmatprep.subr.bf16.mxu0 0
    %4322 = vmatpush2.bf16.msra.mxu0 0
    %4323 = vmatprep.subr.bf16.mxu0 0
    %4324 = vmatpush2.bf16.msra.mxu0 0
    %4325 = vmatprep.subr.bf16.mxu0 0
    %4326 = vmatpush2.bf16.msra.mxu0 0
    %4327 = vmatprep.subr.bf16.mxu0 0
    %4328 = vmatpush2.bf16.msra.mxu0 0
    %4329 = vmatprep.mubr.bf16.mxu0 0
    %4330 = vmatmul.mubr.bf16.gmra.mxu0 %v4171
    %v4331 = vpop.f32.mrf.mxu0
    %v4332 = vadd.f32 0.0, %v4331
    %v4333 = vpop.f32.mrf.mxu0
    %v4334 = vpop.f32.mrf.mxu0
    %v4335 = vadd.f32 0.0, %v4334
    %v4336 = vpop.f32.mrf.mxu0
    %4337 = vmatprep.mubr.bf16.mxu0 0
    %4338 = vmatmul.mubr.bf16.gmra.mxu0 %v4174
    %v4339 = vpop.f32.mrf.mxu0
    %v4340 = vadd.f32 0.0, %v4339
    %v4341 = vpop.f32.mrf.mxu0
    %v4342 = vpop.f32.mrf.mxu0
    %v4343 = vadd.f32 0.0, %v4342
    %v4344 = vpop.f32.mrf.mxu0
    %4345 = vdwg.mxu0
    %v4346 = vadd.f32 %v4116, %v4226
    %v4347 = vadd.f32 %v4117, %v4228
    %v4348 = vadd.f32 %v4118, %v4279
    %v4349 = vadd.f32 %v4119, %v4281
    %v4350 = vadd.f32 %v4120, %v4332
    %v4351 = vadd.f32 %v4121, %v4230
    %v4352 = vadd.f32 %v4122, %v4232
    %v4353 = vadd.f32 %v4123, %v4283
    %v4354 = vadd.f32 %v4124, %v4285
    %v4355 = vadd.f32 %v4125, %v4335
    %v4356 = vadd.f32 %v4126, %v4236
    %v4357 = vadd.f32 %v4127, %v4238
    %v4358 = vadd.f32 %v4128, %v4289
    %v4359 = vadd.f32 %v4129, %v4291
    %v4360 = vadd.f32 %v4130, %v4340
    %v4361 = vadd.f32 %v4131, %v4240
    %v4362 = vadd.f32 %v4132, %v4242
    %v4363 = vadd.f32 %v4133, %v4293
    %v4364 = vadd.f32 %v4134, %v4295
    %v4365 = vadd.f32 %v4135, %v4343
    %v4366 = vld [vmem:[%s2] sm:$0xff]
    %v4367 = vld [vmem:[%s2 + $0x8] sm:$0xff]
    %v4368 = vld [vmem:[%s2 + $0x10] sm:$0xff]
    %v4369 = vld [vmem:[%s2 + $0x18] sm:$0xff]
    %4371 = vset.pattern.permute.xlu0 0
    %4372 = vperm.xlu0 %4371, %v4366
    %v4373 = vpop.permute.xlu0 %4372
    %4376 = vset.pattern.permute.xlu0 0
    %4377 = vperm.xlu0 %4376, %v4367
    %v4378 = vpop.permute.xlu0 %4377
    %4381 = vset.pattern.permute.xlu0 0
    %4382 = vperm.xlu0 %4381, %v4368
    %v4383 = vpop.permute.xlu0 %4382
    %4386 = vset.pattern.permute.xlu0 0
    %4387 = vperm.xlu0 %4386, %v4369
    %v4388 = vpop.permute.xlu0 %4387
    %v4390 = vadd.f32 %v4346, %v4373
    %v4391 = vadd.f32 %v4347, %v4373
    %v4392 = vadd.f32 %v4348, %v4373
    %v4393 = vadd.f32 %v4349, %v4373
    %v4394 = vadd.f32 %v4350, %v4373
    %v4395 = vadd.f32 %v4351, %v4378
    %v4396 = vadd.f32 %v4352, %v4378
    %v4397 = vadd.f32 %v4353, %v4378
    %v4398 = vadd.f32 %v4354, %v4378
    %v4399 = vadd.f32 %v4355, %v4378
    %v4400 = vadd.f32 %v4356, %v4383
    %v4401 = vadd.f32 %v4357, %v4383
    %v4402 = vadd.f32 %v4358, %v4383
    %v4403 = vadd.f32 %v4359, %v4383
    %v4404 = vadd.f32 %v4360, %v4383
    %v4405 = vadd.f32 %v4361, %v4388
    %v4406 = vadd.f32 %v4362, %v4388
    %v4407 = vadd.f32 %v4363, %v4388
    %v4408 = vadd.f32 %v4364, %v4388
    %v4409 = vadd.f32 %v4365, %v4388
    %v4410 = vmax.f32 %v4390, 0.0
    %v4411 = vmax.f32 %v4391, 0.0
    %v4412 = vmax.f32 %v4392, 0.0
    %v4413 = vmax.f32 %v4393, 0.0
    %v4414 = vmax.f32 %v4394, 0.0
    %v4415 = vmax.f32 %v4395, 0.0
    %v4416 = vmax.f32 %v4396, 0.0
    %v4417 = vmax.f32 %v4397, 0.0
    %v4418 = vmax.f32 %v4398, 0.0
    %v4419 = vmax.f32 %v4399, 0.0
    %v4420 = vmax.f32 %v4400, 0.0
    %v4421 = vmax.f32 %v4401, 0.0
    %v4422 = vmax.f32 %v4402, 0.0
    %v4423 = vmax.f32 %v4403, 0.0
    %v4424 = vmax.f32 %v4404, 0.0
    %v4425 = vmax.f32 %v4405, 0.0
    %v4426 = vmax.f32 %v4406, 0.0
    %v4427 = vmax.f32 %v4407, 0.0
    %v4428 = vmax.f32 %v4408, 0.0
    %v4429 = vmax.f32 %v4409, 0.0
    %v4430 = vld [vmem:[%s3] sm:$0xf]
    %v4431 = vld [vmem:[%s3 + $0x4] sm:$0xf]
    %v4432 = vld [vmem:[%s3 + $0x8] sm:$0xf]
    %v4433 = vpack.c.bf16 %v4415, %v4410
    %v4434 = vpack.c.bf16 %v4416, %v4411
    %v4435 = vpack.c.bf16 %v4417, %v4412
    %v4436 = vpack.c.bf16 %v4418, %v4413
    %v4437 = vpack.c.bf16 %v4419, %v4414
    %v4438 = vpack.c.bf16 %v4425, %v4420
    %v4439 = vpack.c.bf16 %v4426, %v4421
    %v4440 = vpack.c.bf16 %v4427, %v4422
    %v4441 = vpack.c.bf16 %v4428, %v4423
    %v4442 = vpack.c.bf16 %v4429, %v4424
    %v4443 = vld [vmem:[%s4] sm:$0xff]
    %v4444 = vld [vmem:[%s4 + $0x8] sm:$0xff]
    %v4445 = vld [vmem:[%s4 + $0x10] sm:$0xff]
    %4447 = vset.pattern.permute.xlu0 0
    %4448 = vperm.xlu0 %4447, %v4443
    %v4449 = vpop.permute.xlu0 %4448
    %4452 = vset.pattern.permute.xlu0 0
    %4453 = vperm.xlu0 %4452, %v4444
    %v4454 = vpop.permute.xlu0 %4453
    %4457 = vset.pattern.permute.xlu0 0
    %4458 = vperm.xlu0 %4457, %v4445
    %v4459 = vpop.permute.xlu0 %4458
    %v4464 = vunpack.c.l.b16 %v4430
    %v4465 = vunpack.c.l.b16 %v4431
    %v4466 = vunpack.c.l.b16 %v4432
    %v4467 = vpack.c.b16 %v4465, %v4464
    %v4468 = vpack.c.b16 %v4466, %v4466
    %v4470 = vsel %vm2169, %v4467, 0
    %v4473 = vsel %vm2169, %v4468, 0
    %4475 = vmatprep.subr.bf16.mxu0 0
    %4476 = vmatpush1.bf16.msra.mxu0 0
    %4477 = vmatprep.subr.bf16.mxu0 0
    %4478 = vmatpush1.bf16.msra.mxu0 0
    %4479 = vmatprep.subr.bf16.mxu0 0
    %4480 = vmatpush1.bf16.msra.mxu0 0
    %4481 = vmatprep.subr.bf16.mxu0 0
    %4482 = vmatpush1.bf16.msra.mxu0 0
    %4483 = vmatprep.subr.bf16.mxu0 0
    %4484 = vmatpush1.bf16.msra.mxu0 0
    %4485 = vmatprep.subr.bf16.mxu0 0
    %4486 = vmatpush1.bf16.msra.mxu0 0
    %4487 = vmatprep.subr.bf16.mxu0 %v4439
    %4488 = vmatpush1.bf16.msra.mxu0 %v4438
    %4489 = vmatprep.subr.bf16.mxu0 %v4434
    %4490 = vmatpush1.bf16.msra.mxu0 %v4433
    %4491 = vmatprep.subr.bf16.mxu0 0
    %4492 = vmatpush2.bf16.msra.mxu0 0
    %4493 = vmatprep.subr.bf16.mxu0 0
    %4494 = vmatpush2.bf16.msra.mxu0 0
    %4495 = vmatprep.subr.bf16.mxu0 0
    %4496 = vmatpush2.bf16.msra.mxu0 0
    %4497 = vmatprep.subr.bf16.mxu0 0
    %4498 = vmatpush2.bf16.msra.mxu0 0
    %4499 = vmatprep.subr.bf16.mxu0 0
    %4500 = vmatpush2.bf16.msra.mxu0 0
    %4501 = vmatprep.subr.bf16.mxu0 0
    %4502 = vmatpush2.bf16.msra.mxu0 0
    %4503 = vmatprep.subr.bf16.mxu0 0
    %4504 = vmatpush2.bf16.msra.mxu0 0
    %4505 = vmatprep.subr.bf16.mxu0 0
    %4506 = vmatpush2.bf16.msra.mxu0 0
    %4507 = vmatprep.mubr.bf16.mxu0 0
    %4508 = vmatmul.mubr.bf16.gmra.mxu0 %v4470
    %v4509 = vpop.f32.mrf.mxu0
    %v4510 = vadd.f32 %v4449, %v4509
    %v4511 = vpop.f32.mrf.mxu0
    %v4512 = vadd.f32 %v4449, %v4511
    %v4513 = vpop.f32.mrf.mxu0
    %v4514 = vadd.f32 %v4454, %v4513
    %v4515 = vpop.f32.mrf.mxu0
    %v4516 = vadd.f32 %v4454, %v4515
    %4517 = vmatprep.mubr.bf16.mxu0 0
    %4518 = vmatmul.mubr.bf16.gmra.mxu0 %v4473
    %v4519 = vpop.f32.mrf.mxu0
    %v4520 = vadd.f32 %v4459, %v4519
    %v4521 = vpop.f32.mrf.mxu0
    %v4522 = vadd.f32 %v4459, %v4521
    %v4523 = vpop.f32.mrf.mxu0
    %v4524 = vpop.f32.mrf.mxu0
    %4525 = vdwg.mxu0
    %4526 = vmatprep.subr.bf16.mxu0 0
    %4527 = vmatpush1.bf16.msra.mxu0 0
    %4528 = vmatprep.subr.bf16.mxu0 0
    %4529 = vmatpush1.bf16.msra.mxu0 0
    %4530 = vmatprep.subr.bf16.mxu0 0
    %4531 = vmatpush1.bf16.msra.mxu0 0
    %4532 = vmatprep.subr.bf16.mxu0 0
    %4533 = vmatpush1.bf16.msra.mxu0 0
    %4534 = vmatprep.subr.bf16.mxu0 0
    %4535 = vmatpush1.bf16.msra.mxu0 0
    %4536 = vmatprep.subr.bf16.mxu0 0
    %4537 = vmatpush1.bf16.msra.mxu0 0
    %4538 = vmatprep.subr.bf16.mxu0 %v4441
    %4539 = vmatpush1.bf16.msra.mxu0 %v4440
    %4540 = vmatprep.subr.bf16.mxu0 %v4436
    %4541 = vmatpush1.bf16.msra.mxu0 %v4435
    %4542 = vmatprep.subr.bf16.mxu0 0
    %4543 = vmatpush2.bf16.msra.mxu0 0
    %4544 = vmatprep.subr.bf16.mxu0 0
    %4545 = vmatpush2.bf16.msra.mxu0 0
    %4546 = vmatprep.subr.bf16.mxu0 0
    %4547 = vmatpush2.bf16.msra.mxu0 0
    %4548 = vmatprep.subr.bf16.mxu0 0
    %4549 = vmatpush2.bf16.msra.mxu0 0
    %4550 = vmatprep.subr.bf16.mxu0 0
    %4551 = vmatpush2.bf16.msra.mxu0 0
    %4552 = vmatprep.subr.bf16.mxu0 0
    %4553 = vmatpush2.bf16.msra.mxu0 0
    %4554 = vmatprep.subr.bf16.mxu0 0
    %4555 = vmatpush2.bf16.msra.mxu0 0
    %4556 = vmatprep.subr.bf16.mxu0 0
    %4557 = vmatpush2.bf16.msra.mxu0 0
    %4558 = vmatprep.mubr.bf16.mxu0 0
    %4559 = vmatmul.mubr.bf16.gmra.mxu0 %v4470
    %v4560 = vpop.f32.mrf.mxu0
    %v4561 = vadd.f32 %v4449, %v4560
    %v4562 = vpop.f32.mrf.mxu0
    %v4563 = vadd.f32 %v4449, %v4562
    %v4564 = vpop.f32.mrf.mxu0
    %v4565 = vadd.f32 %v4454, %v4564
    %v4566 = vpop.f32.mrf.mxu0
    %v4567 = vadd.f32 %v4454, %v4566
    %4568 = vmatprep.mubr.bf16.mxu0 0
    %4569 = vmatmul.mubr.bf16.gmra.mxu0 %v4473
    %v4570 = vpop.f32.mrf.mxu0
    %v4571 = vadd.f32 %v4459, %v4570
    %v4572 = vpop.f32.mrf.mxu0
    %v4573 = vadd.f32 %v4459, %v4572
    %v4574 = vpop.f32.mrf.mxu0
    %v4575 = vpop.f32.mrf.mxu0
    %4576 = vdwg.mxu0
    %4577 = vmatprep.subr.bf16.mxu0 0
    %4578 = vmatpush1.bf16.msra.mxu0 0
    %4579 = vmatprep.subr.bf16.mxu0 0
    %4580 = vmatpush1.bf16.msra.mxu0 0
    %4581 = vmatprep.subr.bf16.mxu0 0
    %4582 = vmatpush1.bf16.msra.mxu0 0
    %4583 = vmatprep.subr.bf16.mxu0 0
    %4584 = vmatpush1.bf16.msra.mxu0 0
    %4585 = vmatprep.subr.bf16.mxu0 0
    %4586 = vmatpush1.bf16.msra.mxu0 0
    %4587 = vmatprep.subr.bf16.mxu0 0
    %4588 = vmatpush1.bf16.msra.mxu0 0
    %4589 = vmatprep.subr.bf16.mxu0 0
    %4590 = vmatpush1.bf16.msra.mxu0 %v4442
    %4591 = vmatprep.subr.bf16.mxu0 0
    %4592 = vmatpush1.bf16.msra.mxu0 %v4437
    %4593 = vmatprep.subr.bf16.mxu0 0
    %4594 = vmatpush2.bf16.msra.mxu0 0
    %4595 = vmatprep.subr.bf16.mxu0 0
    %4596 = vmatpush2.bf16.msra.mxu0 0
    %4597 = vmatprep.subr.bf16.mxu0 0
    %4598 = vmatpush2.bf16.msra.mxu0 0
    %4599 = vmatprep.subr.bf16.mxu0 0
    %4600 = vmatpush2.bf16.msra.mxu0 0
    %4601 = vmatprep.subr.bf16.mxu0 0
    %4602 = vmatpush2.bf16.msra.mxu0 0
    %4603 = vmatprep.subr.bf16.mxu0 0
    %4604 = vmatpush2.bf16.msra.mxu0 0
    %4605 = vmatprep.subr.bf16.mxu0 0
    %4606 = vmatpush2.bf16.msra.mxu0 0
    %4607 = vmatprep.subr.bf16.mxu0 0
    %4608 = vmatpush2.bf16.msra.mxu0 0
    %4609 = vmatprep.mubr.bf16.mxu0 0
    %4610 = vmatmul.mubr.bf16.gmra.mxu0 %v4470
    %v4611 = vpop.f32.mrf.mxu0
    %v4612 = vadd.f32 %v4449, %v4611
    %v4613 = vpop.f32.mrf.mxu0
    %v4614 = vpop.f32.mrf.mxu0
    %v4615 = vadd.f32 %v4454, %v4614
    %v4616 = vpop.f32.mrf.mxu0
    %4617 = vmatprep.mubr.bf16.mxu0 0
    %4618 = vmatmul.mubr.bf16.gmra.mxu0 %v4473
    %v4619 = vpop.f32.mrf.mxu0
    %v4620 = vadd.f32 %v4459, %v4619
    %v4621 = vpop.f32.mrf.mxu0
    %v4622 = vpop.f32.mrf.mxu0
    %v4623 = vpop.f32.mrf.mxu0
    %4624 = vdwg.mxu0
    %s4625 = scalar_lea.vmem [#allocation2], 120
    %4626 = vst [vmem:[%s4625] sm:$0xff] %v4510
    %4627 = vst [vmem:[%s4625 + $0x8] sm:$0xff] %v4512
    %4628 = vst [vmem:[%s4625 + $0x10] sm:$0xff] %v4561
    %4629 = vst [vmem:[%s4625 + $0x18] sm:$0xff] %v4563
    %4630 = vst [vmem:[%s4625 + $0x20] sm:$0xff] %v4612
    %4631 = vst [vmem:[%s4625 + $0x28] sm:$0xff] %v4514
    %4632 = vst [vmem:[%s4625 + $0x30] sm:$0xff] %v4516
    %4633 = vst [vmem:[%s4625 + $0x38] sm:$0xff] %v4565
    %4634 = vst [vmem:[%s4625 + $0x40] sm:$0xff] %v4567
    %4635 = vst [vmem:[%s4625 + $0x48] sm:$0xff] %v4615
    %4636 = vst [vmem:[%s4625 + $0x50] sm:$0xff] %v4520
    %4637 = vst [vmem:[%s4625 + $0x58] sm:$0xff] %v4522
    %4638 = vst [vmem:[%s4625 + $0x60] sm:$0xff] %v4571
    %4639 = vst [vmem:[%s4625 + $0x68] sm:$0xff] %v4573
    %4640 = vst [vmem:[%s4625 + $0x70] sm:$0xff] %v4620
    // Predicated region
    $region22: #{tpu_custom_call.1} parent=1 // pred_check
      _
    $region23: #{tpu_custom_call.1} parent=1 // pred_check_branch
      %4642 = sbr.rel (0) target = $region25
    $region24: #{tpu_custom_call.1} parent=1 // pred_region
      %s4644 = ssub.s32 3840, 3840
      %4645 = vsyncadd [#allocation3], %s4644
      %s4646 = sshll.u32 [#allocation2], 4
      %s4647 = int_to_ptr.vmem [resolvable:$true] %s4646
      %4652 = dma.vmem_to_hbm [thread:$0]  %s4647, 3840, %s5, [#allocation3], 640, 640, 40
    $region25: #{tpu_custom_call.1} parent=1 // pred_fallthru
      _
    // Predicated region
    $region26: #{tpu_custom_call.1} parent=1 // pred_check
      _
    $region27: #{tpu_custom_call.1} parent=1 // pred_check_branch
      %4654 = sbr.rel (0) target = $region29
    $region28: #{tpu_custom_call.1} parent=1 // pred_region
      %4655 = dma.done [#allocation3], 3840
    $region29: #{tpu_custom_call.1} parent=1 // pred_fallthru
      _
    %4656 = vsyncpa [#allocation3], 1

</llo_original>
